<compile_context>
chip_gen: v7x
topology: tpu7x:2x2x1
jax: 0.10.0
libtpu: 0.0.40
codegen_flags: <defaults>
</compile_context>

<pallas_src>
import math
import functools

import jax
import jax.numpy as jnp
from jax.experimental import pallas as pl
from jax.experimental.pallas import tpu as pltpu


# ----------------------------------------------------------------------------
# helpers
# ----------------------------------------------------------------------------
def _pick_tile(dim, target):
    """Largest tile <= target that evenly divides dim (keeps BlockSpecs exact)."""
    t = min(dim, target)
    while dim % t:
        t -= 1
    return t


# ----------------------------------------------------------------------------
# Tiled linear kernel  (optionally + relu, + fused residual add)
# ----------------------------------------------------------------------------
def _linear_kernel(*refs, activation, has_residual):
    if has_residual:
        x_ref, w_ref, b_ref, r_ref, o_ref, acc_ref = refs
    else:
        x_ref, w_ref, b_ref, o_ref, acc_ref = refs
        r_ref = None
    k = pl.program_id(2)

    @pl.when(k == 0)
    def _init():
        acc_ref[...] = jnp.zeros_like(acc_ref)

    acc_ref[...] += jnp.dot(
        x_ref[...].astype(jnp.float32),
        w_ref[...].astype(jnp.float32),
        preferred_element_type=jnp.float32,
    )

    @pl.when(k == pl.num_programs(2) - 1)
    def _flush():
        y = acc_ref[...] + b_ref[...].astype(jnp.float32)
        if activation == "relu":
            y = jnp.maximum(y, 0.0)
        if has_residual:
            y = y + r_ref[...].astype(jnp.float32)
        o_ref[...] = y.astype(o_ref.dtype)


def linear(x2d, w, b, *, activation=None, residual=None, tm=256, tn=256, tk=512):
    """x2d: (M, K) @ w: (K, N) + b: (1, N) [+ residual (M, N)] -> (M, N)."""
    M, K = x2d.shape
    N = w.shape[1]
    tm = _pick_tile(M, tm)
    tn = _pick_tile(N, tn)
    tk = _pick_tile(K, tk)
    grid = (M // tm, N // tn, K // tk)

    in_specs = [
        pl.BlockSpec((tm, tk), lambda i, j, k: (i, k)),
        pl.BlockSpec((tk, tn), lambda i, j, k: (k, j)),
        pl.BlockSpec((1, tn), lambda i, j, k: (0, j)),
    ]
    args = [x2d, w, b]
    if residual is not None:
        in_specs.append(pl.BlockSpec((tm, tn), lambda i, j, k: (i, j)))
        args.append(residual)

    return pl.pallas_call(
        functools.partial(_linear_kernel, activation=activation,
                          has_residual=residual is not None),
        out_shape=jax.ShapeDtypeStruct((M, N), x2d.dtype),
        grid=grid,
        in_specs=in_specs,
        out_specs=pl.BlockSpec((tm, tn), lambda i, j, k: (i, j)),
        scratch_shapes=[pltpu.VMEM((tm, tn), jnp.float32)],
        compiler_params=pltpu.CompilerParams(
            dimension_semantics=("parallel", "parallel", "arbitrary")),
    )(*args)


# ----------------------------------------------------------------------------
# LayerNorm fused into a following linear (pre-norm sublayer prologue)
# ----------------------------------------------------------------------------
def _ln_linear_kernel(x_ref, g_ref, bta_ref, w_ref, b_ref, o_ref, *, activation, eps):
    x = x_ref[...].astype(jnp.float32)                       # (tm, D) full feature dim
    d = x.shape[-1]
    mean = jnp.mean(x, axis=-1, keepdims=True)
    xc = x - mean
    var = jnp.sum(xc * xc, axis=-1, keepdims=True) / (d - 1)  # unbiased (torch .std())
    # exact divide kept for LayerNorm numerics parity (no approx reciprocal here)
    xn = g_ref[...].astype(jnp.float32) * xc / (jnp.sqrt(var) + eps) \
        + bta_ref[...].astype(jnp.float32)
    y = jnp.dot(xn, w_ref[...].astype(jnp.float32),
                preferred_element_type=jnp.float32) + b_ref[...].astype(jnp.float32)
    if activation == "relu":
        y = jnp.maximum(y, 0.0)
    o_ref[...] = y.astype(o_ref.dtype)


def ln_linear(x2d, gamma, beta, w, b, *, activation=None, eps=1e-6, tm=256, tn=512):
    """(W @ LayerNorm(x)) fused: x2d (M, D), w (D, N) -> (M, N). Full-K per tile."""
    M, D = x2d.shape
    N = w.shape[1]
    tm = _pick_tile(M, tm)
    tn = _pick_tile(N, tn)
    grid = (M // tm, N // tn)
    return pl.pallas_call(
        functools.partial(_ln_linear_kernel, activation=activation, eps=eps),
        out_shape=jax.ShapeDtypeStruct((M, N), x2d.dtype),
        grid=grid,
        in_specs=[
            pl.BlockSpec((tm, D), lambda i, j: (i, 0)),
            pl.BlockSpec((1, D), lambda i, j: (0, 0)),
            pl.BlockSpec((1, D), lambda i, j: (0, 0)),
            pl.BlockSpec((D, tn), lambda i, j: (0, j)),
            pl.BlockSpec((1, tn), lambda i, j: (0, j)),
        ],
        out_specs=pl.BlockSpec((tm, tn), lambda i, j: (i, j)),
        compiler_params=pltpu.CompilerParams(
            dimension_semantics=("parallel", "parallel")),
    )(x2d, gamma, beta, w, b)


# ----------------------------------------------------------------------------
# Standalone LayerNorm (final encoder / decoder norm), gridded over rows
# ----------------------------------------------------------------------------
def _layernorm_kernel(x_ref, g_ref, b_ref, o_ref, *, eps):
    x = x_ref[...].astype(jnp.float32)
    d = x.shape[-1]
    mean = jnp.mean(x, axis=-1, keepdims=True)
    xc = x - mean
    var = jnp.sum(xc * xc, axis=-1, keepdims=True) / (d - 1)
    y = g_ref[...].astype(jnp.float32) * xc / (jnp.sqrt(var) + eps) \
        + b_ref[...].astype(jnp.float32)
    o_ref[...] = y.astype(o_ref.dtype)


def layer_norm(x3d, gamma, beta, *, eps=1e-6, tm=512):
    B, T, D = x3d.shape
    M = B * T
    tm = _pick_tile(M, tm)
    out = pl.pallas_call(
        functools.partial(_layernorm_kernel, eps=eps),
        out_shape=jax.ShapeDtypeStruct((M, D), x3d.dtype),
        grid=(M // tm,),
        in_specs=[
            pl.BlockSpec((tm, D), lambda i: (i, 0)),
            pl.BlockSpec((1, D), lambda i: (0, 0)),
            pl.BlockSpec((1, D), lambda i: (0, 0)),
        ],
        out_specs=pl.BlockSpec((tm, D), lambda i: (i, 0)),
        compiler_params=pltpu.CompilerParams(dimension_semantics=("parallel",)),
    )(x3d.reshape(M, D), gamma, beta)
    return out.reshape(B, T, D)


# ----------------------------------------------------------------------------
# Multi-head attention kernels (all heads of one batch element per grid step)
# ----------------------------------------------------------------------------
def _mha_heads(q_all, k_all, v_all, mask, *, h, dh, scale, out_dtype):
    """q_all (Tq, D), k_all/v_all (Tk, D), mask (1|Tq, Tk) -> (Tq, D)."""
    outs = []
    for j in range(h):                                   # static unroll over heads
        lo = j * dh
        q = q_all[:, lo:lo + dh] * scale                 # fold 1/sqrt(dh) into small q
        k = k_all[:, lo:lo + dh]
        v = v_all[:, lo:lo + dh]
        s = jax.lax.dot_general(q, k, (((1,), (1,)), ((), ())),
                                preferred_element_type=jnp.float32)
        s = jnp.where(mask == 0, -1e9, s)
        s = s - jnp.max(s, axis=-1, keepdims=True)
        p = jnp.exp(s)
        p = p * pl.reciprocal(jnp.sum(p, axis=-1, keepdims=True), approx=True)
        outs.append(jnp.dot(p, v, preferred_element_type=jnp.float32))
    # single lane-dense store of all heads
    return jnp.concatenate(outs, axis=-1).astype(out_dtype)


def _self_attn_kernel(qkv_ref, m_ref, o_ref, *, h, dh, scale):
    qkv = qkv_ref[0].astype(jnp.float32)                 # (T, 3D)
    D = h * dh
    o_ref[0] = _mha_heads(qkv[:, :D], qkv[:, D:2 * D], qkv[:, 2 * D:], m_ref[0],
                          h=h, dh=dh, scale=scale, out_dtype=o_ref.dtype)


def _cross_attn_kernel(q_ref, kv_ref, m_ref, o_ref, *, h, dh, scale):
    q = q_ref[0].astype(jnp.float32)                     # (Tq, D)
    kv = kv_ref[0].astype(jnp.float32)                   # (Tk, 2D)
    D = h * dh
    o_ref[0] = _mha_heads(q, kv[:, :D], kv[:, D:], m_ref[0],
                          h=h, dh=dh, scale=scale, out_dtype=o_ref.dtype)


# TODO(synk): for long sequences (esp. v7x 64 MiB VMEM) block the Tk axis with an
# online-softmax (flash-style) loop instead of materializing the full (Tq, Tk) scores.
def self_attention(qkv, mask, *, h, dh):
    """qkv: (B, T, 3D) fused projections; mask: (B, 1|T, T) int."""
    B, T, D3 = qkv.shape
    D = h * dh
    Mm, Tk = mask.shape[1], mask.shape[2]
    return pl.pallas_call(
        functools.partial(_self_attn_kernel, h=h, dh=dh, scale=1.0 / math.sqrt(dh)),
        out_shape=jax.ShapeDtypeStruct((B, T, D), qkv.dtype),
        grid=(B,),
        in_specs=[
            pl.BlockSpec((1, T, D3), lambda b: (b, 0, 0)),
            pl.BlockSpec((1, Mm, Tk), lambda b: (b, 0, 0)),   # original mask, no per-head copy
        ],
        out_specs=pl.BlockSpec((1, T, D), lambda b: (b, 0, 0)),
        compiler_params=pltpu.CompilerParams(dimension_semantics=("parallel",)),
    )(qkv, mask.astype(jnp.int32))


def cross_attention(q, kv, mask, *, h, dh):
    """q: (B, Tq, D); kv: (B, Tk, 2D) fused K|V; mask: (B, 1|Tq, Tk) int."""
    B, Tq, D = q.shape
    Tk = kv.shape[1]
    Mm = mask.shape[1]
    return pl.pallas_call(
        functools.partial(_cross_attn_kernel, h=h, dh=dh, scale=1.0 / math.sqrt(dh)),
        out_shape=jax.ShapeDtypeStruct((B, Tq, D), q.dtype),
        grid=(B,),
        in_specs=[
            pl.BlockSpec((1, Tq, D), lambda b: (b, 0, 0)),
            pl.BlockSpec((1, Tk, 2 * D), lambda b: (b, 0, 0)),
            pl.BlockSpec((1, Mm, Tk), lambda b: (b, 0, 0)),
        ],
        out_specs=pl.BlockSpec((1, Tq, D), lambda b: (b, 0, 0)),
        compiler_params=pltpu.CompilerParams(dimension_semantics=("parallel",)),
    )(q, kv, mask.astype(jnp.int32))


# ----------------------------------------------------------------------------
# Sublayers / layers (glue; all heavy math is in the Pallas kernels above)
# ----------------------------------------------------------------------------
def self_attn_sublayer(p, x3d, mask, *, h):
    """x + Wo(MHA(LN(x))): LN fused into the QKV matmul, residual fused into Wo."""
    B, T, D = x3d.shape
    dh = D // h
    x2d = x3d.reshape(B * T, D)
    qkv = ln_linear(x2d, p["ln_g"], p["ln_b"], p["w_qkv"], p["b_qkv"])      # (B*T, 3D)
    attn = self_attention(qkv.reshape(B, T, 3 * D), mask, h=h, dh=dh)       # (B, T, D)
    out = linear(attn.reshape(B * T, D), p["wo"], p["bo"], residual=x2d)
    return out.reshape(B, T, D)


def cross_attn_sublayer(p, x3d, memory, mask, *, h):
    B, Tq, D = x3d.shape
    S = memory.shape[1]
    dh = D // h
    x2d = x3d.reshape(B * Tq, D)
    q = ln_linear(x2d, p["ln_g"], p["ln_b"], p["wq"], p["bq"])              # (B*Tq, D)
    kv = linear(memory.reshape(B * S, D), p["w_kv"], p["b_kv"])             # (B*S, 2D)
    attn = cross_attention(q.reshape(B, Tq, D), kv.reshape(B, S, 2 * D), mask, h=h, dh=dh)
    out = linear(attn.reshape(B * Tq, D), p["wo"], p["bo"], residual=x2d)
    return out.reshape(B, Tq, D)


def ffn_sublayer(p, x3d):
    """x + W2(relu(W1(LN(x)))): LN fused into W1, residual fused into W2."""
    B, T, D = x3d.shape
    x2d = x3d.reshape(B * T, D)
    h1 = ln_linear(x2d, p["ln_g"], p["ln_b"], p["w1"], p["b1"], activation="relu")
    out = linear(h1, p["w2"], p["b2"], residual=x2d)
    return out.reshape(B, T, D)


def encoder_layer(p, x, src_mask, *, h):
    x = self_attn_sublayer(p["self"], x, src_mask, h=h)
    return ffn_sublayer(p["ff"], x)


def decoder_layer(p, x, memory, src_mask, tgt_mask, *, h):
    x = self_attn_sublayer(p["self"], x, tgt_mask, h=h)
    x = cross_attn_sublayer(p["src"], x, memory, src_mask, h=h)
    return ffn_sublayer(p["ff"], x)


def embed(lut, pe, tokens, d_model):
    # TODO(synk): data-dependent embedding gather left to XLA (would need manual DMA gather).
    # NOTE: sequences longer than pe's max_len would be wrong (same as reference PE buffer).
    x = jnp.take(lut, tokens, axis=0) * math.sqrt(d_model)
    return x + pe[None, : tokens.shape[1], :]


@functools.partial(jax.jit, static_argnames=("d_model", "h"))
def jambu_forward(params, src, tgt, src_mask, tgt_mask,
                  src_lengths=None, tgt_lengths=None, *, d_model, h):
    """Matches JambuTransformerEncoderDecoder.forward: decode(encode(src), ...)."""
    del src_lengths, tgt_lengths   # accepted and ignored, as in the reference forward

    # encode
    x = embed(params["src_lut"], params["pe"], src, d_model)
    for lp in params["enc_layers"]:
        x = encoder_layer(lp, x, src_mask, h=h)
    memory = layer_norm(x, params["enc_norm_g"], params["enc_norm_b"])

    # decode
    y = embed(params["tgt_lut"], params["pe"], tgt, d_model)
    for lp in params["dec_layers"]:
        y = decoder_layer(lp, y, memory, src_mask, tgt_mask, h=h)
    return layer_norm(y, params["dec_norm_g"], params["dec_norm_b"])


# ----------------------------------------------------------------------------
# Deterministic parameter construction (fused QKV / KV weights)
# ----------------------------------------------------------------------------
def init_params(key, *, vocab_src, vocab_tgt, d_model, d_ff, h, n_layers, max_len=64):
    keys = iter(jax.random.split(key, 1024))

    def dense(shape):
        return jax.random.normal(next(keys), shape, jnp.float32) * 0.02

    def zeros(n):
        return jnp.zeros((1, n), jnp.float32)

    def ln():
        return jnp.ones((1, d_model), jnp.float32), jnp.zeros((1, d_model), jnp.float32)

    def self_attn_block():
        g, b = ln()
        # fused weight == concat of the torch wq|wk|wv along the output dim
        return {
            "ln_g": g, "ln_b": b,
            "w_qkv": jnp.concatenate([dense((d_model, d_model)) for _ in range(3)], axis=1),
            "b_qkv": zeros(3 * d_model),
            "wo": dense((d_model, d_model)), "bo": zeros(d_model),
        }

    def cross_attn_block():
        g, b = ln()
        return {
            "ln_g": g, "ln_b": b,
            "wq": dense((d_model, d_model)), "bq": zeros(d_model),
            "w_kv": jnp.concatenate([dense((d_model, d_model)) for _ in range(2)], axis=1),
            "b_kv": zeros(2 * d_model),
            "wo": dense((d_model, d_model)), "bo": zeros(d_model),
        }

    def ffn_block():
        g, b = ln()
        return {
            "ln_g": g, "ln_b": b,
            "w1": dense((d_model, d_ff)), "b1": zeros(d_ff),
            "w2": dense((d_ff, d_model)), "b2": zeros(d_model),
        }

    def enc_layer():
        return {"self": self_attn_block(), "ff": ffn_block()}

    def dec_layer():
        return {"self": self_attn_block(), "src": cross_attn_block(), "ff": ffn_block()}

    # sinusoidal positional encoding
    pos = jnp.arange(max_len, dtype=jnp.float32)[:, None]
    div = jnp.exp(jnp.arange(0, d_model, 2, dtype=jnp.float32)
                  * (-math.log(10000.0) / d_model))
    pe = jnp.zeros((max_len, d_model), jnp.float32)
    pe = pe.at[:, 0::2].set(jnp.sin(pos * div))
    pe = pe.at[:, 1::2].set(jnp.cos(pos * div))

    eg, eb = ln()
    dg, db = ln()
    return {
        "src_lut": dense((vocab_src, d_model)),
        "tgt_lut": dense((vocab_tgt, d_model)),
        "pe": pe,
        "enc_layers": [enc_layer() for _ in range(n_layers)],
        "dec_layers": [dec_layer() for _ in range(n_layers)],
        "enc_norm_g": eg, "enc_norm_b": eb,
        "dec_norm_g": dg, "dec_norm_b": db,
    }


# ----------------------------------------------------------------------------
# Demo / smoke test
# ----------------------------------------------------------------------------
if __name__ == "__main__":
    B, S, T = 2, 8, 8
    vocab = 16
    d_model, d_ff, h, n_layers = 32, 64, 4, 2

    key = jax.random.PRNGKey(0)
    k_params, k_src, k_tgt = jax.random.split(key, 3)

    params = init_params(
        k_params, vocab_src=vocab, vocab_tgt=vocab,
        d_model=d_model, d_ff=d_ff, h=h, n_layers=n_layers,
    )

    src = jax.random.randint(k_src, (B, S), 0, vocab, dtype=jnp.int32)
    tgt = jax.random.randint(k_tgt, (B, T), 0, vocab, dtype=jnp.int32)

    # src_mask: (B, 1, S) all valid; tgt_mask: (B, T, T) causal (subsequent mask).
    src_mask = jnp.ones((B, 1, S), dtype=jnp.int32)
    tgt_mask = jnp.broadcast_to(
        jnp.tril(jnp.ones((T, T), dtype=jnp.int32))[None, :, :], (B, T, T)
    )
    src_lengths = jnp.full((B,), S, dtype=jnp.int32)
    tgt_lengths = jnp.full((B,), T, dtype=jnp.int32)

    out = jambu_forward(params, src, tgt, src_mask, tgt_mask,
                        src_lengths, tgt_lengths, d_model=d_model, h=h)
    out = jax.block_until_ready(out)

    assert out.shape == (B, T, d_model), out.shape
    assert bool(jnp.all(jnp.isfinite(out)))
    print("KERNEL_OK")
</pallas_src>

<mosaic_0001>
module attributes {stable_mosaic.version = 11 : i64} {
  func.func @_self_attn_kernel(%arg0: i32, %arg1: memref<1x8x96xf32, #tpu.memory_space<vmem>>, %arg2: memref<1x1x8xi32, #tpu.memory_space<vmem>>, %arg3: memref<1x8x32xf32, #tpu.memory_space<vmem>>) attributes {dimension_semantics = [#tpu.dimension_semantics<parallel>], iteration_bounds = array<i64: 2>, scalar_prefetch = 0 : i64, scratch_operands = 0 : i64, tpu.core_type = #tpu.core_type<tc>, window_params = [{transform_indices = @transform_0, window_bounds = array<i64: 1, 8, 96>}, {transform_indices = @transform_1, window_bounds = array<i64: 1, 1, 8>}, {transform_indices = @transform_2, window_bounds = array<i64: 1, 8, 32>}]} {
    %c0 = arith.constant 0 : index
    %c0_0 = arith.constant 0 : index
    %c0_1 = arith.constant 0 : index
    %0 = vector.load %arg1[%c0, %c0_0, %c0_1] : memref<1x8x96xf32, #tpu.memory_space<vmem>>, vector<1x8x96xf32>
    %1 = vector.shape_cast %0 : vector<1x8x96xf32> to vector<8x96xf32>
    %2 = vector.extract_strided_slice %1 {offsets = [0, 0], sizes = [8, 32], strides = [1, 1]} : vector<8x96xf32> to vector<8x32xf32>
    %3 = vector.extract_strided_slice %1 {offsets = [0, 32], sizes = [8, 32], strides = [1, 1]} : vector<8x96xf32> to vector<8x32xf32>
    %4 = vector.extract_strided_slice %1 {offsets = [0, 64], sizes = [8, 32], strides = [1, 1]} : vector<8x96xf32> to vector<8x32xf32>
    %c0_2 = arith.constant 0 : index
    %c0_3 = arith.constant 0 : index
    %c0_4 = arith.constant 0 : index
    %5 = vector.load %arg2[%c0_2, %c0_3, %c0_4] : memref<1x1x8xi32, #tpu.memory_space<vmem>>, vector<1x1x8xi32>
    %6 = vector.shape_cast %5 : vector<1x1x8xi32> to vector<1x8xi32>
    %7 = vector.extract_strided_slice %2 {offsets = [0, 0], sizes = [8, 8], strides = [1, 1]} : vector<8x32xf32> to vector<8x8xf32>
    %cst = arith.constant 0.353553385 : f32
    %8 = vector.broadcast %cst : f32 to vector<8x8xf32>
    %9 = arith.mulf %7, %8 : vector<8x8xf32>
    %10 = vector.extract_strided_slice %3 {offsets = [0, 0], sizes = [8, 8], strides = [1, 1]} : vector<8x32xf32> to vector<8x8xf32>
    %11 = vector.extract_strided_slice %4 {offsets = [0, 0], sizes = [8, 8], strides = [1, 1]} : vector<8x32xf32> to vector<8x8xf32>
    %cst_5 = arith.constant dense<0.000000e+00> : vector<8x8xf32>
    %12 = tpu.matmul %9, %10, %cst_5 {dimension_numbers = #tpu.dot_dimension_numbers<[1], [1], [0], [0], [0, 0, 1, 0], [], []>} : vector<8x8xf32>, vector<8x8xf32>, vector<8x8xf32> -> vector<8x8xf32>
    %c0_i32 = arith.constant 0 : i32
    %13 = vector.broadcast %c0_i32 : i32 to vector<1x8xi32>
    %14 = arith.cmpi eq, %6, %13 : vector<1x8xi32>
    %cst_6 = arith.constant -1.000000e+09 : f32
    %15 = vector.shape_cast %14 : vector<1x8xi1> to vector<1x8xi1>
    %16 = vector.broadcast %15 : vector<1x8xi1> to vector<8x8xi1>
    %17 = vector.broadcast %cst_6 : f32 to vector<8x8xf32>
    %18 = arith.select %16, %17, %12 : vector<8x8xi1>, vector<8x8xf32>
    %cst_7 = arith.constant dense<0xFF800000> : vector<8xf32>
    %19 = vector.multi_reduction <maximumf>, %18, %cst_7 [1] : vector<8x8xf32> to vector<8xf32>
    %20 = vector.shape_cast %19 : vector<8xf32> to vector<8x1xf32>
    %21 = vector.broadcast %20 : vector<8x1xf32> to vector<8x8xf32>
    %22 = arith.subf %18, %21 : vector<8x8xf32>
    %23 = math.exp %22 : vector<8x8xf32>
    %cst_8 = arith.constant dense<0.000000e+00> : vector<8xf32>
    %24 = vector.multi_reduction <add>, %23, %cst_8 [1] : vector<8x8xf32> to vector<8xf32>
    %25 = vector.shape_cast %24 : vector<8xf32> to vector<8x1xf32>
    %26 = tpu.reciprocal %25 {approx = true} : vector<8x1xf32> -> vector<8x1xf32>
    %27 = vector.broadcast %26 : vector<8x1xf32> to vector<8x8xf32>
    %28 = arith.mulf %23, %27 : vector<8x8xf32>
    %cst_9 = arith.constant dense<0.000000e+00> : vector<8x8xf32>
    %29 = tpu.matmul %28, %11, %cst_9 {dimension_numbers = #tpu.dot_dimension_numbers<[1], [0], [0], [1], [0, 0, 1, 1], [], []>} : vector<8x8xf32>, vector<8x8xf32>, vector<8x8xf32> -> vector<8x8xf32>
    %30 = vector.extract_strided_slice %2 {offsets = [0, 8], sizes = [8, 8], strides = [1, 1]} : vector<8x32xf32> to vector<8x8xf32>
    %cst_10 = arith.constant 0.353553385 : f32
    %31 = vector.broadcast %cst_10 : f32 to vector<8x8xf32>
    %32 = arith.mulf %30, %31 : vector<8x8xf32>
    %33 = vector.extract_strided_slice %3 {offsets = [0, 8], sizes = [8, 8], strides = [1, 1]} : vector<8x32xf32> to vector<8x8xf32>
    %34 = vector.extract_strided_slice %4 {offsets = [0, 8], sizes = [8, 8], strides = [1, 1]} : vector<8x32xf32> to vector<8x8xf32>
    %cst_11 = arith.constant dense<0.000000e+00> : vector<8x8xf32>
    %35 = tpu.matmul %32, %33, %cst_11 {dimension_numbers = #tpu.dot_dimension_numbers<[1], [1], [0], [0], [0, 0, 1, 0], [], []>} : vector<8x8xf32>, vector<8x8xf32>, vector<8x8xf32> -> vector<8x8xf32>
    %c0_i32_12 = arith.constant 0 : i32
    %36 = vector.broadcast %c0_i32_12 : i32 to vector<1x8xi32>
    %37 = arith.cmpi eq, %6, %36 : vector<1x8xi32>
    %cst_13 = arith.constant -1.000000e+09 : f32
    %38 = vector.shape_cast %37 : vector<1x8xi1> to vector<1x8xi1>
    %39 = vector.broadcast %38 : vector<1x8xi1> to vector<8x8xi1>
    %40 = vector.broadcast %cst_13 : f32 to vector<8x8xf32>
    %41 = arith.select %39, %40, %35 : vector<8x8xi1>, vector<8x8xf32>
    %cst_14 = arith.constant dense<0xFF800000> : vector<8xf32>
    %42 = vector.multi_reduction <maximumf>, %41, %cst_14 [1] : vector<8x8xf32> to vector<8xf32>
    %43 = vector.shape_cast %42 : vector<8xf32> to vector<8x1xf32>
    %44 = vector.broadcast %43 : vector<8x1xf32> to vector<8x8xf32>
    %45 = arith.subf %41, %44 : vector<8x8xf32>
    %46 = math.exp %45 : vector<8x8xf32>
    %cst_15 = arith.constant dense<0.000000e+00> : vector<8xf32>
    %47 = vector.multi_reduction <add>, %46, %cst_15 [1] : vector<8x8xf32> to vector<8xf32>
    %48 = vector.shape_cast %47 : vector<8xf32> to vector<8x1xf32>
    %49 = tpu.reciprocal %48 {approx = true} : vector<8x1xf32> -> vector<8x1xf32>
    %50 = vector.broadcast %49 : vector<8x1xf32> to vector<8x8xf32>
    %51 = arith.mulf %46, %50 : vector<8x8xf32>
    %cst_16 = arith.constant dense<0.000000e+00> : vector<8x8xf32>
    %52 = tpu.matmul %51, %34, %cst_16 {dimension_numbers = #tpu.dot_dimension_numbers<[1], [0], [0], [1], [0, 0, 1, 1], [], []>} : vector<8x8xf32>, vector<8x8xf32>, vector<8x8xf32> -> vector<8x8xf32>
    %53 = vector.extract_strided_slice %2 {offsets = [0, 16], sizes = [8, 8], strides = [1, 1]} : vector<8x32xf32> to vector<8x8xf32>
    %cst_17 = arith.constant 0.353553385 : f32
    %54 = vector.broadcast %cst_17 : f32 to vector<8x8xf32>
    %55 = arith.mulf %53, %54 : vector<8x8xf32>
    %56 = vector.extract_strided_slice %3 {offsets = [0, 16], sizes = [8, 8], strides = [1, 1]} : vector<8x32xf32> to vector<8x8xf32>
    %57 = vector.extract_strided_slice %4 {offsets = [0, 16], sizes = [8, 8], strides = [1, 1]} : vector<8x32xf32> to vector<8x8xf32>
    %cst_18 = arith.constant dense<0.000000e+00> : vector<8x8xf32>
    %58 = tpu.matmul %55, %56, %cst_18 {dimension_numbers = #tpu.dot_dimension_numbers<[1], [1], [0], [0], [0, 0, 1, 0], [], []>} : vector<8x8xf32>, vector<8x8xf32>, vector<8x8xf32> -> vector<8x8xf32>
    %c0_i32_19 = arith.constant 0 : i32
    %59 = vector.broadcast %c0_i32_19 : i32 to vector<1x8xi32>
    %60 = arith.cmpi eq, %6, %59 : vector<1x8xi32>
    %cst_20 = arith.constant -1.000000e+09 : f32
    %61 = vector.shape_cast %60 : vector<1x8xi1> to vector<1x8xi1>
    %62 = vector.broadcast %61 : vector<1x8xi1> to vector<8x8xi1>
    %63 = vector.broadcast %cst_20 : f32 to vector<8x8xf32>
    %64 = arith.select %62, %63, %58 : vector<8x8xi1>, vector<8x8xf32>
    %cst_21 = arith.constant dense<0xFF800000> : vector<8xf32>
    %65 = vector.multi_reduction <maximumf>, %64, %cst_21 [1] : vector<8x8xf32> to vector<8xf32>
    %66 = vector.shape_cast %65 : vector<8xf32> to vector<8x1xf32>
    %67 = vector.broadcast %66 : vector<8x1xf32> to vector<8x8xf32>
    %68 = arith.subf %64, %67 : vector<8x8xf32>
    %69 = math.exp %68 : vector<8x8xf32>
    %cst_22 = arith.constant dense<0.000000e+00> : vector<8xf32>
    %70 = vector.multi_reduction <add>, %69, %cst_22 [1] : vector<8x8xf32> to vector<8xf32>
    %71 = vector.shape_cast %70 : vector<8xf32> to vector<8x1xf32>
    %72 = tpu.reciprocal %71 {approx = true} : vector<8x1xf32> -> vector<8x1xf32>
    %73 = vector.broadcast %72 : vector<8x1xf32> to vector<8x8xf32>
    %74 = arith.mulf %69, %73 : vector<8x8xf32>
    %cst_23 = arith.constant dense<0.000000e+00> : vector<8x8xf32>
    %75 = tpu.matmul %74, %57, %cst_23 {dimension_numbers = #tpu.dot_dimension_numbers<[1], [0], [0], [1], [0, 0, 1, 1], [], []>} : vector<8x8xf32>, vector<8x8xf32>, vector<8x8xf32> -> vector<8x8xf32>
    %76 = vector.extract_strided_slice %2 {offsets = [0, 24], sizes = [8, 8], strides = [1, 1]} : vector<8x32xf32> to vector<8x8xf32>
    %cst_24 = arith.constant 0.353553385 : f32
    %77 = vector.broadcast %cst_24 : f32 to vector<8x8xf32>
    %78 = arith.mulf %76, %77 : vector<8x8xf32>
    %79 = vector.extract_strided_slice %3 {offsets = [0, 24], sizes = [8, 8], strides = [1, 1]} : vector<8x32xf32> to vector<8x8xf32>
    %80 = vector.extract_strided_slice %4 {offsets = [0, 24], sizes = [8, 8], strides = [1, 1]} : vector<8x32xf32> to vector<8x8xf32>
    %cst_25 = arith.constant dense<0.000000e+00> : vector<8x8xf32>
    %81 = tpu.matmul %78, %79, %cst_25 {dimension_numbers = #tpu.dot_dimension_numbers<[1], [1], [0], [0], [0, 0, 1, 0], [], []>} : vector<8x8xf32>, vector<8x8xf32>, vector<8x8xf32> -> vector<8x8xf32>
    %c0_i32_26 = arith.constant 0 : i32
    %82 = vector.broadcast %c0_i32_26 : i32 to vector<1x8xi32>
    %83 = arith.cmpi eq, %6, %82 : vector<1x8xi32>
    %cst_27 = arith.constant -1.000000e+09 : f32
    %84 = vector.shape_cast %83 : vector<1x8xi1> to vector<1x8xi1>
    %85 = vector.broadcast %84 : vector<1x8xi1> to vector<8x8xi1>
    %86 = vector.broadcast %cst_27 : f32 to vector<8x8xf32>
    %87 = arith.select %85, %86, %81 : vector<8x8xi1>, vector<8x8xf32>
    %cst_28 = arith.constant dense<0xFF800000> : vector<8xf32>
    %88 = vector.multi_reduction <maximumf>, %87, %cst_28 [1] : vector<8x8xf32> to vector<8xf32>
    %89 = vector.shape_cast %88 : vector<8xf32> to vector<8x1xf32>
    %90 = vector.broadcast %89 : vector<8x1xf32> to vector<8x8xf32>
    %91 = arith.subf %87, %90 : vector<8x8xf32>
    %92 = math.exp %91 : vector<8x8xf32>
    %cst_29 = arith.constant dense<0.000000e+00> : vector<8xf32>
    %93 = vector.multi_reduction <add>, %92, %cst_29 [1] : vector<8x8xf32> to vector<8xf32>
    %94 = vector.shape_cast %93 : vector<8xf32> to vector<8x1xf32>
    %95 = tpu.reciprocal %94 {approx = true} : vector<8x1xf32> -> vector<8x1xf32>
    %96 = vector.broadcast %95 : vector<8x1xf32> to vector<8x8xf32>
    %97 = arith.mulf %92, %96 : vector<8x8xf32>
    %cst_30 = arith.constant dense<0.000000e+00> : vector<8x8xf32>
    %98 = tpu.matmul %97, %80, %cst_30 {dimension_numbers = #tpu.dot_dimension_numbers<[1], [0], [0], [1], [0, 0, 1, 1], [], []>} : vector<8x8xf32>, vector<8x8xf32>, vector<8x8xf32> -> vector<8x8xf32>
    %99 = tpu.concatenate %29, %52, %75, %98 in 1 : vector<8x8xf32>, vector<8x8xf32>, vector<8x8xf32>, vector<8x8xf32> -> vector<8x32xf32>
    %c0_31 = arith.constant 0 : index
    %c0_32 = arith.constant 0 : index
    %c0_33 = arith.constant 0 : index
    %100 = vector.load %arg3[%c0_31, %c0_32, %c0_33] : memref<1x8x32xf32, #tpu.memory_space<vmem>>, vector<1x8x32xf32>
    %101 = vector.shape_cast %100 : vector<1x8x32xf32> to vector<8x32xf32>
    %102 = vector.shape_cast %99 : vector<8x32xf32> to vector<1x8x32xf32>
    tpu.vector_store %arg3[%c0_31, %c0_32, %c0_33], %102 {strides = array<i32>} : memref<1x8x32xf32, #tpu.memory_space<vmem>>, vector<1x8x32xf32>,
    return
  }
  func.func @transform_0(%arg0: i32) -> (i32, i32, i32) {
    %c0_i32 = arith.constant 0 : i32
    %c0_i32_0 = arith.constant 0 : i32
    %c0_i32_1 = arith.constant 0 : i32
    return %arg0, %c0_i32, %c0_i32_0 : i32, i32, i32
  }
  func.func @transform_1(%arg0: i32) -> (i32, i32, i32) {
    %c0_i32 = arith.constant 0 : i32
    %c0_i32_0 = arith.constant 0 : i32
    %c0_i32_1 = arith.constant 0 : i32
    return %arg0, %c0_i32, %c0_i32_0 : i32, i32, i32
  }
  func.func @transform_2(%arg0: i32) -> (i32, i32, i32) {
    %c0_i32 = arith.constant 0 : i32
    %c0_i32_0 = arith.constant 0 : i32
    %c0_i32_1 = arith.constant 0 : i32
    return %arg0, %c0_i32, %c0_i32_0 : i32, i32, i32
  }
}

module attributes {stable_mosaic.version = 11 : i64} {
  func.func @_ln_linear_kernel(%arg0: i32, %arg1: i32, %arg2: memref<16x32xf32, #tpu.memory_space<vmem>>, %arg3: memref<1x32xf32, #tpu.memory_space<vmem>>, %arg4: memref<1x32xf32, #tpu.memory_space<vmem>>, %arg5: memref<32x96xf32, #tpu.memory_space<vmem>>, %arg6: memref<1x96xf32, #tpu.memory_space<vmem>>, %arg7: memref<16x96xf32, #tpu.memory_space<vmem>>) attributes {dimension_semantics = [#tpu.dimension_semantics<parallel>, #tpu.dimension_semantics<parallel>], iteration_bounds = array<i64: 1, 1>, scalar_prefetch = 0 : i64, scratch_operands = 0 : i64, tpu.core_type = #tpu.core_type<tc>, window_params = [{transform_indices = @transform_0, window_bounds = array<i64: 16, 32>}, {pipeline_mode = #tpu.pipeline_mode<synchronous>, transform_indices = @transform_1, window_bounds = array<i64: 1, 32>}, {pipeline_mode = #tpu.pipeline_mode<synchronous>, transform_indices = @transform_2, window_bounds = array<i64: 1, 32>}, {transform_indices = @transform_3, window_bounds = array<i64: 32, 96>}, {transform_indices = @transform_4, window_bounds = array<i64: 1, 96>}, {transform_indices = @transform_5, window_bounds = array<i64: 16, 96>}]} {
    %c0 = arith.constant 0 : index
    %c0_0 = arith.constant 0 : index
    %0 = vector.load %arg2[%c0, %c0_0] : memref<16x32xf32, #tpu.memory_space<vmem>>, vector<16x32xf32>
    %cst = arith.constant dense<0.000000e+00> : vector<16xf32>
    %1 = vector.multi_reduction <add>, %0, %cst [1] : vector<16x32xf32> to vector<16xf32>
    %2 = vector.shape_cast %1 : vector<16xf32> to vector<16x1xf32>
    %cst_1 = arith.constant 3.200000e+01 : f32
    %3 = vector.broadcast %cst_1 : f32 to vector<16x1xf32>
    %4 = arith.divf %2, %3 : vector<16x1xf32>
    %5 = vector.broadcast %4 : vector<16x1xf32> to vector<16x32xf32>
    %6 = arith.subf %0, %5 : vector<16x32xf32>
    %7 = arith.mulf %6, %6 : vector<16x32xf32>
    %cst_2 = arith.constant dense<0.000000e+00> : vector<16xf32>
    %8 = vector.multi_reduction <add>, %7, %cst_2 [1] : vector<16x32xf32> to vector<16xf32>
    %9 = vector.shape_cast %8 : vector<16xf32> to vector<16x1xf32>
    %cst_3 = arith.constant 3.100000e+01 : f32
    %10 = vector.broadcast %cst_3 : f32 to vector<16x1xf32>
    %11 = arith.divf %9, %10 : vector<16x1xf32>
    %c0_4 = arith.constant 0 : index
    %c0_5 = arith.constant 0 : index
    %12 = vector.load %arg3[%c0_4, %c0_5] : memref<1x32xf32, #tpu.memory_space<vmem>>, vector<1x32xf32>
    %13 = vector.broadcast %12 : vector<1x32xf32> to vector<16x32xf32>
    %14 = arith.mulf %13, %6 : vector<16x32xf32>
    %15 = math.sqrt %11 : vector<16x1xf32>
    %cst_6 = arith.constant 9.99999997E-7 : f32
    %16 = vector.broadcast %cst_6 : f32 to vector<16x1xf32>
    %17 = arith.addf %15, %16 : vector<16x1xf32>
    %18 = vector.broadcast %17 : vector<16x1xf32> to vector<16x32xf32>
    %19 = arith.divf %14, %18 : vector<16x32xf32>
    %c0_7 = arith.constant 0 : index
    %c0_8 = arith.constant 0 : index
    %20 = vector.load %arg4[%c0_7, %c0_8] : memref<1x32xf32, #tpu.memory_space<vmem>>, vector<1x32xf32>
    %21 = vector.broadcast %20 : vector<1x32xf32> to vector<16x32xf32>
    %22 = arith.addf %19, %21 : vector<16x32xf32>
    %c0_9 = arith.constant 0 : index
    %c0_10 = arith.constant 0 : index
    %23 = vector.load %arg5[%c0_9, %c0_10] : memref<32x96xf32, #tpu.memory_space<vmem>>, vector<32x96xf32>
    %cst_11 = arith.constant dense<0.000000e+00> : vector<16x96xf32>
    %24 = tpu.matmul %22, %23, %cst_11 {dimension_numbers = #tpu.dot_dimension_numbers<[1], [0], [0], [1], [0, 0, 1, 1], [], []>} : vector<16x32xf32>, vector<32x96xf32>, vector<16x96xf32> -> vector<16x96xf32>
    %c0_12 = arith.constant 0 : index
    %c0_13 = arith.constant 0 : index
    %25 = vector.load %arg6[%c0_12, %c0_13] : memref<1x96xf32, #tpu.memory_space<vmem>>, vector<1x96xf32>
    %26 = vector.broadcast %25 : vector<1x96xf32> to vector<16x96xf32>
    %27 = arith.addf %24, %26 : vector<16x96xf32>
    %c0_14 = arith.constant 0 : index
    %c0_15 = arith.constant 0 : index
    %28 = vector.load %arg7[%c0_14, %c0_15] : memref<16x96xf32, #tpu.memory_space<vmem>>, vector<16x96xf32>
    tpu.vector_store %arg7[%c0_14, %c0_15], %27 {strides = array<i32>} : memref<16x96xf32, #tpu.memory_space<vmem>>, vector<16x96xf32>,
    return
  }
  func.func @transform_0(%arg0: i32, %arg1: i32) -> (i32, i32) {
    %c0_i32 = arith.constant 0 : i32
    %c0_i32_0 = arith.constant 0 : i32
    return %arg0, %c0_i32 : i32, i32
  }
  func.func @transform_1(%arg0: i32, %arg1: i32) -> (i32, i32) {
    %c0_i32 = arith.constant 0 : i32
    %c0_i32_0 = arith.constant 0 : i32
    %c0_i32_1 = arith.constant 0 : i32
    return %c0_i32, %c0_i32_0 : i32, i32
  }
  func.func @transform_2(%arg0: i32, %arg1: i32) -> (i32, i32) {
    %c0_i32 = arith.constant 0 : i32
    %c0_i32_0 = arith.constant 0 : i32
    %c0_i32_1 = arith.constant 0 : i32
    return %c0_i32, %c0_i32_0 : i32, i32
  }
  func.func @transform_3(%arg0: i32, %arg1: i32) -> (i32, i32) {
    %c0_i32 = arith.constant 0 : i32
    %c0_i32_0 = arith.constant 0 : i32
    return %c0_i32, %arg1 : i32, i32
  }
  func.func @transform_4(%arg0: i32, %arg1: i32) -> (i32, i32) {
    %c0_i32 = arith.constant 0 : i32
    %c0_i32_0 = arith.constant 0 : i32
    return %c0_i32, %arg1 : i32, i32
  }
  func.func @transform_5(%arg0: i32, %arg1: i32) -> (i32, i32) {
    %c0_i32 = arith.constant 0 : i32
    return %arg0, %arg1 : i32, i32
  }
}

module attributes {stable_mosaic.version = 11 : i64} {
  func.func @_linear_kernel(%arg0: i32, %arg1: i32, %arg2: i32, %arg3: memref<16x32xf32, #tpu.memory_space<vmem>>, %arg4: memref<32x32xf32, #tpu.memory_space<vmem>>, %arg5: memref<1x32xf32, #tpu.memory_space<vmem>>, %arg6: memref<16x32xf32, #tpu.memory_space<vmem>>, %arg7: memref<16x32xf32, #tpu.memory_space<vmem>>, %arg8: memref<16x32xf32, #tpu.memory_space<vmem>>) attributes {dimension_semantics = [#tpu.dimension_semantics<parallel>, #tpu.dimension_semantics<parallel>, #tpu.dimension_semantics<arbitrary>], iteration_bounds = array<i64: 1, 1, 1>, scalar_prefetch = 0 : i64, scratch_operands = 1 : i64, tpu.core_type = #tpu.core_type<tc>, window_params = [{transform_indices = @transform_0, window_bounds = array<i64: 16, 32>}, {transform_indices = @transform_1, window_bounds = array<i64: 32, 32>}, {transform_indices = @transform_2, window_bounds = array<i64: 1, 32>}, {transform_indices = @transform_3, window_bounds = array<i64: 16, 32>}, {transform_indices = @transform_4, window_bounds = array<i64: 16, 32>}]} {
    %c0_i32 = arith.constant 0 : i32
    %0 = arith.cmpi eq, %arg2, %c0_i32 : i32
    %1 = arith.extui %0 : i1 to i32
    %c0_i32_0 = arith.constant 0 : i32
    %2 = arith.cmpi ne, %1, %c0_i32_0 : i32
    scf.if %2 {
      %cst_10 = arith.constant 0.000000e+00 : f32
      %12 = vector.broadcast %cst_10 : f32 to vector<16x32xf32>
      %c0_11 = arith.constant 0 : index
      %c0_12 = arith.constant 0 : index
      %13 = vector.load %arg8[%c0_11, %c0_12] : memref<16x32xf32, #tpu.memory_space<vmem>>, vector<16x32xf32>
      tpu.vector_store %arg8[%c0_11, %c0_12], %12 {strides = array<i32>} : memref<16x32xf32, #tpu.memory_space<vmem>>, vector<16x32xf32>,
    } else {
    }
    %c0 = arith.constant 0 : index
    %c0_1 = arith.constant 0 : index
    %3 = vector.load %arg8[%c0, %c0_1] : memref<16x32xf32, #tpu.memory_space<vmem>>, vector<16x32xf32>
    %c0_2 = arith.constant 0 : index
    %c0_3 = arith.constant 0 : index
    %4 = vector.load %arg3[%c0_2, %c0_3] : memref<16x32xf32, #tpu.memory_space<vmem>>, vector<16x32xf32>
    %c0_4 = arith.constant 0 : index
    %c0_5 = arith.constant 0 : index
    %5 = vector.load %arg4[%c0_4, %c0_5] : memref<32x32xf32, #tpu.memory_space<vmem>>, vector<32x32xf32>
    %cst = arith.constant dense<0.000000e+00> : vector<16x32xf32>
    %6 = tpu.matmul %4, %5, %cst {dimension_numbers = #tpu.dot_dimension_numbers<[1], [0], [0], [1], [0, 0, 1, 1], [], []>} : vector<16x32xf32>, vector<32x32xf32>, vector<16x32xf32> -> vector<16x32xf32>
    %7 = arith.addf %3, %6 : vector<16x32xf32>
    %c0_6 = arith.constant 0 : index
    %c0_7 = arith.constant 0 : index
    %8 = vector.load %arg8[%c0_6, %c0_7] : memref<16x32xf32, #tpu.memory_space<vmem>>, vector<16x32xf32>
    tpu.vector_store %arg8[%c0_6, %c0_7], %7 {strides = array<i32>} : memref<16x32xf32, #tpu.memory_space<vmem>>, vector<16x32xf32>,
    %c0_i32_8 = arith.constant 0 : i32
    %9 = arith.cmpi eq, %arg2, %c0_i32_8 : i32
    %10 = arith.extui %9 : i1 to i32
    %c0_i32_9 = arith.constant 0 : i32
    %11 = arith.cmpi ne, %10, %c0_i32_9 : i32
    scf.if %11 {
      %c0_10 = arith.constant 0 : index
      %c0_11 = arith.constant 0 : index
      %12 = vector.load %arg8[%c0_10, %c0_11] : memref<16x32xf32, #tpu.memory_space<vmem>>, vector<16x32xf32>
      %c0_12 = arith.constant 0 : index
      %c0_13 = arith.constant 0 : index
      %13 = vector.load %arg5[%c0_12, %c0_13] : memref<1x32xf32, #tpu.memory_space<vmem>>, vector<1x32xf32>
      %14 = vector.broadcast %13 : vector<1x32xf32> to vector<16x32xf32>
      %15 = arith.addf %12, %14 : vector<16x32xf32>
      %c0_14 = arith.constant 0 : index
      %c0_15 = arith.constant 0 : index
      %16 = vector.load %arg6[%c0_14, %c0_15] : memref<16x32xf32, #tpu.memory_space<vmem>>, vector<16x32xf32>
      %17 = arith.addf %15, %16 : vector<16x32xf32>
      %c0_16 = arith.constant 0 : index
      %c0_17 = arith.constant 0 : index
      %18 = vector.load %arg7[%c0_16, %c0_17] : memref<16x32xf32, #tpu.memory_space<vmem>>, vector<16x32xf32>
      tpu.vector_store %arg7[%c0_16, %c0_17], %17 {strides = array<i32>} : memref<16x32xf32, #tpu.memory_space<vmem>>, vector<16x32xf32>,
    } else {
    }
    return
  }
  func.func @transform_0(%arg0: i32, %arg1: i32, %arg2: i32) -> (i32, i32) {
    %c0_i32 = arith.constant 0 : i32
    return %arg0, %arg2 : i32, i32
  }
  func.func @transform_1(%arg0: i32, %arg1: i32, %arg2: i32) -> (i32, i32) {
    %c0_i32 = arith.constant 0 : i32
    return %arg2, %arg1 : i32, i32
  }
  func.func @transform_2(%arg0: i32, %arg1: i32, %arg2: i32) -> (i32, i32) {
    %c0_i32 = arith.constant 0 : i32
    %c0_i32_0 = arith.constant 0 : i32
    return %c0_i32, %arg1 : i32, i32
  }
  func.func @transform_3(%arg0: i32, %arg1: i32, %arg2: i32) -> (i32, i32) {
    %c0_i32 = arith.constant 0 : i32
    return %arg0, %arg1 : i32, i32
  }
  func.func @transform_4(%arg0: i32, %arg1: i32, %arg2: i32) -> (i32, i32) {
    %c0_i32 = arith.constant 0 : i32
    return %arg0, %arg1 : i32, i32
  }
}

module attributes {stable_mosaic.version = 11 : i64} {
  func.func @_ln_linear_kernel(%arg0: i32, %arg1: i32, %arg2: memref<16x32xf32, #tpu.memory_space<vmem>>, %arg3: memref<1x32xf32, #tpu.memory_space<vmem>>, %arg4: memref<1x32xf32, #tpu.memory_space<vmem>>, %arg5: memref<32x64xf32, #tpu.memory_space<vmem>>, %arg6: memref<1x64xf32, #tpu.memory_space<vmem>>, %arg7: memref<16x64xf32, #tpu.memory_space<vmem>>) attributes {dimension_semantics = [#tpu.dimension_semantics<parallel>, #tpu.dimension_semantics<parallel>], iteration_bounds = array<i64: 1, 1>, scalar_prefetch = 0 : i64, scratch_operands = 0 : i64, tpu.core_type = #tpu.core_type<tc>, window_params = [{transform_indices = @transform_0, window_bounds = array<i64: 16, 32>}, {pipeline_mode = #tpu.pipeline_mode<synchronous>, transform_indices = @transform_1, window_bounds = array<i64: 1, 32>}, {pipeline_mode = #tpu.pipeline_mode<synchronous>, transform_indices = @transform_2, window_bounds = array<i64: 1, 32>}, {transform_indices = @transform_3, window_bounds = array<i64: 32, 64>}, {transform_indices = @transform_4, window_bounds = array<i64: 1, 64>}, {transform_indices = @transform_5, window_bounds = array<i64: 16, 64>}]} {
    %c0 = arith.constant 0 : index
    %c0_0 = arith.constant 0 : index
    %0 = vector.load %arg2[%c0, %c0_0] : memref<16x32xf32, #tpu.memory_space<vmem>>, vector<16x32xf32>
    %cst = arith.constant dense<0.000000e+00> : vector<16xf32>
    %1 = vector.multi_reduction <add>, %0, %cst [1] : vector<16x32xf32> to vector<16xf32>
    %2 = vector.shape_cast %1 : vector<16xf32> to vector<16x1xf32>
    %cst_1 = arith.constant 3.200000e+01 : f32
    %3 = vector.broadcast %cst_1 : f32 to vector<16x1xf32>
    %4 = arith.divf %2, %3 : vector<16x1xf32>
    %5 = vector.broadcast %4 : vector<16x1xf32> to vector<16x32xf32>
    %6 = arith.subf %0, %5 : vector<16x32xf32>
    %7 = arith.mulf %6, %6 : vector<16x32xf32>
    %cst_2 = arith.constant dense<0.000000e+00> : vector<16xf32>
    %8 = vector.multi_reduction <add>, %7, %cst_2 [1] : vector<16x32xf32> to vector<16xf32>
    %9 = vector.shape_cast %8 : vector<16xf32> to vector<16x1xf32>
    %cst_3 = arith.constant 3.100000e+01 : f32
    %10 = vector.broadcast %cst_3 : f32 to vector<16x1xf32>
    %11 = arith.divf %9, %10 : vector<16x1xf32>
    %c0_4 = arith.constant 0 : index
    %c0_5 = arith.constant 0 : index
    %12 = vector.load %arg3[%c0_4, %c0_5] : memref<1x32xf32, #tpu.memory_space<vmem>>, vector<1x32xf32>
    %13 = vector.broadcast %12 : vector<1x32xf32> to vector<16x32xf32>
    %14 = arith.mulf %13, %6 : vector<16x32xf32>
    %15 = math.sqrt %11 : vector<16x1xf32>
    %cst_6 = arith.constant 9.99999997E-7 : f32
    %16 = vector.broadcast %cst_6 : f32 to vector<16x1xf32>
    %17 = arith.addf %15, %16 : vector<16x1xf32>
    %18 = vector.broadcast %17 : vector<16x1xf32> to vector<16x32xf32>
    %19 = arith.divf %14, %18 : vector<16x32xf32>
    %c0_7 = arith.constant 0 : index
    %c0_8 = arith.constant 0 : index
    %20 = vector.load %arg4[%c0_7, %c0_8] : memref<1x32xf32, #tpu.memory_space<vmem>>, vector<1x32xf32>
    %21 = vector.broadcast %20 : vector<1x32xf32> to vector<16x32xf32>
    %22 = arith.addf %19, %21 : vector<16x32xf32>
    %c0_9 = arith.constant 0 : index
    %c0_10 = arith.constant 0 : index
    %23 = vector.load %arg5[%c0_9, %c0_10] : memref<32x64xf32, #tpu.memory_space<vmem>>, vector<32x64xf32>
    %cst_11 = arith.constant dense<0.000000e+00> : vector<16x64xf32>
    %24 = tpu.matmul %22, %23, %cst_11 {dimension_numbers = #tpu.dot_dimension_numbers<[1], [0], [0], [1], [0, 0, 1, 1], [], []>} : vector<16x32xf32>, vector<32x64xf32>, vector<16x64xf32> -> vector<16x64xf32>
    %c0_12 = arith.constant 0 : index
    %c0_13 = arith.constant 0 : index
    %25 = vector.load %arg6[%c0_12, %c0_13] : memref<1x64xf32, #tpu.memory_space<vmem>>, vector<1x64xf32>
    %26 = vector.broadcast %25 : vector<1x64xf32> to vector<16x64xf32>
    %27 = arith.addf %24, %26 : vector<16x64xf32>
    %cst_14 = arith.constant 0.000000e+00 : f32
    %28 = vector.broadcast %cst_14 : f32 to vector<16x64xf32>
    %29 = arith.maximumf %27, %28 : vector<16x64xf32>
    %c0_15 = arith.constant 0 : index
    %c0_16 = arith.constant 0 : index
    %30 = vector.load %arg7[%c0_15, %c0_16] : memref<16x64xf32, #tpu.memory_space<vmem>>, vector<16x64xf32>
    tpu.vector_store %arg7[%c0_15, %c0_16], %29 {strides = array<i32>} : memref<16x64xf32, #tpu.memory_space<vmem>>, vector<16x64xf32>,
    return
  }
  func.func @transform_0(%arg0: i32, %arg1: i32) -> (i32, i32) {
    %c0_i32 = arith.constant 0 : i32
    %c0_i32_0 = arith.constant 0 : i32
    return %arg0, %c0_i32 : i32, i32
  }
  func.func @transform_1(%arg0: i32, %arg1: i32) -> (i32, i32) {
    %c0_i32 = arith.constant 0 : i32
    %c0_i32_0 = arith.constant 0 : i32
    %c0_i32_1 = arith.constant 0 : i32
    return %c0_i32, %c0_i32_0 : i32, i32
  }
  func.func @transform_2(%arg0: i32, %arg1: i32) -> (i32, i32) {
    %c0_i32 = arith.constant 0 : i32
    %c0_i32_0 = arith.constant 0 : i32
    %c0_i32_1 = arith.constant 0 : i32
    return %c0_i32, %c0_i32_0 : i32, i32
  }
  func.func @transform_3(%arg0: i32, %arg1: i32) -> (i32, i32) {
    %c0_i32 = arith.constant 0 : i32
    %c0_i32_0 = arith.constant 0 : i32
    return %c0_i32, %arg1 : i32, i32
  }
  func.func @transform_4(%arg0: i32, %arg1: i32) -> (i32, i32) {
    %c0_i32 = arith.constant 0 : i32
    %c0_i32_0 = arith.constant 0 : i32
    return %c0_i32, %arg1 : i32, i32
  }
  func.func @transform_5(%arg0: i32, %arg1: i32) -> (i32, i32) {
    %c0_i32 = arith.constant 0 : i32
    return %arg0, %arg1 : i32, i32
  }
}

module attributes {stable_mosaic.version = 11 : i64} {
  func.func @_linear_kernel(%arg0: i32, %arg1: i32, %arg2: i32, %arg3: memref<16x64xf32, #tpu.memory_space<vmem>>, %arg4: memref<64x32xf32, #tpu.memory_space<vmem>>, %arg5: memref<1x32xf32, #tpu.memory_space<vmem>>, %arg6: memref<16x32xf32, #tpu.memory_space<vmem>>, %arg7: memref<16x32xf32, #tpu.memory_space<vmem>>, %arg8: memref<16x32xf32, #tpu.memory_space<vmem>>) attributes {dimension_semantics = [#tpu.dimension_semantics<parallel>, #tpu.dimension_semantics<parallel>, #tpu.dimension_semantics<arbitrary>], iteration_bounds = array<i64: 1, 1, 1>, scalar_prefetch = 0 : i64, scratch_operands = 1 : i64, tpu.core_type = #tpu.core_type<tc>, window_params = [{transform_indices = @transform_0, window_bounds = array<i64: 16, 64>}, {transform_indices = @transform_1, window_bounds = array<i64: 64, 32>}, {transform_indices = @transform_2, window_bounds = array<i64: 1, 32>}, {transform_indices = @transform_3, window_bounds = array<i64: 16, 32>}, {transform_indices = @transform_4, window_bounds = array<i64: 16, 32>}]} {
    %c0_i32 = arith.constant 0 : i32
    %0 = arith.cmpi eq, %arg2, %c0_i32 : i32
    %1 = arith.extui %0 : i1 to i32
    %c0_i32_0 = arith.constant 0 : i32
    %2 = arith.cmpi ne, %1, %c0_i32_0 : i32
    scf.if %2 {
      %cst_10 = arith.constant 0.000000e+00 : f32
      %12 = vector.broadcast %cst_10 : f32 to vector<16x32xf32>
      %c0_11 = arith.constant 0 : index
      %c0_12 = arith.constant 0 : index
      %13 = vector.load %arg8[%c0_11, %c0_12] : memref<16x32xf32, #tpu.memory_space<vmem>>, vector<16x32xf32>
      tpu.vector_store %arg8[%c0_11, %c0_12], %12 {strides = array<i32>} : memref<16x32xf32, #tpu.memory_space<vmem>>, vector<16x32xf32>,
    } else {
    }
    %c0 = arith.constant 0 : index
    %c0_1 = arith.constant 0 : index
    %3 = vector.load %arg8[%c0, %c0_1] : memref<16x32xf32, #tpu.memory_space<vmem>>, vector<16x32xf32>
    %c0_2 = arith.constant 0 : index
    %c0_3 = arith.constant 0 : index
    %4 = vector.load %arg3[%c0_2, %c0_3] : memref<16x64xf32, #tpu.memory_space<vmem>>, vector<16x64xf32>
    %c0_4 = arith.constant 0 : index
    %c0_5 = arith.constant 0 : index
    %5 = vector.load %arg4[%c0_4, %c0_5] : memref<64x32xf32, #tpu.memory_space<vmem>>, vector<64x32xf32>
    %cst = arith.constant dense<0.000000e+00> : vector<16x32xf32>
    %6 = tpu.matmul %4, %5, %cst {dimension_numbers = #tpu.dot_dimension_numbers<[1], [0], [0], [1], [0, 0, 1, 1], [], []>} : vector<16x64xf32>, vector<64x32xf32>, vector<16x32xf32> -> vector<16x32xf32>
    %7 = arith.addf %3, %6 : vector<16x32xf32>
    %c0_6 = arith.constant 0 : index
    %c0_7 = arith.constant 0 : index
    %8 = vector.load %arg8[%c0_6, %c0_7] : memref<16x32xf32, #tpu.memory_space<vmem>>, vector<16x32xf32>
    tpu.vector_store %arg8[%c0_6, %c0_7], %7 {strides = array<i32>} : memref<16x32xf32, #tpu.memory_space<vmem>>, vector<16x32xf32>,
    %c0_i32_8 = arith.constant 0 : i32
    %9 = arith.cmpi eq, %arg2, %c0_i32_8 : i32
    %10 = arith.extui %9 : i1 to i32
    %c0_i32_9 = arith.constant 0 : i32
    %11 = arith.cmpi ne, %10, %c0_i32_9 : i32
    scf.if %11 {
      %c0_10 = arith.constant 0 : index
      %c0_11 = arith.constant 0 : index
      %12 = vector.load %arg8[%c0_10, %c0_11] : memref<16x32xf32, #tpu.memory_space<vmem>>, vector<16x32xf32>
      %c0_12 = arith.constant 0 : index
      %c0_13 = arith.constant 0 : index
      %13 = vector.load %arg5[%c0_12, %c0_13] : memref<1x32xf32, #tpu.memory_space<vmem>>, vector<1x32xf32>
      %14 = vector.broadcast %13 : vector<1x32xf32> to vector<16x32xf32>
      %15 = arith.addf %12, %14 : vector<16x32xf32>
      %c0_14 = arith.constant 0 : index
      %c0_15 = arith.constant 0 : index
      %16 = vector.load %arg6[%c0_14, %c0_15] : memref<16x32xf32, #tpu.memory_space<vmem>>, vector<16x32xf32>
      %17 = arith.addf %15, %16 : vector<16x32xf32>
      %c0_16 = arith.constant 0 : index
      %c0_17 = arith.constant 0 : index
      %18 = vector.load %arg7[%c0_16, %c0_17] : memref<16x32xf32, #tpu.memory_space<vmem>>, vector<16x32xf32>
      tpu.vector_store %arg7[%c0_16, %c0_17], %17 {strides = array<i32>} : memref<16x32xf32, #tpu.memory_space<vmem>>, vector<16x32xf32>,
    } else {
    }
    return
  }
  func.func @transform_0(%arg0: i32, %arg1: i32, %arg2: i32) -> (i32, i32) {
    %c0_i32 = arith.constant 0 : i32
    return %arg0, %arg2 : i32, i32
  }
  func.func @transform_1(%arg0: i32, %arg1: i32, %arg2: i32) -> (i32, i32) {
    %c0_i32 = arith.constant 0 : i32
    return %arg2, %arg1 : i32, i32
  }
  func.func @transform_2(%arg0: i32, %arg1: i32, %arg2: i32) -> (i32, i32) {
    %c0_i32 = arith.constant 0 : i32
    %c0_i32_0 = arith.constant 0 : i32
    return %c0_i32, %arg1 : i32, i32
  }
  func.func @transform_3(%arg0: i32, %arg1: i32, %arg2: i32) -> (i32, i32) {
    %c0_i32 = arith.constant 0 : i32
    return %arg0, %arg1 : i32, i32
  }
  func.func @transform_4(%arg0: i32, %arg1: i32, %arg2: i32) -> (i32, i32) {
    %c0_i32 = arith.constant 0 : i32
    return %arg0, %arg1 : i32, i32
  }
}

module attributes {stable_mosaic.version = 11 : i64} {
  func.func @_layernorm_kernel(%arg0: i32, %arg1: memref<16x32xf32, #tpu.memory_space<vmem>>, %arg2: memref<1x32xf32, #tpu.memory_space<vmem>>, %arg3: memref<1x32xf32, #tpu.memory_space<vmem>>, %arg4: memref<16x32xf32, #tpu.memory_space<vmem>>) attributes {dimension_semantics = [#tpu.dimension_semantics<parallel>], iteration_bounds = array<i64: 1>, scalar_prefetch = 0 : i64, scratch_operands = 0 : i64, tpu.core_type = #tpu.core_type<tc>, window_params = [{transform_indices = @transform_0, window_bounds = array<i64: 16, 32>}, {pipeline_mode = #tpu.pipeline_mode<synchronous>, transform_indices = @transform_1, window_bounds = array<i64: 1, 32>}, {pipeline_mode = #tpu.pipeline_mode<synchronous>, transform_indices = @transform_2, window_bounds = array<i64: 1, 32>}, {transform_indices = @transform_3, window_bounds = array<i64: 16, 32>}]} {
    %c0 = arith.constant 0 : index
    %c0_0 = arith.constant 0 : index
    %0 = vector.load %arg1[%c0, %c0_0] : memref<16x32xf32, #tpu.memory_space<vmem>>, vector<16x32xf32>
    %cst = arith.constant dense<0.000000e+00> : vector<16xf32>
    %1 = vector.multi_reduction <add>, %0, %cst [1] : vector<16x32xf32> to vector<16xf32>
    %2 = vector.shape_cast %1 : vector<16xf32> to vector<16x1xf32>
    %cst_1 = arith.constant 3.200000e+01 : f32
    %3 = vector.broadcast %cst_1 : f32 to vector<16x1xf32>
    %4 = arith.divf %2, %3 : vector<16x1xf32>
    %5 = vector.broadcast %4 : vector<16x1xf32> to vector<16x32xf32>
    %6 = arith.subf %0, %5 : vector<16x32xf32>
    %7 = arith.mulf %6, %6 : vector<16x32xf32>
    %cst_2 = arith.constant dense<0.000000e+00> : vector<16xf32>
    %8 = vector.multi_reduction <add>, %7, %cst_2 [1] : vector<16x32xf32> to vector<16xf32>
    %9 = vector.shape_cast %8 : vector<16xf32> to vector<16x1xf32>
    %cst_3 = arith.constant 3.100000e+01 : f32
    %10 = vector.broadcast %cst_3 : f32 to vector<16x1xf32>
    %11 = arith.divf %9, %10 : vector<16x1xf32>
    %c0_4 = arith.constant 0 : index
    %c0_5 = arith.constant 0 : index
    %12 = vector.load %arg2[%c0_4, %c0_5] : memref<1x32xf32, #tpu.memory_space<vmem>>, vector<1x32xf32>
    %13 = vector.broadcast %12 : vector<1x32xf32> to vector<16x32xf32>
    %14 = arith.mulf %13, %6 : vector<16x32xf32>
    %15 = math.sqrt %11 : vector<16x1xf32>
    %cst_6 = arith.constant 9.99999997E-7 : f32
    %16 = vector.broadcast %cst_6 : f32 to vector<16x1xf32>
    %17 = arith.addf %15, %16 : vector<16x1xf32>
    %18 = vector.broadcast %17 : vector<16x1xf32> to vector<16x32xf32>
    %19 = arith.divf %14, %18 : vector<16x32xf32>
    %c0_7 = arith.constant 0 : index
    %c0_8 = arith.constant 0 : index
    %20 = vector.load %arg3[%c0_7, %c0_8] : memref<1x32xf32, #tpu.memory_space<vmem>>, vector<1x32xf32>
    %21 = vector.broadcast %20 : vector<1x32xf32> to vector<16x32xf32>
    %22 = arith.addf %19, %21 : vector<16x32xf32>
    %c0_9 = arith.constant 0 : index
    %c0_10 = arith.constant 0 : index
    %23 = vector.load %arg4[%c0_9, %c0_10] : memref<16x32xf32, #tpu.memory_space<vmem>>, vector<16x32xf32>
    tpu.vector_store %arg4[%c0_9, %c0_10], %22 {strides = array<i32>} : memref<16x32xf32, #tpu.memory_space<vmem>>, vector<16x32xf32>,
    return
  }
  func.func @transform_0(%arg0: i32) -> (i32, i32) {
    %c0_i32 = arith.constant 0 : i32
    %c0_i32_0 = arith.constant 0 : i32
    return %arg0, %c0_i32 : i32, i32
  }
  func.func @transform_1(%arg0: i32) -> (i32, i32) {
    %c0_i32 = arith.constant 0 : i32
    %c0_i32_0 = arith.constant 0 : i32
    %c0_i32_1 = arith.constant 0 : i32
    return %c0_i32, %c0_i32_0 : i32, i32
  }
  func.func @transform_2(%arg0: i32) -> (i32, i32) {
    %c0_i32 = arith.constant 0 : i32
    %c0_i32_0 = arith.constant 0 : i32
    %c0_i32_1 = arith.constant 0 : i32
    return %c0_i32, %c0_i32_0 : i32, i32
  }
  func.func @transform_3(%arg0: i32) -> (i32, i32) {
    %c0_i32 = arith.constant 0 : i32
    %c0_i32_0 = arith.constant 0 : i32
    return %arg0, %c0_i32 : i32, i32
  }
}

module attributes {stable_mosaic.version = 11 : i64} {
  func.func @_self_attn_kernel(%arg0: i32, %arg1: memref<1x8x96xf32, #tpu.memory_space<vmem>>, %arg2: memref<1x8x8xi32, #tpu.memory_space<vmem>>, %arg3: memref<1x8x32xf32, #tpu.memory_space<vmem>>) attributes {dimension_semantics = [#tpu.dimension_semantics<parallel>], iteration_bounds = array<i64: 2>, scalar_prefetch = 0 : i64, scratch_operands = 0 : i64, tpu.core_type = #tpu.core_type<tc>, window_params = [{transform_indices = @transform_0, window_bounds = array<i64: 1, 8, 96>}, {transform_indices = @transform_1, window_bounds = array<i64: 1, 8, 8>}, {transform_indices = @transform_2, window_bounds = array<i64: 1, 8, 32>}]} {
    %c0 = arith.constant 0 : index
    %c0_0 = arith.constant 0 : index
    %c0_1 = arith.constant 0 : index
    %0 = vector.load %arg1[%c0, %c0_0, %c0_1] : memref<1x8x96xf32, #tpu.memory_space<vmem>>, vector<1x8x96xf32>
    %1 = vector.shape_cast %0 : vector<1x8x96xf32> to vector<8x96xf32>
    %2 = vector.extract_strided_slice %1 {offsets = [0, 0], sizes = [8, 32], strides = [1, 1]} : vector<8x96xf32> to vector<8x32xf32>
    %3 = vector.extract_strided_slice %1 {offsets = [0, 32], sizes = [8, 32], strides = [1, 1]} : vector<8x96xf32> to vector<8x32xf32>
    %4 = vector.extract_strided_slice %1 {offsets = [0, 64], sizes = [8, 32], strides = [1, 1]} : vector<8x96xf32> to vector<8x32xf32>
    %c0_2 = arith.constant 0 : index
    %c0_3 = arith.constant 0 : index
    %c0_4 = arith.constant 0 : index
    %5 = vector.load %arg2[%c0_2, %c0_3, %c0_4] : memref<1x8x8xi32, #tpu.memory_space<vmem>>, vector<1x8x8xi32>
    %6 = vector.shape_cast %5 : vector<1x8x8xi32> to vector<8x8xi32>
    %7 = vector.extract_strided_slice %2 {offsets = [0, 0], sizes = [8, 8], strides = [1, 1]} : vector<8x32xf32> to vector<8x8xf32>
    %cst = arith.constant 0.353553385 : f32
    %8 = vector.broadcast %cst : f32 to vector<8x8xf32>
    %9 = arith.mulf %7, %8 : vector<8x8xf32>
    %10 = vector.extract_strided_slice %3 {offsets = [0, 0], sizes = [8, 8], strides = [1, 1]} : vector<8x32xf32> to vector<8x8xf32>
    %11 = vector.extract_strided_slice %4 {offsets = [0, 0], sizes = [8, 8], strides = [1, 1]} : vector<8x32xf32> to vector<8x8xf32>
    %cst_5 = arith.constant dense<0.000000e+00> : vector<8x8xf32>
    %12 = tpu.matmul %9, %10, %cst_5 {dimension_numbers = #tpu.dot_dimension_numbers<[1], [1], [0], [0], [0, 0, 1, 0], [], []>} : vector<8x8xf32>, vector<8x8xf32>, vector<8x8xf32> -> vector<8x8xf32>
    %c0_i32 = arith.constant 0 : i32
    %13 = vector.broadcast %c0_i32 : i32 to vector<8x8xi32>
    %14 = arith.cmpi eq, %6, %13 : vector<8x8xi32>
    %cst_6 = arith.constant -1.000000e+09 : f32
    %15 = vector.broadcast %cst_6 : f32 to vector<8x8xf32>
    %16 = arith.select %14, %15, %12 : vector<8x8xi1>, vector<8x8xf32>
    %cst_7 = arith.constant dense<0xFF800000> : vector<8xf32>
    %17 = vector.multi_reduction <maximumf>, %16, %cst_7 [1] : vector<8x8xf32> to vector<8xf32>
    %18 = vector.shape_cast %17 : vector<8xf32> to vector<8x1xf32>
    %19 = vector.broadcast %18 : vector<8x1xf32> to vector<8x8xf32>
    %20 = arith.subf %16, %19 : vector<8x8xf32>
    %21 = math.exp %20 : vector<8x8xf32>
    %cst_8 = arith.constant dense<0.000000e+00> : vector<8xf32>
    %22 = vector.multi_reduction <add>, %21, %cst_8 [1] : vector<8x8xf32> to vector<8xf32>
    %23 = vector.shape_cast %22 : vector<8xf32> to vector<8x1xf32>
    %24 = tpu.reciprocal %23 {approx = true} : vector<8x1xf32> -> vector<8x1xf32>
    %25 = vector.broadcast %24 : vector<8x1xf32> to vector<8x8xf32>
    %26 = arith.mulf %21, %25 : vector<8x8xf32>
    %cst_9 = arith.constant dense<0.000000e+00> : vector<8x8xf32>
    %27 = tpu.matmul %26, %11, %cst_9 {dimension_numbers = #tpu.dot_dimension_numbers<[1], [0], [0], [1], [0, 0, 1, 1], [], []>} : vector<8x8xf32>, vector<8x8xf32>, vector<8x8xf32> -> vector<8x8xf32>
    %28 = vector.extract_strided_slice %2 {offsets = [0, 8], sizes = [8, 8], strides = [1, 1]} : vector<8x32xf32> to vector<8x8xf32>
    %cst_10 = arith.constant 0.353553385 : f32
    %29 = vector.broadcast %cst_10 : f32 to vector<8x8xf32>
    %30 = arith.mulf %28, %29 : vector<8x8xf32>
    %31 = vector.extract_strided_slice %3 {offsets = [0, 8], sizes = [8, 8], strides = [1, 1]} : vector<8x32xf32> to vector<8x8xf32>
    %32 = vector.extract_strided_slice %4 {offsets = [0, 8], sizes = [8, 8], strides = [1, 1]} : vector<8x32xf32> to vector<8x8xf32>
    %cst_11 = arith.constant dense<0.000000e+00> : vector<8x8xf32>
    %33 = tpu.matmul %30, %31, %cst_11 {dimension_numbers = #tpu.dot_dimension_numbers<[1], [1], [0], [0], [0, 0, 1, 0], [], []>} : vector<8x8xf32>, vector<8x8xf32>, vector<8x8xf32> -> vector<8x8xf32>
    %c0_i32_12 = arith.constant 0 : i32
    %34 = vector.broadcast %c0_i32_12 : i32 to vector<8x8xi32>
    %35 = arith.cmpi eq, %6, %34 : vector<8x8xi32>
    %cst_13 = arith.constant -1.000000e+09 : f32
    %36 = vector.broadcast %cst_13 : f32 to vector<8x8xf32>
    %37 = arith.select %35, %36, %33 : vector<8x8xi1>, vector<8x8xf32>
    %cst_14 = arith.constant dense<0xFF800000> : vector<8xf32>
    %38 = vector.multi_reduction <maximumf>, %37, %cst_14 [1] : vector<8x8xf32> to vector<8xf32>
    %39 = vector.shape_cast %38 : vector<8xf32> to vector<8x1xf32>
    %40 = vector.broadcast %39 : vector<8x1xf32> to vector<8x8xf32>
    %41 = arith.subf %37, %40 : vector<8x8xf32>
    %42 = math.exp %41 : vector<8x8xf32>
    %cst_15 = arith.constant dense<0.000000e+00> : vector<8xf32>
    %43 = vector.multi_reduction <add>, %42, %cst_15 [1] : vector<8x8xf32> to vector<8xf32>
    %44 = vector.shape_cast %43 : vector<8xf32> to vector<8x1xf32>
    %45 = tpu.reciprocal %44 {approx = true} : vector<8x1xf32> -> vector<8x1xf32>
    %46 = vector.broadcast %45 : vector<8x1xf32> to vector<8x8xf32>
    %47 = arith.mulf %42, %46 : vector<8x8xf32>
    %cst_16 = arith.constant dense<0.000000e+00> : vector<8x8xf32>
    %48 = tpu.matmul %47, %32, %cst_16 {dimension_numbers = #tpu.dot_dimension_numbers<[1], [0], [0], [1], [0, 0, 1, 1], [], []>} : vector<8x8xf32>, vector<8x8xf32>, vector<8x8xf32> -> vector<8x8xf32>
    %49 = vector.extract_strided_slice %2 {offsets = [0, 16], sizes = [8, 8], strides = [1, 1]} : vector<8x32xf32> to vector<8x8xf32>
    %cst_17 = arith.constant 0.353553385 : f32
    %50 = vector.broadcast %cst_17 : f32 to vector<8x8xf32>
    %51 = arith.mulf %49, %50 : vector<8x8xf32>
    %52 = vector.extract_strided_slice %3 {offsets = [0, 16], sizes = [8, 8], strides = [1, 1]} : vector<8x32xf32> to vector<8x8xf32>
    %53 = vector.extract_strided_slice %4 {offsets = [0, 16], sizes = [8, 8], strides = [1, 1]} : vector<8x32xf32> to vector<8x8xf32>
    %cst_18 = arith.constant dense<0.000000e+00> : vector<8x8xf32>
    %54 = tpu.matmul %51, %52, %cst_18 {dimension_numbers = #tpu.dot_dimension_numbers<[1], [1], [0], [0], [0, 0, 1, 0], [], []>} : vector<8x8xf32>, vector<8x8xf32>, vector<8x8xf32> -> vector<8x8xf32>
    %c0_i32_19 = arith.constant 0 : i32
    %55 = vector.broadcast %c0_i32_19 : i32 to vector<8x8xi32>
    %56 = arith.cmpi eq, %6, %55 : vector<8x8xi32>
    %cst_20 = arith.constant -1.000000e+09 : f32
    %57 = vector.broadcast %cst_20 : f32 to vector<8x8xf32>
    %58 = arith.select %56, %57, %54 : vector<8x8xi1>, vector<8x8xf32>
    %cst_21 = arith.constant dense<0xFF800000> : vector<8xf32>
    %59 = vector.multi_reduction <maximumf>, %58, %cst_21 [1] : vector<8x8xf32> to vector<8xf32>
    %60 = vector.shape_cast %59 : vector<8xf32> to vector<8x1xf32>
    %61 = vector.broadcast %60 : vector<8x1xf32> to vector<8x8xf32>
    %62 = arith.subf %58, %61 : vector<8x8xf32>
    %63 = math.exp %62 : vector<8x8xf32>
    %cst_22 = arith.constant dense<0.000000e+00> : vector<8xf32>
    %64 = vector.multi_reduction <add>, %63, %cst_22 [1] : vector<8x8xf32> to vector<8xf32>
    %65 = vector.shape_cast %64 : vector<8xf32> to vector<8x1xf32>
    %66 = tpu.reciprocal %65 {approx = true} : vector<8x1xf32> -> vector<8x1xf32>
    %67 = vector.broadcast %66 : vector<8x1xf32> to vector<8x8xf32>
    %68 = arith.mulf %63, %67 : vector<8x8xf32>
    %cst_23 = arith.constant dense<0.000000e+00> : vector<8x8xf32>
    %69 = tpu.matmul %68, %53, %cst_23 {dimension_numbers = #tpu.dot_dimension_numbers<[1], [0], [0], [1], [0, 0, 1, 1], [], []>} : vector<8x8xf32>, vector<8x8xf32>, vector<8x8xf32> -> vector<8x8xf32>
    %70 = vector.extract_strided_slice %2 {offsets = [0, 24], sizes = [8, 8], strides = [1, 1]} : vector<8x32xf32> to vector<8x8xf32>
    %cst_24 = arith.constant 0.353553385 : f32
    %71 = vector.broadcast %cst_24 : f32 to vector<8x8xf32>
    %72 = arith.mulf %70, %71 : vector<8x8xf32>
    %73 = vector.extract_strided_slice %3 {offsets = [0, 24], sizes = [8, 8], strides = [1, 1]} : vector<8x32xf32> to vector<8x8xf32>
    %74 = vector.extract_strided_slice %4 {offsets = [0, 24], sizes = [8, 8], strides = [1, 1]} : vector<8x32xf32> to vector<8x8xf32>
    %cst_25 = arith.constant dense<0.000000e+00> : vector<8x8xf32>
    %75 = tpu.matmul %72, %73, %cst_25 {dimension_numbers = #tpu.dot_dimension_numbers<[1], [1], [0], [0], [0, 0, 1, 0], [], []>} : vector<8x8xf32>, vector<8x8xf32>, vector<8x8xf32> -> vector<8x8xf32>
    %c0_i32_26 = arith.constant 0 : i32
    %76 = vector.broadcast %c0_i32_26 : i32 to vector<8x8xi32>
    %77 = arith.cmpi eq, %6, %76 : vector<8x8xi32>
    %cst_27 = arith.constant -1.000000e+09 : f32
    %78 = vector.broadcast %cst_27 : f32 to vector<8x8xf32>
    %79 = arith.select %77, %78, %75 : vector<8x8xi1>, vector<8x8xf32>
    %cst_28 = arith.constant dense<0xFF800000> : vector<8xf32>
    %80 = vector.multi_reduction <maximumf>, %79, %cst_28 [1] : vector<8x8xf32> to vector<8xf32>
    %81 = vector.shape_cast %80 : vector<8xf32> to vector<8x1xf32>
    %82 = vector.broadcast %81 : vector<8x1xf32> to vector<8x8xf32>
    %83 = arith.subf %79, %82 : vector<8x8xf32>
    %84 = math.exp %83 : vector<8x8xf32>
    %cst_29 = arith.constant dense<0.000000e+00> : vector<8xf32>
    %85 = vector.multi_reduction <add>, %84, %cst_29 [1] : vector<8x8xf32> to vector<8xf32>
    %86 = vector.shape_cast %85 : vector<8xf32> to vector<8x1xf32>
    %87 = tpu.reciprocal %86 {approx = true} : vector<8x1xf32> -> vector<8x1xf32>
    %88 = vector.broadcast %87 : vector<8x1xf32> to vector<8x8xf32>
    %89 = arith.mulf %84, %88 : vector<8x8xf32>
    %cst_30 = arith.constant dense<0.000000e+00> : vector<8x8xf32>
    %90 = tpu.matmul %89, %74, %cst_30 {dimension_numbers = #tpu.dot_dimension_numbers<[1], [0], [0], [1], [0, 0, 1, 1], [], []>} : vector<8x8xf32>, vector<8x8xf32>, vector<8x8xf32> -> vector<8x8xf32>
    %91 = tpu.concatenate %27, %48, %69, %90 in 1 : vector<8x8xf32>, vector<8x8xf32>, vector<8x8xf32>, vector<8x8xf32> -> vector<8x32xf32>
    %c0_31 = arith.constant 0 : index
    %c0_32 = arith.constant 0 : index
    %c0_33 = arith.constant 0 : index
    %92 = vector.load %arg3[%c0_31, %c0_32, %c0_33] : memref<1x8x32xf32, #tpu.memory_space<vmem>>, vector<1x8x32xf32>
    %93 = vector.shape_cast %92 : vector<1x8x32xf32> to vector<8x32xf32>
    %94 = vector.shape_cast %91 : vector<8x32xf32> to vector<1x8x32xf32>
    tpu.vector_store %arg3[%c0_31, %c0_32, %c0_33], %94 {strides = array<i32>} : memref<1x8x32xf32, #tpu.memory_space<vmem>>, vector<1x8x32xf32>,
    return
  }
  func.func @transform_0(%arg0: i32) -> (i32, i32, i32) {
    %c0_i32 = arith.constant 0 : i32
    %c0_i32_0 = arith.constant 0 : i32
    %c0_i32_1 = arith.constant 0 : i32
    return %arg0, %c0_i32, %c0_i32_0 : i32, i32, i32
  }
  func.func @transform_1(%arg0: i32) -> (i32, i32, i32) {
    %c0_i32 = arith.constant 0 : i32
    %c0_i32_0 = arith.constant 0 : i32
    %c0_i32_1 = arith.constant 0 : i32
    return %arg0, %c0_i32, %c0_i32_0 : i32, i32, i32
  }
  func.func @transform_2(%arg0: i32) -> (i32, i32, i32) {
    %c0_i32 = arith.constant 0 : i32
    %c0_i32_0 = arith.constant 0 : i32
    %c0_i32_1 = arith.constant 0 : i32
    return %arg0, %c0_i32, %c0_i32_0 : i32, i32, i32
  }
}

module attributes {stable_mosaic.version = 11 : i64} {
  func.func @_linear_kernel(%arg0: i32, %arg1: i32, %arg2: i32, %arg3: memref<16x32xf32, #tpu.memory_space<vmem>>, %arg4: memref<32x64xf32, #tpu.memory_space<vmem>>, %arg5: memref<1x64xf32, #tpu.memory_space<vmem>>, %arg6: memref<16x64xf32, #tpu.memory_space<vmem>>, %arg7: memref<16x64xf32, #tpu.memory_space<vmem>>) attributes {dimension_semantics = [#tpu.dimension_semantics<parallel>, #tpu.dimension_semantics<parallel>, #tpu.dimension_semantics<arbitrary>], iteration_bounds = array<i64: 1, 1, 1>, scalar_prefetch = 0 : i64, scratch_operands = 1 : i64, tpu.core_type = #tpu.core_type<tc>, window_params = [{transform_indices = @transform_0, window_bounds = array<i64: 16, 32>}, {transform_indices = @transform_1, window_bounds = array<i64: 32, 64>}, {transform_indices = @transform_2, window_bounds = array<i64: 1, 64>}, {transform_indices = @transform_3, window_bounds = array<i64: 16, 64>}]} {
    %c0_i32 = arith.constant 0 : i32
    %0 = arith.cmpi eq, %arg2, %c0_i32 : i32
    %1 = arith.extui %0 : i1 to i32
    %c0_i32_0 = arith.constant 0 : i32
    %2 = arith.cmpi ne, %1, %c0_i32_0 : i32
    scf.if %2 {
      %cst_10 = arith.constant 0.000000e+00 : f32
      %12 = vector.broadcast %cst_10 : f32 to vector<16x64xf32>
      %c0_11 = arith.constant 0 : index
      %c0_12 = arith.constant 0 : index
      %13 = vector.load %arg7[%c0_11, %c0_12] : memref<16x64xf32, #tpu.memory_space<vmem>>, vector<16x64xf32>
      tpu.vector_store %arg7[%c0_11, %c0_12], %12 {strides = array<i32>} : memref<16x64xf32, #tpu.memory_space<vmem>>, vector<16x64xf32>,
    } else {
    }
    %c0 = arith.constant 0 : index
    %c0_1 = arith.constant 0 : index
    %3 = vector.load %arg7[%c0, %c0_1] : memref<16x64xf32, #tpu.memory_space<vmem>>, vector<16x64xf32>
    %c0_2 = arith.constant 0 : index
    %c0_3 = arith.constant 0 : index
    %4 = vector.load %arg3[%c0_2, %c0_3] : memref<16x32xf32, #tpu.memory_space<vmem>>, vector<16x32xf32>
    %c0_4 = arith.constant 0 : index
    %c0_5 = arith.constant 0 : index
    %5 = vector.load %arg4[%c0_4, %c0_5] : memref<32x64xf32, #tpu.memory_space<vmem>>, vector<32x64xf32>
    %cst = arith.constant dense<0.000000e+00> : vector<16x64xf32>
    %6 = tpu.matmul %4, %5, %cst {dimension_numbers = #tpu.dot_dimension_numbers<[1], [0], [0], [1], [0, 0, 1, 1], [], []>} : vector<16x32xf32>, vector<32x64xf32>, vector<16x64xf32> -> vector<16x64xf32>
    %7 = arith.addf %3, %6 : vector<16x64xf32>
    %c0_6 = arith.constant 0 : index
    %c0_7 = arith.constant 0 : index
    %8 = vector.load %arg7[%c0_6, %c0_7] : memref<16x64xf32, #tpu.memory_space<vmem>>, vector<16x64xf32>
    tpu.vector_store %arg7[%c0_6, %c0_7], %7 {strides = array<i32>} : memref<16x64xf32, #tpu.memory_space<vmem>>, vector<16x64xf32>,
    %c0_i32_8 = arith.constant 0 : i32
    %9 = arith.cmpi eq, %arg2, %c0_i32_8 : i32
    %10 = arith.extui %9 : i1 to i32
    %c0_i32_9 = arith.constant 0 : i32
    %11 = arith.cmpi ne, %10, %c0_i32_9 : i32
    scf.if %11 {
      %c0_10 = arith.constant 0 : index
      %c0_11 = arith.constant 0 : index
      %12 = vector.load %arg7[%c0_10, %c0_11] : memref<16x64xf32, #tpu.memory_space<vmem>>, vector<16x64xf32>
      %c0_12 = arith.constant 0 : index
      %c0_13 = arith.constant 0 : index
      %13 = vector.load %arg5[%c0_12, %c0_13] : memref<1x64xf32, #tpu.memory_space<vmem>>, vector<1x64xf32>
      %14 = vector.broadcast %13 : vector<1x64xf32> to vector<16x64xf32>
      %15 = arith.addf %12, %14 : vector<16x64xf32>
      %c0_14 = arith.constant 0 : index
      %c0_15 = arith.constant 0 : index
      %16 = vector.load %arg6[%c0_14, %c0_15] : memref<16x64xf32, #tpu.memory_space<vmem>>, vector<16x64xf32>
      tpu.vector_store %arg6[%c0_14, %c0_15], %15 {strides = array<i32>} : memref<16x64xf32, #tpu.memory_space<vmem>>, vector<16x64xf32>,
    } else {
    }
    return
  }
  func.func @transform_0(%arg0: i32, %arg1: i32, %arg2: i32) -> (i32, i32) {
    %c0_i32 = arith.constant 0 : i32
    return %arg0, %arg2 : i32, i32
  }
  func.func @transform_1(%arg0: i32, %arg1: i32, %arg2: i32) -> (i32, i32) {
    %c0_i32 = arith.constant 0 : i32
    return %arg2, %arg1 : i32, i32
  }
  func.func @transform_2(%arg0: i32, %arg1: i32, %arg2: i32) -> (i32, i32) {
    %c0_i32 = arith.constant 0 : i32
    %c0_i32_0 = arith.constant 0 : i32
    return %c0_i32, %arg1 : i32, i32
  }
  func.func @transform_3(%arg0: i32, %arg1: i32, %arg2: i32) -> (i32, i32) {
    %c0_i32 = arith.constant 0 : i32
    return %arg0, %arg1 : i32, i32
  }
}

module attributes {stable_mosaic.version = 11 : i64} {
  func.func @_cross_attn_kernel(%arg0: i32, %arg1: memref<1x8x32xf32, #tpu.memory_space<vmem>>, %arg2: memref<1x8x64xf32, #tpu.memory_space<vmem>>, %arg3: memref<1x1x8xi32, #tpu.memory_space<vmem>>, %arg4: memref<1x8x32xf32, #tpu.memory_space<vmem>>) attributes {dimension_semantics = [#tpu.dimension_semantics<parallel>], iteration_bounds = array<i64: 2>, scalar_prefetch = 0 : i64, scratch_operands = 0 : i64, tpu.core_type = #tpu.core_type<tc>, window_params = [{transform_indices = @transform_0, window_bounds = array<i64: 1, 8, 32>}, {transform_indices = @transform_1, window_bounds = array<i64: 1, 8, 64>}, {transform_indices = @transform_2, window_bounds = array<i64: 1, 1, 8>}, {transform_indices = @transform_3, window_bounds = array<i64: 1, 8, 32>}]} {
    %c0 = arith.constant 0 : index
    %c0_0 = arith.constant 0 : index
    %c0_1 = arith.constant 0 : index
    %0 = vector.load %arg1[%c0, %c0_0, %c0_1] : memref<1x8x32xf32, #tpu.memory_space<vmem>>, vector<1x8x32xf32>
    %1 = vector.shape_cast %0 : vector<1x8x32xf32> to vector<8x32xf32>
    %c0_2 = arith.constant 0 : index
    %c0_3 = arith.constant 0 : index
    %c0_4 = arith.constant 0 : index
    %2 = vector.load %arg2[%c0_2, %c0_3, %c0_4] : memref<1x8x64xf32, #tpu.memory_space<vmem>>, vector<1x8x64xf32>
    %3 = vector.shape_cast %2 : vector<1x8x64xf32> to vector<8x64xf32>
    %4 = vector.extract_strided_slice %3 {offsets = [0, 0], sizes = [8, 32], strides = [1, 1]} : vector<8x64xf32> to vector<8x32xf32>
    %5 = vector.extract_strided_slice %3 {offsets = [0, 32], sizes = [8, 32], strides = [1, 1]} : vector<8x64xf32> to vector<8x32xf32>
    %c0_5 = arith.constant 0 : index
    %c0_6 = arith.constant 0 : index
    %c0_7 = arith.constant 0 : index
    %6 = vector.load %arg3[%c0_5, %c0_6, %c0_7] : memref<1x1x8xi32, #tpu.memory_space<vmem>>, vector<1x1x8xi32>
    %7 = vector.shape_cast %6 : vector<1x1x8xi32> to vector<1x8xi32>
    %8 = vector.extract_strided_slice %1 {offsets = [0, 0], sizes = [8, 8], strides = [1, 1]} : vector<8x32xf32> to vector<8x8xf32>
    %cst = arith.constant 0.353553385 : f32
    %9 = vector.broadcast %cst : f32 to vector<8x8xf32>
    %10 = arith.mulf %8, %9 : vector<8x8xf32>
    %11 = vector.extract_strided_slice %4 {offsets = [0, 0], sizes = [8, 8], strides = [1, 1]} : vector<8x32xf32> to vector<8x8xf32>
    %12 = vector.extract_strided_slice %5 {offsets = [0, 0], sizes = [8, 8], strides = [1, 1]} : vector<8x32xf32> to vector<8x8xf32>
    %cst_8 = arith.constant dense<0.000000e+00> : vector<8x8xf32>
    %13 = tpu.matmul %10, %11, %cst_8 {dimension_numbers = #tpu.dot_dimension_numbers<[1], [1], [0], [0], [0, 0, 1, 0], [], []>} : vector<8x8xf32>, vector<8x8xf32>, vector<8x8xf32> -> vector<8x8xf32>
    %c0_i32 = arith.constant 0 : i32
    %14 = vector.broadcast %c0_i32 : i32 to vector<1x8xi32>
    %15 = arith.cmpi eq, %7, %14 : vector<1x8xi32>
    %cst_9 = arith.constant -1.000000e+09 : f32
    %16 = vector.shape_cast %15 : vector<1x8xi1> to vector<1x8xi1>
    %17 = vector.broadcast %16 : vector<1x8xi1> to vector<8x8xi1>
    %18 = vector.broadcast %cst_9 : f32 to vector<8x8xf32>
    %19 = arith.select %17, %18, %13 : vector<8x8xi1>, vector<8x8xf32>
    %cst_10 = arith.constant dense<0xFF800000> : vector<8xf32>
    %20 = vector.multi_reduction <maximumf>, %19, %cst_10 [1] : vector<8x8xf32> to vector<8xf32>
    %21 = vector.shape_cast %20 : vector<8xf32> to vector<8x1xf32>
    %22 = vector.broadcast %21 : vector<8x1xf32> to vector<8x8xf32>
    %23 = arith.subf %19, %22 : vector<8x8xf32>
    %24 = math.exp %23 : vector<8x8xf32>
    %cst_11 = arith.constant dense<0.000000e+00> : vector<8xf32>
    %25 = vector.multi_reduction <add>, %24, %cst_11 [1] : vector<8x8xf32> to vector<8xf32>
    %26 = vector.shape_cast %25 : vector<8xf32> to vector<8x1xf32>
    %27 = tpu.reciprocal %26 {approx = true} : vector<8x1xf32> -> vector<8x1xf32>
    %28 = vector.broadcast %27 : vector<8x1xf32> to vector<8x8xf32>
    %29 = arith.mulf %24, %28 : vector<8x8xf32>
    %cst_12 = arith.constant dense<0.000000e+00> : vector<8x8xf32>
    %30 = tpu.matmul %29, %12, %cst_12 {dimension_numbers = #tpu.dot_dimension_numbers<[1], [0], [0], [1], [0, 0, 1, 1], [], []>} : vector<8x8xf32>, vector<8x8xf32>, vector<8x8xf32> -> vector<8x8xf32>
    %31 = vector.extract_strided_slice %1 {offsets = [0, 8], sizes = [8, 8], strides = [1, 1]} : vector<8x32xf32> to vector<8x8xf32>
    %cst_13 = arith.constant 0.353553385 : f32
    %32 = vector.broadcast %cst_13 : f32 to vector<8x8xf32>
    %33 = arith.mulf %31, %32 : vector<8x8xf32>
    %34 = vector.extract_strided_slice %4 {offsets = [0, 8], sizes = [8, 8], strides = [1, 1]} : vector<8x32xf32> to vector<8x8xf32>
    %35 = vector.extract_strided_slice %5 {offsets = [0, 8], sizes = [8, 8], strides = [1, 1]} : vector<8x32xf32> to vector<8x8xf32>
    %cst_14 = arith.constant dense<0.000000e+00> : vector<8x8xf32>
    %36 = tpu.matmul %33, %34, %cst_14 {dimension_numbers = #tpu.dot_dimension_numbers<[1], [1], [0], [0], [0, 0, 1, 0], [], []>} : vector<8x8xf32>, vector<8x8xf32>, vector<8x8xf32> -> vector<8x8xf32>
    %c0_i32_15 = arith.constant 0 : i32
    %37 = vector.broadcast %c0_i32_15 : i32 to vector<1x8xi32>
    %38 = arith.cmpi eq, %7, %37 : vector<1x8xi32>
    %cst_16 = arith.constant -1.000000e+09 : f32
    %39 = vector.shape_cast %38 : vector<1x8xi1> to vector<1x8xi1>
    %40 = vector.broadcast %39 : vector<1x8xi1> to vector<8x8xi1>
    %41 = vector.broadcast %cst_16 : f32 to vector<8x8xf32>
    %42 = arith.select %40, %41, %36 : vector<8x8xi1>, vector<8x8xf32>
    %cst_17 = arith.constant dense<0xFF800000> : vector<8xf32>
    %43 = vector.multi_reduction <maximumf>, %42, %cst_17 [1] : vector<8x8xf32> to vector<8xf32>
    %44 = vector.shape_cast %43 : vector<8xf32> to vector<8x1xf32>
    %45 = vector.broadcast %44 : vector<8x1xf32> to vector<8x8xf32>
    %46 = arith.subf %42, %45 : vector<8x8xf32>
    %47 = math.exp %46 : vector<8x8xf32>
    %cst_18 = arith.constant dense<0.000000e+00> : vector<8xf32>
    %48 = vector.multi_reduction <add>, %47, %cst_18 [1] : vector<8x8xf32> to vector<8xf32>
    %49 = vector.shape_cast %48 : vector<8xf32> to vector<8x1xf32>
    %50 = tpu.reciprocal %49 {approx = true} : vector<8x1xf32> -> vector<8x1xf32>
    %51 = vector.broadcast %50 : vector<8x1xf32> to vector<8x8xf32>
    %52 = arith.mulf %47, %51 : vector<8x8xf32>
    %cst_19 = arith.constant dense<0.000000e+00> : vector<8x8xf32>
    %53 = tpu.matmul %52, %35, %cst_19 {dimension_numbers = #tpu.dot_dimension_numbers<[1], [0], [0], [1], [0, 0, 1, 1], [], []>} : vector<8x8xf32>, vector<8x8xf32>, vector<8x8xf32> -> vector<8x8xf32>
    %54 = vector.extract_strided_slice %1 {offsets = [0, 16], sizes = [8, 8], strides = [1, 1]} : vector<8x32xf32> to vector<8x8xf32>
    %cst_20 = arith.constant 0.353553385 : f32
    %55 = vector.broadcast %cst_20 : f32 to vector<8x8xf32>
    %56 = arith.mulf %54, %55 : vector<8x8xf32>
    %57 = vector.extract_strided_slice %4 {offsets = [0, 16], sizes = [8, 8], strides = [1, 1]} : vector<8x32xf32> to vector<8x8xf32>
    %58 = vector.extract_strided_slice %5 {offsets = [0, 16], sizes = [8, 8], strides = [1, 1]} : vector<8x32xf32> to vector<8x8xf32>
    %cst_21 = arith.constant dense<0.000000e+00> : vector<8x8xf32>
    %59 = tpu.matmul %56, %57, %cst_21 {dimension_numbers = #tpu.dot_dimension_numbers<[1], [1], [0], [0], [0, 0, 1, 0], [], []>} : vector<8x8xf32>, vector<8x8xf32>, vector<8x8xf32> -> vector<8x8xf32>
    %c0_i32_22 = arith.constant 0 : i32
    %60 = vector.broadcast %c0_i32_22 : i32 to vector<1x8xi32>
    %61 = arith.cmpi eq, %7, %60 : vector<1x8xi32>
    %cst_23 = arith.constant -1.000000e+09 : f32
    %62 = vector.shape_cast %61 : vector<1x8xi1> to vector<1x8xi1>
    %63 = vector.broadcast %62 : vector<1x8xi1> to vector<8x8xi1>
    %64 = vector.broadcast %cst_23 : f32 to vector<8x8xf32>
    %65 = arith.select %63, %64, %59 : vector<8x8xi1>, vector<8x8xf32>
    %cst_24 = arith.constant dense<0xFF800000> : vector<8xf32>
    %66 = vector.multi_reduction <maximumf>, %65, %cst_24 [1] : vector<8x8xf32> to vector<8xf32>
    %67 = vector.shape_cast %66 : vector<8xf32> to vector<8x1xf32>
    %68 = vector.broadcast %67 : vector<8x1xf32> to vector<8x8xf32>
    %69 = arith.subf %65, %68 : vector<8x8xf32>
    %70 = math.exp %69 : vector<8x8xf32>
    %cst_25 = arith.constant dense<0.000000e+00> : vector<8xf32>
    %71 = vector.multi_reduction <add>, %70, %cst_25 [1] : vector<8x8xf32> to vector<8xf32>
    %72 = vector.shape_cast %71 : vector<8xf32> to vector<8x1xf32>
    %73 = tpu.reciprocal %72 {approx = true} : vector<8x1xf32> -> vector<8x1xf32>
    %74 = vector.broadcast %73 : vector<8x1xf32> to vector<8x8xf32>
    %75 = arith.mulf %70, %74 : vector<8x8xf32>
    %cst_26 = arith.constant dense<0.000000e+00> : vector<8x8xf32>
    %76 = tpu.matmul %75, %58, %cst_26 {dimension_numbers = #tpu.dot_dimension_numbers<[1], [0], [0], [1], [0, 0, 1, 1], [], []>} : vector<8x8xf32>, vector<8x8xf32>, vector<8x8xf32> -> vector<8x8xf32>
    %77 = vector.extract_strided_slice %1 {offsets = [0, 24], sizes = [8, 8], strides = [1, 1]} : vector<8x32xf32> to vector<8x8xf32>
    %cst_27 = arith.constant 0.353553385 : f32
    %78 = vector.broadcast %cst_27 : f32 to vector<8x8xf32>
    %79 = arith.mulf %77, %78 : vector<8x8xf32>
    %80 = vector.extract_strided_slice %4 {offsets = [0, 24], sizes = [8, 8], strides = [1, 1]} : vector<8x32xf32> to vector<8x8xf32>
    %81 = vector.extract_strided_slice %5 {offsets = [0, 24], sizes = [8, 8], strides = [1, 1]} : vector<8x32xf32> to vector<8x8xf32>
    %cst_28 = arith.constant dense<0.000000e+00> : vector<8x8xf32>
    %82 = tpu.matmul %79, %80, %cst_28 {dimension_numbers = #tpu.dot_dimension_numbers<[1], [1], [0], [0], [0, 0, 1, 0], [], []>} : vector<8x8xf32>, vector<8x8xf32>, vector<8x8xf32> -> vector<8x8xf32>
    %c0_i32_29 = arith.constant 0 : i32
    %83 = vector.broadcast %c0_i32_29 : i32 to vector<1x8xi32>
    %84 = arith.cmpi eq, %7, %83 : vector<1x8xi32>
    %cst_30 = arith.constant -1.000000e+09 : f32
    %85 = vector.shape_cast %84 : vector<1x8xi1> to vector<1x8xi1>
    %86 = vector.broadcast %85 : vector<1x8xi1> to vector<8x8xi1>
    %87 = vector.broadcast %cst_30 : f32 to vector<8x8xf32>
    %88 = arith.select %86, %87, %82 : vector<8x8xi1>, vector<8x8xf32>
    %cst_31 = arith.constant dense<0xFF800000> : vector<8xf32>
    %89 = vector.multi_reduction <maximumf>, %88, %cst_31 [1] : vector<8x8xf32> to vector<8xf32>
    %90 = vector.shape_cast %89 : vector<8xf32> to vector<8x1xf32>
    %91 = vector.broadcast %90 : vector<8x1xf32> to vector<8x8xf32>
    %92 = arith.subf %88, %91 : vector<8x8xf32>
    %93 = math.exp %92 : vector<8x8xf32>
    %cst_32 = arith.constant dense<0.000000e+00> : vector<8xf32>
    %94 = vector.multi_reduction <add>, %93, %cst_32 [1] : vector<8x8xf32> to vector<8xf32>
    %95 = vector.shape_cast %94 : vector<8xf32> to vector<8x1xf32>
    %96 = tpu.reciprocal %95 {approx = true} : vector<8x1xf32> -> vector<8x1xf32>
    %97 = vector.broadcast %96 : vector<8x1xf32> to vector<8x8xf32>
    %98 = arith.mulf %93, %97 : vector<8x8xf32>
    %cst_33 = arith.constant dense<0.000000e+00> : vector<8x8xf32>
    %99 = tpu.matmul %98, %81, %cst_33 {dimension_numbers = #tpu.dot_dimension_numbers<[1], [0], [0], [1], [0, 0, 1, 1], [], []>} : vector<8x8xf32>, vector<8x8xf32>, vector<8x8xf32> -> vector<8x8xf32>
    %100 = tpu.concatenate %30, %53, %76, %99 in 1 : vector<8x8xf32>, vector<8x8xf32>, vector<8x8xf32>, vector<8x8xf32> -> vector<8x32xf32>
    %c0_34 = arith.constant 0 : index
    %c0_35 = arith.constant 0 : index
    %c0_36 = arith.constant 0 : index
    %101 = vector.load %arg4[%c0_34, %c0_35, %c0_36] : memref<1x8x32xf32, #tpu.memory_space<vmem>>, vector<1x8x32xf32>
    %102 = vector.shape_cast %101 : vector<1x8x32xf32> to vector<8x32xf32>
    %103 = vector.shape_cast %100 : vector<8x32xf32> to vector<1x8x32xf32>
    tpu.vector_store %arg4[%c0_34, %c0_35, %c0_36], %103 {strides = array<i32>} : memref<1x8x32xf32, #tpu.memory_space<vmem>>, vector<1x8x32xf32>,
    return
  }
  func.func @transform_0(%arg0: i32) -> (i32, i32, i32) {
    %c0_i32 = arith.constant 0 : i32
    %c0_i32_0 = arith.constant 0 : i32
    %c0_i32_1 = arith.constant 0 : i32
    return %arg0, %c0_i32, %c0_i32_0 : i32, i32, i32
  }
  func.func @transform_1(%arg0: i32) -> (i32, i32, i32) {
    %c0_i32 = arith.constant 0 : i32
    %c0_i32_0 = arith.constant 0 : i32
    %c0_i32_1 = arith.constant 0 : i32
    return %arg0, %c0_i32, %c0_i32_0 : i32, i32, i32
  }
  func.func @transform_2(%arg0: i32) -> (i32, i32, i32) {
    %c0_i32 = arith.constant 0 : i32
    %c0_i32_0 = arith.constant 0 : i32
    %c0_i32_1 = arith.constant 0 : i32
    return %arg0, %c0_i32, %c0_i32_0 : i32, i32, i32
  }
  func.func @transform_3(%arg0: i32) -> (i32, i32, i32) {
    %c0_i32 = arith.constant 0 : i32
    %c0_i32_0 = arith.constant 0 : i32
    %c0_i32_1 = arith.constant 0 : i32
    return %arg0, %c0_i32, %c0_i32_0 : i32, i32, i32
  }
}

module attributes {stable_mosaic.version = 11 : i64} {
  func.func @_layernorm_kernel(%arg0: i32, %arg1: memref<16x32xf32, #tpu.memory_space<vmem>>, %arg2: memref<1x32xf32, #tpu.memory_space<vmem>>, %arg3: memref<1x32xf32, #tpu.memory_space<vmem>>, %arg4: memref<16x32xf32, #tpu.memory_space<vmem>>) attributes {dimension_semantics = [#tpu.dimension_semantics<parallel>], iteration_bounds = array<i64: 1>, scalar_prefetch = 0 : i64, scratch_operands = 0 : i64, tpu.core_type = #tpu.core_type<tc>, window_params = [{transform_indices = @transform_0, window_bounds = array<i64: 16, 32>}, {pipeline_mode = #tpu.pipeline_mode<synchronous>, transform_indices = @transform_1, window_bounds = array<i64: 1, 32>}, {pipeline_mode = #tpu.pipeline_mode<synchronous>, transform_indices = @transform_2, window_bounds = array<i64: 1, 32>}, {transform_indices = @transform_3, window_bounds = array<i64: 16, 32>}]} {
    %c0 = arith.constant 0 : index
    %c0_0 = arith.constant 0 : index
    %0 = vector.load %arg1[%c0, %c0_0] : memref<16x32xf32, #tpu.memory_space<vmem>>, vector<16x32xf32>
    %cst = arith.constant dense<0.000000e+00> : vector<16xf32>
    %1 = vector.multi_reduction <add>, %0, %cst [1] : vector<16x32xf32> to vector<16xf32>
    %2 = vector.shape_cast %1 : vector<16xf32> to vector<16x1xf32>
    %cst_1 = arith.constant 3.200000e+01 : f32
    %3 = vector.broadcast %cst_1 : f32 to vector<16x1xf32>
    %4 = arith.divf %2, %3 : vector<16x1xf32>
    %5 = vector.broadcast %4 : vector<16x1xf32> to vector<16x32xf32>
    %6 = arith.subf %0, %5 : vector<16x32xf32>
    %7 = arith.mulf %6, %6 : vector<16x32xf32>
    %cst_2 = arith.constant dense<0.000000e+00> : vector<16xf32>
    %8 = vector.multi_reduction <add>, %7, %cst_2 [1] : vector<16x32xf32> to vector<16xf32>
    %9 = vector.shape_cast %8 : vector<16xf32> to vector<16x1xf32>
    %cst_3 = arith.constant 3.100000e+01 : f32
    %10 = vector.broadcast %cst_3 : f32 to vector<16x1xf32>
    %11 = arith.divf %9, %10 : vector<16x1xf32>
    %c0_4 = arith.constant 0 : index
    %c0_5 = arith.constant 0 : index
    %12 = vector.load %arg2[%c0_4, %c0_5] : memref<1x32xf32, #tpu.memory_space<vmem>>, vector<1x32xf32>
    %13 = vector.broadcast %12 : vector<1x32xf32> to vector<16x32xf32>
    %14 = arith.mulf %13, %6 : vector<16x32xf32>
    %15 = math.sqrt %11 : vector<16x1xf32>
    %cst_6 = arith.constant 9.99999997E-7 : f32
    %16 = vector.broadcast %cst_6 : f32 to vector<16x1xf32>
    %17 = arith.addf %15, %16 : vector<16x1xf32>
    %18 = vector.broadcast %17 : vector<16x1xf32> to vector<16x32xf32>
    %19 = arith.divf %14, %18 : vector<16x32xf32>
    %c0_7 = arith.constant 0 : index
    %c0_8 = arith.constant 0 : index
    %20 = vector.load %arg3[%c0_7, %c0_8] : memref<1x32xf32, #tpu.memory_space<vmem>>, vector<1x32xf32>
    %21 = vector.broadcast %20 : vector<1x32xf32> to vector<16x32xf32>
    %22 = arith.addf %19, %21 : vector<16x32xf32>
    %c0_9 = arith.constant 0 : index
    %c0_10 = arith.constant 0 : index
    %23 = vector.load %arg4[%c0_9, %c0_10] : memref<16x32xf32, #tpu.memory_space<vmem>>, vector<16x32xf32>
    tpu.vector_store %arg4[%c0_9, %c0_10], %22 {strides = array<i32>} : memref<16x32xf32, #tpu.memory_space<vmem>>, vector<16x32xf32>,
    return
  }
  func.func @transform_0(%arg0: i32) -> (i32, i32) {
    %c0_i32 = arith.constant 0 : i32
    %c0_i32_0 = arith.constant 0 : i32
    return %arg0, %c0_i32 : i32, i32
  }
  func.func @transform_1(%arg0: i32) -> (i32, i32) {
    %c0_i32 = arith.constant 0 : i32
    %c0_i32_0 = arith.constant 0 : i32
    %c0_i32_1 = arith.constant 0 : i32
    return %c0_i32, %c0_i32_0 : i32, i32
  }
  func.func @transform_2(%arg0: i32) -> (i32, i32) {
    %c0_i32 = arith.constant 0 : i32
    %c0_i32_0 = arith.constant 0 : i32
    %c0_i32_1 = arith.constant 0 : i32
    return %c0_i32, %c0_i32_0 : i32, i32
  }
  func.func @transform_3(%arg0: i32) -> (i32, i32) {
    %c0_i32 = arith.constant 0 : i32
    %c0_i32_0 = arith.constant 0 : i32
    return %arg0, %c0_i32 : i32, i32
  }
}

module attributes {stable_mosaic.version = 11 : i64} {
  func.func @_ln_linear_kernel(%arg0: i32, %arg1: i32, %arg2: memref<16x32xf32, #tpu.memory_space<vmem>>, %arg3: memref<1x32xf32, #tpu.memory_space<vmem>>, %arg4: memref<1x32xf32, #tpu.memory_space<vmem>>, %arg5: memref<32x32xf32, #tpu.memory_space<vmem>>, %arg6: memref<1x32xf32, #tpu.memory_space<vmem>>, %arg7: memref<16x32xf32, #tpu.memory_space<vmem>>) attributes {dimension_semantics = [#tpu.dimension_semantics<parallel>, #tpu.dimension_semantics<parallel>], iteration_bounds = array<i64: 1, 1>, scalar_prefetch = 0 : i64, scratch_operands = 0 : i64, tpu.core_type = #tpu.core_type<tc>, window_params = [{transform_indices = @transform_0, window_bounds = array<i64: 16, 32>}, {pipeline_mode = #tpu.pipeline_mode<synchronous>, transform_indices = @transform_1, window_bounds = array<i64: 1, 32>}, {pipeline_mode = #tpu.pipeline_mode<synchronous>, transform_indices = @transform_2, window_bounds = array<i64: 1, 32>}, {transform_indices = @transform_3, window_bounds = array<i64: 32, 32>}, {transform_indices = @transform_4, window_bounds = array<i64: 1, 32>}, {transform_indices = @transform_5, window_bounds = array<i64: 16, 32>}]} {
    %c0 = arith.constant 0 : index
    %c0_0 = arith.constant 0 : index
    %0 = vector.load %arg2[%c0, %c0_0] : memref<16x32xf32, #tpu.memory_space<vmem>>, vector<16x32xf32>
    %cst = arith.constant dense<0.000000e+00> : vector<16xf32>
    %1 = vector.multi_reduction <add>, %0, %cst [1] : vector<16x32xf32> to vector<16xf32>
    %2 = vector.shape_cast %1 : vector<16xf32> to vector<16x1xf32>
    %cst_1 = arith.constant 3.200000e+01 : f32
    %3 = vector.broadcast %cst_1 : f32 to vector<16x1xf32>
    %4 = arith.divf %2, %3 : vector<16x1xf32>
    %5 = vector.broadcast %4 : vector<16x1xf32> to vector<16x32xf32>
    %6 = arith.subf %0, %5 : vector<16x32xf32>
    %7 = arith.mulf %6, %6 : vector<16x32xf32>
    %cst_2 = arith.constant dense<0.000000e+00> : vector<16xf32>
    %8 = vector.multi_reduction <add>, %7, %cst_2 [1] : vector<16x32xf32> to vector<16xf32>
    %9 = vector.shape_cast %8 : vector<16xf32> to vector<16x1xf32>
    %cst_3 = arith.constant 3.100000e+01 : f32
    %10 = vector.broadcast %cst_3 : f32 to vector<16x1xf32>
    %11 = arith.divf %9, %10 : vector<16x1xf32>
    %c0_4 = arith.constant 0 : index
    %c0_5 = arith.constant 0 : index
    %12 = vector.load %arg3[%c0_4, %c0_5] : memref<1x32xf32, #tpu.memory_space<vmem>>, vector<1x32xf32>
    %13 = vector.broadcast %12 : vector<1x32xf32> to vector<16x32xf32>
    %14 = arith.mulf %13, %6 : vector<16x32xf32>
    %15 = math.sqrt %11 : vector<16x1xf32>
    %cst_6 = arith.constant 9.99999997E-7 : f32
    %16 = vector.broadcast %cst_6 : f32 to vector<16x1xf32>
    %17 = arith.addf %15, %16 : vector<16x1xf32>
    %18 = vector.broadcast %17 : vector<16x1xf32> to vector<16x32xf32>
    %19 = arith.divf %14, %18 : vector<16x32xf32>
    %c0_7 = arith.constant 0 : index
    %c0_8 = arith.constant 0 : index
    %20 = vector.load %arg4[%c0_7, %c0_8] : memref<1x32xf32, #tpu.memory_space<vmem>>, vector<1x32xf32>
    %21 = vector.broadcast %20 : vector<1x32xf32> to vector<16x32xf32>
    %22 = arith.addf %19, %21 : vector<16x32xf32>
    %c0_9 = arith.constant 0 : index
    %c0_10 = arith.constant 0 : index
    %23 = vector.load %arg5[%c0_9, %c0_10] : memref<32x32xf32, #tpu.memory_space<vmem>>, vector<32x32xf32>
    %cst_11 = arith.constant dense<0.000000e+00> : vector<16x32xf32>
    %24 = tpu.matmul %22, %23, %cst_11 {dimension_numbers = #tpu.dot_dimension_numbers<[1], [0], [0], [1], [0, 0, 1, 1], [], []>} : vector<16x32xf32>, vector<32x32xf32>, vector<16x32xf32> -> vector<16x32xf32>
    %c0_12 = arith.constant 0 : index
    %c0_13 = arith.constant 0 : index
    %25 = vector.load %arg6[%c0_12, %c0_13] : memref<1x32xf32, #tpu.memory_space<vmem>>, vector<1x32xf32>
    %26 = vector.broadcast %25 : vector<1x32xf32> to vector<16x32xf32>
    %27 = arith.addf %24, %26 : vector<16x32xf32>
    %c0_14 = arith.constant 0 : index
    %c0_15 = arith.constant 0 : index
    %28 = vector.load %arg7[%c0_14, %c0_15] : memref<16x32xf32, #tpu.memory_space<vmem>>, vector<16x32xf32>
    tpu.vector_store %arg7[%c0_14, %c0_15], %27 {strides = array<i32>} : memref<16x32xf32, #tpu.memory_space<vmem>>, vector<16x32xf32>,
    return
  }
  func.func @transform_0(%arg0: i32, %arg1: i32) -> (i32, i32) {
    %c0_i32 = arith.constant 0 : i32
    %c0_i32_0 = arith.constant 0 : i32
    return %arg0, %c0_i32 : i32, i32
  }
  func.func @transform_1(%arg0: i32, %arg1: i32) -> (i32, i32) {
    %c0_i32 = arith.constant 0 : i32
    %c0_i32_0 = arith.constant 0 : i32
    %c0_i32_1 = arith.constant 0 : i32
    return %c0_i32, %c0_i32_0 : i32, i32
  }
  func.func @transform_2(%arg0: i32, %arg1: i32) -> (i32, i32) {
    %c0_i32 = arith.constant 0 : i32
    %c0_i32_0 = arith.constant 0 : i32
    %c0_i32_1 = arith.constant 0 : i32
    return %c0_i32, %c0_i32_0 : i32, i32
  }
  func.func @transform_3(%arg0: i32, %arg1: i32) -> (i32, i32) {
    %c0_i32 = arith.constant 0 : i32
    %c0_i32_0 = arith.constant 0 : i32
    return %c0_i32, %arg1 : i32, i32
  }
  func.func @transform_4(%arg0: i32, %arg1: i32) -> (i32, i32) {
    %c0_i32 = arith.constant 0 : i32
    %c0_i32_0 = arith.constant 0 : i32
    return %c0_i32, %arg1 : i32, i32
  }
  func.func @transform_5(%arg0: i32, %arg1: i32) -> (i32, i32) {
    %c0_i32 = arith.constant 0 : i32
    return %arg0, %arg1 : i32, i32
  }
}

</mosaic_0001>

<llo_original>
// kernel: jambu_forward.30
$region0: #{jambu_forward.30}
  #allocation0 [shape = 'u32[]', space=smem, size = 0x4, offset = 0x4, fixed_abs, tag = 'smem constant byte address 0x4 - core index']
  #allocation1 [shape = 'u32[144,128]{1,0:T(1,128)}', space=vmem, size = 0x12000, scoped, tag = 'internal scratch']
  %s0 = inlined_call_operand.vmem [shape: f32[16,32], index: 0, kind: input, shape index: {}]
  %s1 = inlined_call_operand.vmem [shape: f32[1,32], index: 1, kind: input, shape index: {}]
  %s2 = inlined_call_operand.vmem [shape: f32[1,32], index: 2, kind: input, shape index: {}]
  %s3 = inlined_call_operand.vmem [shape: f32[32,96], index: 3, kind: input, shape index: {}]
  %s4 = inlined_call_operand.vmem [shape: f32[1,96], index: 4, kind: input, shape index: {}]
  %s5 = inlined_call_operand.vmem [shape: f32[16,96], index: 5, kind: output, shape index: {}]
  %s6 = sld [smem:[#allocation0]]
  $region30: #{jambu_forward.30} parent=0
    _
  %s8 = ssub.s32 1, %s6
  %s9 = scalar_select 0, %s8, %s6
  // Predicated region
  $region2: #{jambu_forward.30} parent=0 // pred_check
    _
  $region3: #{jambu_forward.30} parent=0 // pred_check_branch
    %11 = sbr.rel (0) target = $region5
  $region4: #{jambu_forward.30} parent=0 // pred_region
    _
  $region5: #{jambu_forward.30} parent=0 // pred_fallthru
    _
  // Predicated region
  $region6: #{jambu_forward.30} parent=0 // pred_check
    _
  $region7: #{jambu_forward.30} parent=0 // pred_check_branch
    %13 = sbr.rel (0) target = $region9
  $region8: #{jambu_forward.30} parent=0 // pred_region
    _
  $region9: #{jambu_forward.30} parent=0 // pred_fallthru
    _
  // Predicated region
  $region10: #{jambu_forward.30} parent=0 // pred_check
    _
  $region11: #{jambu_forward.30} parent=0 // pred_check_branch
    %15 = sbr.rel (0) target = $region13
  $region12: #{jambu_forward.30} parent=0 // pred_region
    _
  $region13: #{jambu_forward.30} parent=0 // pred_fallthru
    _
  // Predicated region
  $region14: #{jambu_forward.30} parent=0 // pred_check
    _
  $region15: #{jambu_forward.30} parent=0 // pred_check_branch
    %17 = sbr.rel (0) target = $region17
  $region16: #{jambu_forward.30} parent=0 // pred_region
    _
  $region17: #{jambu_forward.30} parent=0 // pred_fallthru
    _
  // Predicated region
  $region18: #{jambu_forward.30} parent=0 // pred_check
    _
  $region19: #{jambu_forward.30} parent=0 // pred_check_branch
    %19 = sbr.rel (0) target = $region21
  $region20: #{jambu_forward.30} parent=0 // pred_region
    _
  $region21: #{jambu_forward.30} parent=0 // pred_fallthru
    _
  %v20 = vld [vmem:[%s0] sm:$0xff]
  %v21 = vld [vmem:[%s0 + $0x8] sm:$0xff]
  %vm22 = vcmask 261120
  %v23 = vsel %vm22, %v20, 0.0
  %24 = vadd.xlane.f32.xlu0 %v23
  %v25 = vpop.xlane.xlu0 %24
  %v26 = vsel %vm22, %v21, 0.0
  %27 = vadd.xlane.f32.xlu0 %v26
  %v28 = vpop.xlane.xlu0 %27
  %v29 = vrcp.pop 32.0
  %v30 = vmul.f32 %v25, %v29
  %v31 = vmul.f32 %v28, %v29
  %v32 = vsub.f32 %v20, %v30
  %v33 = vsub.f32 %v21, %v31
  %v34 = vmul.f32 %v32, %v32
  %v35 = vmul.f32 %v33, %v33
  %v36 = vsel %vm22, %v34, 0.0
  %37 = vadd.xlane.f32.xlu0 %v36
  %v38 = vpop.xlane.xlu0 %37
  %v39 = vsel %vm22, %v35, 0.0
  %40 = vadd.xlane.f32.xlu0 %v39
  %v41 = vpop.xlane.xlu0 %40
  %v42 = vrcp.pop 31.0
  %v43 = vmul.f32 %v38, %v42
  %v44 = vmul.f32 %v41, %v42
  %v45 = vld [vmem:[%s1] sm:$0x1]
  %v47 = vlaneseq
  %v48 = vshrl.u32 %v47, 7
  %v49 = vsub.s32 0, %v48
  %v50 = vrot.slane %v45, %v49
  %v52 = vmul.f32 %v50, %v32
  %v53 = vmul.f32 %v50, %v33
  %v54 = vrsqrt.pop %v43
  %v55 = vmul.f32 %v43, %v54
  %vm56 = vcmp.eq.f32.partialorder %v43, inf
  %v57 = vsel %vm56, %v43, %v55
  %vm58 = vcmp.eq.f32.partialorder %v43, 0.0
  %v59 = vand.u32 %v43, 2147483648
  %v60 = vsel %vm58, %v59, %v57
  %v61 = vrsqrt.pop %v44
  %v62 = vmul.f32 %v44, %v61
  %vm63 = vcmp.eq.f32.partialorder %v44, inf
  %v64 = vsel %vm63, %v44, %v62
  %vm65 = vcmp.eq.f32.partialorder %v44, 0.0
  %v66 = vand.u32 %v44, 2147483648
  %v67 = vsel %vm65, %v66, %v64
  %v68 = vadd.f32 %v60, 1e-06
  %v69 = vadd.f32 %v67, 1e-06
  %v70 = vrcp.pop %v68
  %v71 = vmul.f32 %v52, %v70
  %v72 = vrcp.pop %v69
  %v73 = vmul.f32 %v53, %v72
  %v74 = vld [vmem:[%s2] sm:$0x1]
  %v76 = vlaneseq
  %v77 = vshrl.u32 %v76, 7
  %v78 = vsub.s32 0, %v77
  %v79 = vrot.slane %v74, %v78
  %v81 = vadd.f32 %v71, %v79
  %v82 = vadd.f32 %v73, %v79
  %v83 = vld [vmem:[%s3] sm:$0xff]
  %v84 = vld [vmem:[%s3 + $0x8] sm:$0xff]
  %v85 = vld [vmem:[%s3 + $0x10] sm:$0xff]
  %v86 = vld [vmem:[%s3 + $0x18] sm:$0xff]
  %v87 = vld [vmem:[%s4] sm:$0x1]
  %v89 = vlaneseq
  %v90 = vshrl.u32 %v89, 7
  %v91 = vsub.s32 0, %v90
  %v92 = vrot.slane %v87, %v91
  %v95 = vsel %vm22, %v81, 0
  %v98 = vsel %vm22, %v82, 0
  %100 = vmatprep.subr.mxu0 0.0
  %101 = vmatpush1.msra.mxu0 %v83
  %102 = vmatprep.subr.mxu0 0.0
  %103 = vmatpush1.msra.mxu0 %v84
  %104 = vmatprep.subr.mxu0 0.0
  %105 = vmatpush1.msra.mxu0 %v85
  %106 = vmatprep.subr.mxu0 0.0
  %107 = vmatpush1.msra.mxu0 %v86
  %108 = vmatprep.subr.mxu0 0.0
  %109 = vmatpush1.msra.mxu0 0.0
  %110 = vmatprep.subr.mxu0 0.0
  %111 = vmatpush1.msra.mxu0 0.0
  %112 = vmatprep.subr.mxu0 0.0
  %113 = vmatpush1.msra.mxu0 0.0
  %114 = vmatprep.subr.mxu0 0.0
  %115 = vmatpush1.msra.mxu0 0.0
  %116 = vmatprep.subr.mxu0 0.0
  %117 = vmatpush1.msra.mxu0 0.0
  %118 = vmatprep.subr.mxu0 0.0
  %119 = vmatpush1.msra.mxu0 0.0
  %120 = vmatprep.subr.mxu0 0.0
  %121 = vmatpush1.msra.mxu0 0.0
  %122 = vmatprep.subr.mxu0 0.0
  %123 = vmatpush1.msra.mxu0 0.0
  %124 = vmatprep.subr.mxu0 0.0
  %125 = vmatpush1.msra.mxu0 0.0
  %126 = vmatprep.subr.mxu0 0.0
  %127 = vmatpush1.msra.mxu0 0.0
  %128 = vmatprep.subr.mxu0 0.0
  %129 = vmatpush1.msra.mxu0 0.0
  %130 = vmatprep.subr.mxu0 0.0
  %131 = vmatpush1.msra.mxu0 0.0
  %132 = vmatprep.subr.mxu0 0.0
  %133 = vmatpush1.msra.mxu0 0.0
  %134 = vmatprep.subr.mxu0 0.0
  %135 = vmatpush1.msra.mxu0 0.0
  %136 = vmatprep.subr.mxu0 0.0
  %137 = vmatpush1.msra.mxu0 0.0
  %138 = vmatprep.subr.mxu0 0.0
  %139 = vmatpush1.msra.mxu0 0.0
  %140 = vmatprep.subr.mxu0 0.0
  %141 = vmatpush1.msra.mxu0 0.0
  %142 = vmatprep.subr.mxu0 0.0
  %143 = vmatpush1.msra.mxu0 0.0
  %144 = vmatprep.subr.mxu0 0.0
  %145 = vmatpush1.msra.mxu0 0.0
  %146 = vmatprep.subr.mxu0 0.0
  %147 = vmatpush1.msra.mxu0 0.0
  %148 = vmatprep.subr.mxu0 0.0
  %149 = vmatpush1.msra.mxu0 0.0
  %150 = vmatprep.subr.mxu0 0.0
  %151 = vmatpush1.msra.mxu0 0.0
  %152 = vmatprep.subr.mxu0 0.0
  %153 = vmatpush1.msra.mxu0 0.0
  %154 = vmatprep.subr.mxu0 0.0
  %155 = vmatpush1.msra.mxu0 0.0
  %156 = vmatprep.subr.mxu0 0.0
  %157 = vmatpush1.msra.mxu0 0.0
  %158 = vmatprep.subr.mxu0 0.0
  %159 = vmatpush1.msra.mxu0 0.0
  %160 = vmatprep.subr.mxu0 0.0
  %161 = vmatpush1.msra.mxu0 0.0
  %162 = vmatprep.subr.mxu0 0.0
  %163 = vmatpush1.msra.mxu0 0.0
  %164 = vmatprep.mubr.f32.mxu0 0.0
  %165 = vmatmul.mubr.f32.gmra.mrb[0].mxu0 %v95
  %v166 = vpop.f32.mrb[0].mxu0
  %v167 = vadd.f32 %v92, %v166
  %v168 = vpop.f32.mrb[0].mxu0
  %169 = vmatprep.mubr.f32.mxu0 0.0
  %170 = vmatmul.mubr.f32.gmra.mrb[0].mxu0 %v98
  %v171 = vpop.f32.mrb[0].mxu0
  %v172 = vadd.f32 %v92, %v171
  %v173 = vpop.f32.mrb[0].mxu0
  %174 = vdwg.mxu0
  %vm175 = vcmask 785408
  %176 = vst.msk [vmem:[%s5] sm:$0xff] %vm175, %v167
  %177 = vst.msk [vmem:[%s5 + $0x8] sm:$0xff] %vm175, %v172
  // Predicated region
  $region22: #{jambu_forward.30} parent=0 // pred_check
    _
  $region23: #{jambu_forward.30} parent=0 // pred_check_branch
    %179 = sbr.rel (0) target = $region25
  $region24: #{jambu_forward.30} parent=0 // pred_region
    _
  $region25: #{jambu_forward.30} parent=0 // pred_fallthru
    _
  // Predicated region
  $region26: #{jambu_forward.30} parent=0 // pred_check
    _
  $region27: #{jambu_forward.30} parent=0 // pred_check_branch
    %181 = sbr.rel (0) target = $region29
  $region28: #{jambu_forward.30} parent=0 // pred_region
    _
  $region29: #{jambu_forward.30} parent=0 // pred_fallthru
    _

// kernel: jambu_forward.31
$region0: #{jambu_forward.31}
  #allocation0 [shape = 'u32[]', space=smem, size = 0x4, offset = 0x4, fixed_abs, tag = 'smem constant byte address 0x4 - core index']
  #allocation1 [shape = 'u32[144,128]{1,0:T(1,128)}', space=vmem, size = 0x12000, scoped, tag = 'internal scratch']
  %s0 = inlined_call_operand.vmem [shape: f32[2,8,96], index: 0, kind: input, shape index: {}]
  %s1 = inlined_call_operand.vmem [shape: s32[2,1,8], index: 1, kind: input, shape index: {}]
  %s2 = inlined_call_operand.vmem [shape: f32[2,8,32], index: 2, kind: output, shape index: {}]
  %s3 = sld [smem:[#allocation0]]
  $region41: #{jambu_forward.31} parent=0
    _
  %s5 = ssub.s32 1, %s3
  %s6 = scalar_select 0, %s5, %s3
  loop: start=0, step=1, limit=4
  $region2: #{jambu_forward.31} parent=0 // loop_pre_header
    _
  $region3: #{jambu_forward.31} parent=0 // loop_header
    %s8 = sphi 0, %s12
    %p9 = scmp.ge.s32.totalorder %s8, 4
    %s18 = sphi 0, %s20
    %s21 = sphi 0, %s18
    %s22 = sphi 0, %s21
    %s38 = sphi 0, %s22
    %s44 = sphi 0, %s46
    %s47 = sphi 0, %s44
    %s48 = sphi 0, %s47
    %s64 = sphi 0, %s48
    %s70 = sphi 0, %s72
    %s73 = sphi 0, %s70
    %s74 = sphi 0, %s73
    %s90 = sphi 0, %s74
  $region4: #{jambu_forward.31} parent=0 // loop_header_branch
    %11 = sbr.rel (%p9) target = $region8
  $region5: #{jambu_forward.31} parent=0 // loop_body
    %s13 = ssub.s32 %s8, 1
    %s14 = ssub.s32 %s8, 2
    %s15 = sadd.s32 %s8, 1
    %s16 = ssub.s32 %s8, %s15
    %p17 = scmp.eq.s32.totalorder %s16, 0
    %s19 = sadd.s32 %s18, 1
    %s20 = scalar_select %p17, %s18, %s19
    %p23 = pneg %p17
    %p24 = scmp.eq.s32.totalorder %s8, 1
    %p25 = por %p23, %p24
    %p26 = scmp.ne.s32.totalorder %s18, %s21
    %p27 = scmp.eq.s32.totalorder %s8, 0
    %p28 = por %p26, %p27
    %p29 = scmp.ne.s32.totalorder %s18, %s21
    %p30 = scmp.eq.s32.totalorder %s13, 1
    %p31 = por %p29, %p30
    %p32 = scmp.ne.s32.totalorder %s21, %s22
    %p33 = scmp.eq.s32.totalorder %s13, 0
    %p34 = por %p32, %p33
    %p35 = scmp.ne.s32.totalorder %s21, %s22
    %p36 = scmp.eq.s32.totalorder %s14, 1
    %p37 = por %p35, %p36
    %p39 = scmp.ne.s32.totalorder %s22, %s38
    %p40 = scmp.eq.s32.totalorder %s14, 0
    %p41 = por %p39, %p40
    %s42 = ssub.s32 %s8, %s15
    %p43 = scmp.eq.s32.totalorder %s42, 0
    %s45 = sadd.s32 %s44, 1
    %s46 = scalar_select %p43, %s44, %s45
    %p49 = pneg %p43
    %p50 = scmp.eq.s32.totalorder %s8, 1
    %p51 = por %p49, %p50
    %p52 = scmp.ne.s32.totalorder %s44, %s47
    %p53 = scmp.eq.s32.totalorder %s8, 0
    %p54 = por %p52, %p53
    %p55 = scmp.ne.s32.totalorder %s44, %s47
    %p56 = scmp.eq.s32.totalorder %s13, 1
    %p57 = por %p55, %p56
    %p58 = scmp.ne.s32.totalorder %s47, %s48
    %p59 = scmp.eq.s32.totalorder %s13, 0
    %p60 = por %p58, %p59
    %p61 = scmp.ne.s32.totalorder %s47, %s48
    %p62 = scmp.eq.s32.totalorder %s14, 1
    %p63 = por %p61, %p62
    %p65 = scmp.ne.s32.totalorder %s48, %s64
    %p66 = scmp.eq.s32.totalorder %s14, 0
    %p67 = por %p65, %p66
    %s68 = ssub.s32 %s8, %s15
    %p69 = scmp.eq.s32.totalorder %s68, 0
    %s71 = sadd.s32 %s70, 1
    %s72 = scalar_select %p69, %s70, %s71
    %p75 = pneg %p69
    %p76 = scmp.eq.s32.totalorder %s8, 1
    %p77 = por %p75, %p76
    %p78 = scmp.ne.s32.totalorder %s70, %s73
    %p79 = scmp.eq.s32.totalorder %s8, 0
    %p80 = por %p78, %p79
    %p81 = scmp.ne.s32.totalorder %s70, %s73
    %p82 = scmp.eq.s32.totalorder %s13, 1
    %p83 = por %p81, %p82
    %p84 = scmp.ne.s32.totalorder %s73, %s74
    %p85 = scmp.eq.s32.totalorder %s13, 0
    %p86 = por %p84, %p85
    %p87 = scmp.ne.s32.totalorder %s73, %s74
    %p88 = scmp.eq.s32.totalorder %s14, 1
    %p89 = por %p87, %p88
    %p91 = scmp.ne.s32.totalorder %s74, %s90
    %p92 = scmp.eq.s32.totalorder %s14, 0
    %p93 = por %p91, %p92
    %p94 = scmp.le.s32.totalorder 1, %s8
    %p95 = scmp.lt.s32.totalorder %s8, 3
    %p96 = pnand %p94, %p95
    %p97 = pneg %p96
    // Predicated region
    $region9: #{jambu_forward.31} parent=5 // pred_check
      _
    $region10: #{jambu_forward.31} parent=5 // pred_check_branch
      %99 = sbr.rel (%p96) target = $region12
    $region11: #{jambu_forward.31} parent=5 // pred_region
      %s100 = ssub.s32 %s8, 1
    $region12: #{jambu_forward.31} parent=5 // pred_fallthru
      _
    %p101 = scmp.lt.s32.totalorder %s8, 2
    // Predicated region
    $region13: #{jambu_forward.31} parent=5 // pred_check
      %p102 = pneg %p101
    $region14: #{jambu_forward.31} parent=5 // pred_check_branch
      %104 = sbr.rel (%p102) target = $region16
    $region15: #{jambu_forward.31} parent=5 // pred_region
      // Predicated region
      $region17: #{jambu_forward.31} parent=15 // pred_check
        %p105 = pneg %p28
      $region18: #{jambu_forward.31} parent=15 // pred_check_branch
        %107 = sbr.rel (%p105) target = $region20
      $region19: #{jambu_forward.31} parent=15 // pred_region
        %p108 = scmp.lt.s32.totalorder %s8, 1
        %s109 = scalar_select %p108, %s8, 1
        %s110 = smul.addr %s109, 8
        %s111 = scalar_lea.vmem %s0, %s110
      $region20: #{jambu_forward.31} parent=15 // pred_fallthru
        _
      // Predicated region
      $region21: #{jambu_forward.31} parent=15 // pred_check
        %p112 = pneg %p54
      $region22: #{jambu_forward.31} parent=15 // pred_check_branch
        %114 = sbr.rel (%p112) target = $region24
      $region23: #{jambu_forward.31} parent=15 // pred_region
        %p115 = scmp.lt.s32.totalorder %s8, 1
        %s116 = scalar_select %p115, %s8, 1
        %s117 = scalar_lea.vmem %s1, %s116
      $region24: #{jambu_forward.31} parent=15 // pred_fallthru
        _
    $region16: #{jambu_forward.31} parent=5 // pred_fallthru
      _
    %p118 = scmp.le.s32.totalorder 1, %s8
    %p119 = scmp.lt.s32.totalorder %s8, 3
    %p120 = pnand %p118, %p119
    %p121 = pneg %p120
    // Predicated region
    $region25: #{jambu_forward.31} parent=5 // pred_check
      _
    $region26: #{jambu_forward.31} parent=5 // pred_check_branch
      %123 = sbr.rel (%p120) target = $region28
    $region27: #{jambu_forward.31} parent=5 // pred_region
      %s124 = ssub.s32 %s8, 1
      %p125 = scmp.lt.s32.totalorder %s13, 1
      %s126 = scalar_select %p125, %s13, 1
      %s127 = smul.addr %s126, 8
      %s128 = scalar_lea.vmem %s0, %s127
      %p129 = pneg %p34
      %p130 = pneg %p31
      %p131 = scmp.lt.s32.totalorder %s13, 1
      %s132 = scalar_select %p131, %s13, 1
      %s133 = scalar_lea.vmem %s1, %s132
      %p134 = pneg %p60
      %p135 = pneg %p57
      %p136 = pneg %p86
      %p137 = pneg %p83
      %p138 = scmp.lt.s32.totalorder %s13, 1
      %s139 = scalar_select %p138, %s13, 1
      %s140 = smul.addr %s139, 8
      %s141 = scalar_lea.vmem %s2, %s140
      %p142 = scmp.lt.s32.totalorder %s13, 1
      %s143 = scalar_select %p142, %s13, 1
      %s144 = smul.addr %s143, 8
      %s145 = scalar_lea.vmem %s0, %s144
      %p146 = scmp.lt.s32.totalorder %s13, 1
      %s147 = scalar_select %p146, %s13, 1
      %s148 = scalar_lea.vmem %s1, %s147
      %p149 = scmp.lt.s32.totalorder %s13, 1
      %s150 = scalar_select %p149, %s13, 1
      %s151 = smul.addr %s150, 8
      %s152 = scalar_lea.vmem %s2, %s151
      %v153 = vld [vmem:[%s145] sm:$0xff]
      %v154 = vld [vmem:[%s148] sm:$0x1]
      %v155 = vmul.f32 %v153, 0.35355338
      %157 = vrot.lane.b32.xlu0 %v153, 96
      %v158 = vpop.permute.xlu0 %157
      %vm159 = vcmask 64512
      %v161 = vsel %vm159, %v155, 0
      %v163 = vsel %vm159, %v158, 0
      %165 = vmatprep.subr.mxu0 0.0
      %166 = vmatpush1.xpose.msra.mxu0 %v163
      %167 = vmatprep.subr.mxu0 0.0
      %168 = vmatpush1.xpose.msra.mxu0 0.0
      %169 = vmatprep.subr.mxu0 0.0
      %170 = vmatpush1.xpose.msra.mxu0 0.0
      %171 = vmatprep.subr.mxu0 0.0
      %172 = vmatpush1.xpose.msra.mxu0 0.0
      %173 = vmatprep.subr.mxu0 0.0
      %174 = vmatpush1.xpose.msra.mxu0 0.0
      %175 = vmatprep.subr.mxu0 0.0
      %176 = vmatpush1.xpose.msra.mxu0 0.0
      %177 = vmatprep.subr.mxu0 0.0
      %178 = vmatpush1.xpose.msra.mxu0 0.0
      %179 = vmatprep.subr.mxu0 0.0
      %180 = vmatpush1.xpose.msra.mxu0 0.0
      %181 = vmatprep.subr.mxu0 0.0
      %182 = vmatpush1.xpose.msra.mxu0 0.0
      %183 = vmatprep.subr.mxu0 0.0
      %184 = vmatpush1.xpose.msra.mxu0 0.0
      %185 = vmatprep.subr.mxu0 0.0
      %186 = vmatpush1.xpose.msra.mxu0 0.0
      %187 = vmatprep.subr.mxu0 0.0
      %188 = vmatpush1.xpose.msra.mxu0 0.0
      %189 = vmatprep.subr.mxu0 0.0
      %190 = vmatpush1.xpose.msra.mxu0 0.0
      %191 = vmatprep.subr.mxu0 0.0
      %192 = vmatpush1.xpose.msra.mxu0 0.0
      %193 = vmatprep.subr.mxu0 0.0
      %194 = vmatpush1.xpose.msra.mxu0 0.0
      %195 = vmatprep.subr.mxu0 0.0
      %196 = vmatpush1.xpose.msra.mxu0 0.0
      %197 = vmatprep.subr.mxu0 0.0
      %198 = vmatpush1.xpose.msra.mxu0 0.0
      %199 = vmatprep.subr.mxu0 0.0
      %200 = vmatpush1.xpose.msra.mxu0 0.0
      %201 = vmatprep.subr.mxu0 0.0
      %202 = vmatpush1.xpose.msra.mxu0 0.0
      %203 = vmatprep.subr.mxu0 0.0
      %204 = vmatpush1.xpose.msra.mxu0 0.0
      %205 = vmatprep.subr.mxu0 0.0
      %206 = vmatpush1.xpose.msra.mxu0 0.0
      %207 = vmatprep.subr.mxu0 0.0
      %208 = vmatpush1.xpose.msra.mxu0 0.0
      %209 = vmatprep.subr.mxu0 0.0
      %210 = vmatpush1.xpose.msra.mxu0 0.0
      %211 = vmatprep.subr.mxu0 0.0
      %212 = vmatpush1.xpose.msra.mxu0 0.0
      %213 = vmatprep.subr.mxu0 0.0
      %214 = vmatpush1.xpose.msra.mxu0 0.0
      %215 = vmatprep.subr.mxu0 0.0
      %216 = vmatpush1.xpose.msra.mxu0 0.0
      %217 = vmatprep.subr.mxu0 0.0
      %218 = vmatpush1.xpose.msra.mxu0 0.0
      %219 = vmatprep.subr.mxu0 0.0
      %220 = vmatpush1.xpose.msra.mxu0 0.0
      %221 = vmatprep.subr.mxu0 0.0
      %222 = vmatpush1.xpose.msra.mxu0 0.0
      %223 = vmatprep.subr.mxu0 0.0
      %224 = vmatpush1.xpose.msra.mxu0 0.0
      %225 = vmatprep.subr.mxu0 0.0
      %226 = vmatpush1.xpose.msra.mxu0 0.0
      %227 = vmatprep.subr.mxu0 0.0
      %228 = vmatpush1.xpose.msra.mxu0 0.0
      %229 = vmatprep.mubr.f32.mxu0 0.0
      %230 = vmatmul.mubr.f32.gmra.mrb[0].mxu0 %v161
      %v231 = vpop.f32.mrb[0].mxu0
      %v232 = vadd.f32 0.0, %v231
      %v233 = vpop.f32.mrb[0].mxu0
      %234 = vdwg.mxu0
      %vm235 = vcmp.eq.s32.totalorder %v154, 0
      %v236 = vsel %vm235, 1, 0
      %v237 = vlaneseq
      %v238 = vshrl.u32 %v237, 7
      %v239 = vsub.s32 0, %v238
      %v240 = vrot.slane %v236, %v239
      %vm241 = vcmp.eq.s32.totalorder %v240, 1
      %v242 = vsel %vm241, -1e+09, %v232
      %v243 = vsel %vm159, %v242, -inf
      %244 = vmax.xlane.f32.xlu0 %v243
      %v245 = vpop.xlane.xlu0 %244
      %v246 = vsub.f32 %v242, %v245
      %v247 = vmul.f32 %v246, 1.442695
      %v248 = vpow.pop %v247
      %v249 = vsel %vm159, %v248, 0.0
      %250 = vadd.xlane.f32.xlu0 %v249
      %v251 = vpop.xlane.xlu0 %250
      %v252 = vrcp.pop %v251
      %v253 = vmul.f32 %v248, %v252
      %254 = vrot.lane.b32.xlu0 %v153, 64
      %v255 = vpop.permute.xlu0 %254
      %v258 = vsel %vm159, %v253, 0
      %260 = vmatprep.subr.mxu0 0.0
      %261 = vmatpush1.msra.mxu0 %v255
      %262 = vmatprep.subr.mxu0 0.0
      %263 = vmatpush1.msra.mxu0 0.0
      %264 = vmatprep.subr.mxu0 0.0
      %265 = vmatpush1.msra.mxu0 0.0
      %266 = vmatprep.subr.mxu0 0.0
      %267 = vmatpush1.msra.mxu0 0.0
      %268 = vmatprep.subr.mxu0 0.0
      %269 = vmatpush1.msra.mxu0 0.0
      %270 = vmatprep.subr.mxu0 0.0
      %271 = vmatpush1.msra.mxu0 0.0
      %272 = vmatprep.subr.mxu0 0.0
      %273 = vmatpush1.msra.mxu0 0.0
      %274 = vmatprep.subr.mxu0 0.0
      %275 = vmatpush1.msra.mxu0 0.0
      %276 = vmatprep.subr.mxu0 0.0
      %277 = vmatpush1.msra.mxu0 0.0
      %278 = vmatprep.subr.mxu0 0.0
      %279 = vmatpush1.msra.mxu0 0.0
      %280 = vmatprep.subr.mxu0 0.0
      %281 = vmatpush1.msra.mxu0 0.0
      %282 = vmatprep.subr.mxu0 0.0
      %283 = vmatpush1.msra.mxu0 0.0
      %284 = vmatprep.subr.mxu0 0.0
      %285 = vmatpush1.msra.mxu0 0.0
      %286 = vmatprep.subr.mxu0 0.0
      %287 = vmatpush1.msra.mxu0 0.0
      %288 = vmatprep.subr.mxu0 0.0
      %289 = vmatpush1.msra.mxu0 0.0
      %290 = vmatprep.subr.mxu0 0.0
      %291 = vmatpush1.msra.mxu0 0.0
      %292 = vmatprep.subr.mxu0 0.0
      %293 = vmatpush1.msra.mxu0 0.0
      %294 = vmatprep.subr.mxu0 0.0
      %295 = vmatpush1.msra.mxu0 0.0
      %296 = vmatprep.subr.mxu0 0.0
      %297 = vmatpush1.msra.mxu0 0.0
      %298 = vmatprep.subr.mxu0 0.0
      %299 = vmatpush1.msra.mxu0 0.0
      %300 = vmatprep.subr.mxu0 0.0
      %301 = vmatpush1.msra.mxu0 0.0
      %302 = vmatprep.subr.mxu0 0.0
      %303 = vmatpush1.msra.mxu0 0.0
      %304 = vmatprep.subr.mxu0 0.0
      %305 = vmatpush1.msra.mxu0 0.0
      %306 = vmatprep.subr.mxu0 0.0
      %307 = vmatpush1.msra.mxu0 0.0
      %308 = vmatprep.subr.mxu0 0.0
      %309 = vmatpush1.msra.mxu0 0.0
      %310 = vmatprep.subr.mxu0 0.0
      %311 = vmatpush1.msra.mxu0 0.0
      %312 = vmatprep.subr.mxu0 0.0
      %313 = vmatpush1.msra.mxu0 0.0
      %314 = vmatprep.subr.mxu0 0.0
      %315 = vmatpush1.msra.mxu0 0.0
      %316 = vmatprep.subr.mxu0 0.0
      %317 = vmatpush1.msra.mxu0 0.0
      %318 = vmatprep.subr.mxu0 0.0
      %319 = vmatpush1.msra.mxu0 0.0
      %320 = vmatprep.subr.mxu0 0.0
      %321 = vmatpush1.msra.mxu0 0.0
      %322 = vmatprep.subr.mxu0 0.0
      %323 = vmatpush1.msra.mxu0 0.0
      %324 = vmatprep.mubr.f32.mxu0 0.0
      %325 = vmatmul.mubr.f32.gmra.mrb[0].mxu0 %v258
      %v326 = vpop.f32.mrb[0].mxu0
      %v327 = vadd.f32 0.0, %v326
      %v328 = vpop.f32.mrb[0].mxu0
      %329 = vdwg.mxu0
      %330 = vrot.lane.b32.xlu0 %v155, 120
      %v331 = vpop.permute.xlu0 %330
      %332 = vrot.lane.b32.xlu0 %v153, 88
      %v333 = vpop.permute.xlu0 %332
      %v334 = vsel %vm159, %v331, 0
      %v336 = vsel %vm159, %v333, 0
      %338 = vmatprep.subr.mxu0 0.0
      %339 = vmatpush1.xpose.msra.mxu0 %v336
      %340 = vmatprep.subr.mxu0 0.0
      %341 = vmatpush1.xpose.msra.mxu0 0.0
      %342 = vmatprep.subr.mxu0 0.0
      %343 = vmatpush1.xpose.msra.mxu0 0.0
      %344 = vmatprep.subr.mxu0 0.0
      %345 = vmatpush1.xpose.msra.mxu0 0.0
      %346 = vmatprep.subr.mxu0 0.0
      %347 = vmatpush1.xpose.msra.mxu0 0.0
      %348 = vmatprep.subr.mxu0 0.0
      %349 = vmatpush1.xpose.msra.mxu0 0.0
      %350 = vmatprep.subr.mxu0 0.0
      %351 = vmatpush1.xpose.msra.mxu0 0.0
      %352 = vmatprep.subr.mxu0 0.0
      %353 = vmatpush1.xpose.msra.mxu0 0.0
      %354 = vmatprep.subr.mxu0 0.0
      %355 = vmatpush1.xpose.msra.mxu0 0.0
      %356 = vmatprep.subr.mxu0 0.0
      %357 = vmatpush1.xpose.msra.mxu0 0.0
      %358 = vmatprep.subr.mxu0 0.0
      %359 = vmatpush1.xpose.msra.mxu0 0.0
      %360 = vmatprep.subr.mxu0 0.0
      %361 = vmatpush1.xpose.msra.mxu0 0.0
      %362 = vmatprep.subr.mxu0 0.0
      %363 = vmatpush1.xpose.msra.mxu0 0.0
      %364 = vmatprep.subr.mxu0 0.0
      %365 = vmatpush1.xpose.msra.mxu0 0.0
      %366 = vmatprep.subr.mxu0 0.0
      %367 = vmatpush1.xpose.msra.mxu0 0.0
      %368 = vmatprep.subr.mxu0 0.0
      %369 = vmatpush1.xpose.msra.mxu0 0.0
      %370 = vmatprep.subr.mxu0 0.0
      %371 = vmatpush1.xpose.msra.mxu0 0.0
      %372 = vmatprep.subr.mxu0 0.0
      %373 = vmatpush1.xpose.msra.mxu0 0.0
      %374 = vmatprep.subr.mxu0 0.0
      %375 = vmatpush1.xpose.msra.mxu0 0.0
      %376 = vmatprep.subr.mxu0 0.0
      %377 = vmatpush1.xpose.msra.mxu0 0.0
      %378 = vmatprep.subr.mxu0 0.0
      %379 = vmatpush1.xpose.msra.mxu0 0.0
      %380 = vmatprep.subr.mxu0 0.0
      %381 = vmatpush1.xpose.msra.mxu0 0.0
      %382 = vmatprep.subr.mxu0 0.0
      %383 = vmatpush1.xpose.msra.mxu0 0.0
      %384 = vmatprep.subr.mxu0 0.0
      %385 = vmatpush1.xpose.msra.mxu0 0.0
      %386 = vmatprep.subr.mxu0 0.0
      %387 = vmatpush1.xpose.msra.mxu0 0.0
      %388 = vmatprep.subr.mxu0 0.0
      %389 = vmatpush1.xpose.msra.mxu0 0.0
      %390 = vmatprep.subr.mxu0 0.0
      %391 = vmatpush1.xpose.msra.mxu0 0.0
      %392 = vmatprep.subr.mxu0 0.0
      %393 = vmatpush1.xpose.msra.mxu0 0.0
      %394 = vmatprep.subr.mxu0 0.0
      %395 = vmatpush1.xpose.msra.mxu0 0.0
      %396 = vmatprep.subr.mxu0 0.0
      %397 = vmatpush1.xpose.msra.mxu0 0.0
      %398 = vmatprep.subr.mxu0 0.0
      %399 = vmatpush1.xpose.msra.mxu0 0.0
      %400 = vmatprep.subr.mxu0 0.0
      %401 = vmatpush1.xpose.msra.mxu0 0.0
      %402 = vmatprep.mubr.f32.mxu0 0.0
      %403 = vmatmul.mubr.f32.gmra.mrb[0].mxu0 %v334
      %v404 = vpop.f32.mrb[0].mxu0
      %v405 = vadd.f32 0.0, %v404
      %v406 = vpop.f32.mrb[0].mxu0
      %407 = vdwg.mxu0
      %v408 = vsel %vm241, -1e+09, %v405
      %v409 = vsel %vm159, %v408, -inf
      %410 = vmax.xlane.f32.xlu0 %v409
      %v411 = vpop.xlane.xlu0 %410
      %v412 = vsub.f32 %v408, %v411
      %v413 = vmul.f32 %v412, 1.442695
      %v414 = vpow.pop %v413
      %v415 = vsel %vm159, %v414, 0.0
      %416 = vadd.xlane.f32.xlu0 %v415
      %v417 = vpop.xlane.xlu0 %416
      %v418 = vrcp.pop %v417
      %v419 = vmul.f32 %v414, %v418
      %420 = vrot.lane.b32.xlu0 %v153, 56
      %v421 = vpop.permute.xlu0 %420
      %v424 = vsel %vm159, %v419, 0
      %426 = vmatprep.subr.mxu0 0.0
      %427 = vmatpush1.msra.mxu0 %v421
      %428 = vmatprep.subr.mxu0 0.0
      %429 = vmatpush1.msra.mxu0 0.0
      %430 = vmatprep.subr.mxu0 0.0
      %431 = vmatpush1.msra.mxu0 0.0
      %432 = vmatprep.subr.mxu0 0.0
      %433 = vmatpush1.msra.mxu0 0.0
      %434 = vmatprep.subr.mxu0 0.0
      %435 = vmatpush1.msra.mxu0 0.0
      %436 = vmatprep.subr.mxu0 0.0
      %437 = vmatpush1.msra.mxu0 0.0
      %438 = vmatprep.subr.mxu0 0.0
      %439 = vmatpush1.msra.mxu0 0.0
      %440 = vmatprep.subr.mxu0 0.0
      %441 = vmatpush1.msra.mxu0 0.0
      %442 = vmatprep.subr.mxu0 0.0
      %443 = vmatpush1.msra.mxu0 0.0
      %444 = vmatprep.subr.mxu0 0.0
      %445 = vmatpush1.msra.mxu0 0.0
      %446 = vmatprep.subr.mxu0 0.0
      %447 = vmatpush1.msra.mxu0 0.0
      %448 = vmatprep.subr.mxu0 0.0
      %449 = vmatpush1.msra.mxu0 0.0
      %450 = vmatprep.subr.mxu0 0.0
      %451 = vmatpush1.msra.mxu0 0.0
      %452 = vmatprep.subr.mxu0 0.0
      %453 = vmatpush1.msra.mxu0 0.0
      %454 = vmatprep.subr.mxu0 0.0
      %455 = vmatpush1.msra.mxu0 0.0
      %456 = vmatprep.subr.mxu0 0.0
      %457 = vmatpush1.msra.mxu0 0.0
      %458 = vmatprep.subr.mxu0 0.0
      %459 = vmatpush1.msra.mxu0 0.0
      %460 = vmatprep.subr.mxu0 0.0
      %461 = vmatpush1.msra.mxu0 0.0
      %462 = vmatprep.subr.mxu0 0.0
      %463 = vmatpush1.msra.mxu0 0.0
      %464 = vmatprep.subr.mxu0 0.0
      %465 = vmatpush1.msra.mxu0 0.0
      %466 = vmatprep.subr.mxu0 0.0
      %467 = vmatpush1.msra.mxu0 0.0
      %468 = vmatprep.subr.mxu0 0.0
      %469 = vmatpush1.msra.mxu0 0.0
      %470 = vmatprep.subr.mxu0 0.0
      %471 = vmatpush1.msra.mxu0 0.0
      %472 = vmatprep.subr.mxu0 0.0
      %473 = vmatpush1.msra.mxu0 0.0
      %474 = vmatprep.subr.mxu0 0.0
      %475 = vmatpush1.msra.mxu0 0.0
      %476 = vmatprep.subr.mxu0 0.0
      %477 = vmatpush1.msra.mxu0 0.0
      %478 = vmatprep.subr.mxu0 0.0
      %479 = vmatpush1.msra.mxu0 0.0
      %480 = vmatprep.subr.mxu0 0.0
      %481 = vmatpush1.msra.mxu0 0.0
      %482 = vmatprep.subr.mxu0 0.0
      %483 = vmatpush1.msra.mxu0 0.0
      %484 = vmatprep.subr.mxu0 0.0
      %485 = vmatpush1.msra.mxu0 0.0
      %486 = vmatprep.subr.mxu0 0.0
      %487 = vmatpush1.msra.mxu0 0.0
      %488 = vmatprep.subr.mxu0 0.0
      %489 = vmatpush1.msra.mxu0 0.0
      %490 = vmatprep.mubr.f32.mxu0 0.0
      %491 = vmatmul.mubr.f32.gmra.mrb[0].mxu0 %v424
      %v492 = vpop.f32.mrb[0].mxu0
      %v493 = vadd.f32 0.0, %v492
      %v494 = vpop.f32.mrb[0].mxu0
      %495 = vdwg.mxu0
      %496 = vrot.lane.b32.xlu0 %v155, 112
      %v497 = vpop.permute.xlu0 %496
      %498 = vrot.lane.b32.xlu0 %v153, 80
      %v499 = vpop.permute.xlu0 %498
      %v500 = vsel %vm159, %v497, 0
      %v502 = vsel %vm159, %v499, 0
      %504 = vmatprep.subr.mxu0 0.0
      %505 = vmatpush1.xpose.msra.mxu0 %v502
      %506 = vmatprep.subr.mxu0 0.0
      %507 = vmatpush1.xpose.msra.mxu0 0.0
      %508 = vmatprep.subr.mxu0 0.0
      %509 = vmatpush1.xpose.msra.mxu0 0.0
      %510 = vmatprep.subr.mxu0 0.0
      %511 = vmatpush1.xpose.msra.mxu0 0.0
      %512 = vmatprep.subr.mxu0 0.0
      %513 = vmatpush1.xpose.msra.mxu0 0.0
      %514 = vmatprep.subr.mxu0 0.0
      %515 = vmatpush1.xpose.msra.mxu0 0.0
      %516 = vmatprep.subr.mxu0 0.0
      %517 = vmatpush1.xpose.msra.mxu0 0.0
      %518 = vmatprep.subr.mxu0 0.0
      %519 = vmatpush1.xpose.msra.mxu0 0.0
      %520 = vmatprep.subr.mxu0 0.0
      %521 = vmatpush1.xpose.msra.mxu0 0.0
      %522 = vmatprep.subr.mxu0 0.0
      %523 = vmatpush1.xpose.msra.mxu0 0.0
      %524 = vmatprep.subr.mxu0 0.0
      %525 = vmatpush1.xpose.msra.mxu0 0.0
      %526 = vmatprep.subr.mxu0 0.0
      %527 = vmatpush1.xpose.msra.mxu0 0.0
      %528 = vmatprep.subr.mxu0 0.0
      %529 = vmatpush1.xpose.msra.mxu0 0.0
      %530 = vmatprep.subr.mxu0 0.0
      %531 = vmatpush1.xpose.msra.mxu0 0.0
      %532 = vmatprep.subr.mxu0 0.0
      %533 = vmatpush1.xpose.msra.mxu0 0.0
      %534 = vmatprep.subr.mxu0 0.0
      %535 = vmatpush1.xpose.msra.mxu0 0.0
      %536 = vmatprep.subr.mxu0 0.0
      %537 = vmatpush1.xpose.msra.mxu0 0.0
      %538 = vmatprep.subr.mxu0 0.0
      %539 = vmatpush1.xpose.msra.mxu0 0.0
      %540 = vmatprep.subr.mxu0 0.0
      %541 = vmatpush1.xpose.msra.mxu0 0.0
      %542 = vmatprep.subr.mxu0 0.0
      %543 = vmatpush1.xpose.msra.mxu0 0.0
      %544 = vmatprep.subr.mxu0 0.0
      %545 = vmatpush1.xpose.msra.mxu0 0.0
      %546 = vmatprep.subr.mxu0 0.0
      %547 = vmatpush1.xpose.msra.mxu0 0.0
      %548 = vmatprep.subr.mxu0 0.0
      %549 = vmatpush1.xpose.msra.mxu0 0.0
      %550 = vmatprep.subr.mxu0 0.0
      %551 = vmatpush1.xpose.msra.mxu0 0.0
      %552 = vmatprep.subr.mxu0 0.0
      %553 = vmatpush1.xpose.msra.mxu0 0.0
      %554 = vmatprep.subr.mxu0 0.0
      %555 = vmatpush1.xpose.msra.mxu0 0.0
      %556 = vmatprep.subr.mxu0 0.0
      %557 = vmatpush1.xpose.msra.mxu0 0.0
      %558 = vmatprep.subr.mxu0 0.0
      %559 = vmatpush1.xpose.msra.mxu0 0.0
      %560 = vmatprep.subr.mxu0 0.0
      %561 = vmatpush1.xpose.msra.mxu0 0.0
      %562 = vmatprep.subr.mxu0 0.0
      %563 = vmatpush1.xpose.msra.mxu0 0.0
      %564 = vmatprep.subr.mxu0 0.0
      %565 = vmatpush1.xpose.msra.mxu0 0.0
      %566 = vmatprep.subr.mxu0 0.0
      %567 = vmatpush1.xpose.msra.mxu0 0.0
      %568 = vmatprep.mubr.f32.mxu0 0.0
      %569 = vmatmul.mubr.f32.gmra.mrb[0].mxu0 %v500
      %v570 = vpop.f32.mrb[0].mxu0
      %v571 = vadd.f32 0.0, %v570
      %v572 = vpop.f32.mrb[0].mxu0
      %573 = vdwg.mxu0
      %v574 = vsel %vm241, -1e+09, %v571
      %v575 = vsel %vm159, %v574, -inf
      %576 = vmax.xlane.f32.xlu0 %v575
      %v577 = vpop.xlane.xlu0 %576
      %v578 = vsub.f32 %v574, %v577
      %v579 = vmul.f32 %v578, 1.442695
      %v580 = vpow.pop %v579
      %v581 = vsel %vm159, %v580, 0.0
      %582 = vadd.xlane.f32.xlu0 %v581
      %v583 = vpop.xlane.xlu0 %582
      %v584 = vrcp.pop %v583
      %v585 = vmul.f32 %v580, %v584
      %586 = vrot.lane.b32.xlu0 %v153, 48
      %v587 = vpop.permute.xlu0 %586
      %v590 = vsel %vm159, %v585, 0
      %592 = vmatprep.subr.mxu0 0.0
      %593 = vmatpush1.msra.mxu0 %v587
      %594 = vmatprep.subr.mxu0 0.0
      %595 = vmatpush1.msra.mxu0 0.0
      %596 = vmatprep.subr.mxu0 0.0
      %597 = vmatpush1.msra.mxu0 0.0
      %598 = vmatprep.subr.mxu0 0.0
      %599 = vmatpush1.msra.mxu0 0.0
      %600 = vmatprep.subr.mxu0 0.0
      %601 = vmatpush1.msra.mxu0 0.0
      %602 = vmatprep.subr.mxu0 0.0
      %603 = vmatpush1.msra.mxu0 0.0
      %604 = vmatprep.subr.mxu0 0.0
      %605 = vmatpush1.msra.mxu0 0.0
      %606 = vmatprep.subr.mxu0 0.0
      %607 = vmatpush1.msra.mxu0 0.0
      %608 = vmatprep.subr.mxu0 0.0
      %609 = vmatpush1.msra.mxu0 0.0
      %610 = vmatprep.subr.mxu0 0.0
      %611 = vmatpush1.msra.mxu0 0.0
      %612 = vmatprep.subr.mxu0 0.0
      %613 = vmatpush1.msra.mxu0 0.0
      %614 = vmatprep.subr.mxu0 0.0
      %615 = vmatpush1.msra.mxu0 0.0
      %616 = vmatprep.subr.mxu0 0.0
      %617 = vmatpush1.msra.mxu0 0.0
      %618 = vmatprep.subr.mxu0 0.0
      %619 = vmatpush1.msra.mxu0 0.0
      %620 = vmatprep.subr.mxu0 0.0
      %621 = vmatpush1.msra.mxu0 0.0
      %622 = vmatprep.subr.mxu0 0.0
      %623 = vmatpush1.msra.mxu0 0.0
      %624 = vmatprep.subr.mxu0 0.0
      %625 = vmatpush1.msra.mxu0 0.0
      %626 = vmatprep.subr.mxu0 0.0
      %627 = vmatpush1.msra.mxu0 0.0
      %628 = vmatprep.subr.mxu0 0.0
      %629 = vmatpush1.msra.mxu0 0.0
      %630 = vmatprep.subr.mxu0 0.0
      %631 = vmatpush1.msra.mxu0 0.0
      %632 = vmatprep.subr.mxu0 0.0
      %633 = vmatpush1.msra.mxu0 0.0
      %634 = vmatprep.subr.mxu0 0.0
      %635 = vmatpush1.msra.mxu0 0.0
      %636 = vmatprep.subr.mxu0 0.0
      %637 = vmatpush1.msra.mxu0 0.0
      %638 = vmatprep.subr.mxu0 0.0
      %639 = vmatpush1.msra.mxu0 0.0
      %640 = vmatprep.subr.mxu0 0.0
      %641 = vmatpush1.msra.mxu0 0.0
      %642 = vmatprep.subr.mxu0 0.0
      %643 = vmatpush1.msra.mxu0 0.0
      %644 = vmatprep.subr.mxu0 0.0
      %645 = vmatpush1.msra.mxu0 0.0
      %646 = vmatprep.subr.mxu0 0.0
      %647 = vmatpush1.msra.mxu0 0.0
      %648 = vmatprep.subr.mxu0 0.0
      %649 = vmatpush1.msra.mxu0 0.0
      %650 = vmatprep.subr.mxu0 0.0
      %651 = vmatpush1.msra.mxu0 0.0
      %652 = vmatprep.subr.mxu0 0.0
      %653 = vmatpush1.msra.mxu0 0.0
      %654 = vmatprep.subr.mxu0 0.0
      %655 = vmatpush1.msra.mxu0 0.0
      %656 = vmatprep.mubr.f32.mxu0 0.0
      %657 = vmatmul.mubr.f32.gmra.mrb[0].mxu0 %v590
      %v658 = vpop.f32.mrb[0].mxu0
      %v659 = vadd.f32 0.0, %v658
      %v660 = vpop.f32.mrb[0].mxu0
      %661 = vdwg.mxu0
      %662 = vrot.lane.b32.xlu0 %v155, 104
      %v663 = vpop.permute.xlu0 %662
      %664 = vrot.lane.b32.xlu0 %v153, 72
      %v665 = vpop.permute.xlu0 %664
      %v666 = vsel %vm159, %v663, 0
      %v668 = vsel %vm159, %v665, 0
      %670 = vmatprep.subr.mxu0 0.0
      %671 = vmatpush1.xpose.msra.mxu0 %v668
      %672 = vmatprep.subr.mxu0 0.0
      %673 = vmatpush1.xpose.msra.mxu0 0.0
      %674 = vmatprep.subr.mxu0 0.0
      %675 = vmatpush1.xpose.msra.mxu0 0.0
      %676 = vmatprep.subr.mxu0 0.0
      %677 = vmatpush1.xpose.msra.mxu0 0.0
      %678 = vmatprep.subr.mxu0 0.0
      %679 = vmatpush1.xpose.msra.mxu0 0.0
      %680 = vmatprep.subr.mxu0 0.0
      %681 = vmatpush1.xpose.msra.mxu0 0.0
      %682 = vmatprep.subr.mxu0 0.0
      %683 = vmatpush1.xpose.msra.mxu0 0.0
      %684 = vmatprep.subr.mxu0 0.0
      %685 = vmatpush1.xpose.msra.mxu0 0.0
      %686 = vmatprep.subr.mxu0 0.0
      %687 = vmatpush1.xpose.msra.mxu0 0.0
      %688 = vmatprep.subr.mxu0 0.0
      %689 = vmatpush1.xpose.msra.mxu0 0.0
      %690 = vmatprep.subr.mxu0 0.0
      %691 = vmatpush1.xpose.msra.mxu0 0.0
      %692 = vmatprep.subr.mxu0 0.0
      %693 = vmatpush1.xpose.msra.mxu0 0.0
      %694 = vmatprep.subr.mxu0 0.0
      %695 = vmatpush1.xpose.msra.mxu0 0.0
      %696 = vmatprep.subr.mxu0 0.0
      %697 = vmatpush1.xpose.msra.mxu0 0.0
      %698 = vmatprep.subr.mxu0 0.0
      %699 = vmatpush1.xpose.msra.mxu0 0.0
      %700 = vmatprep.subr.mxu0 0.0
      %701 = vmatpush1.xpose.msra.mxu0 0.0
      %702 = vmatprep.subr.mxu0 0.0
      %703 = vmatpush1.xpose.msra.mxu0 0.0
      %704 = vmatprep.subr.mxu0 0.0
      %705 = vmatpush1.xpose.msra.mxu0 0.0
      %706 = vmatprep.subr.mxu0 0.0
      %707 = vmatpush1.xpose.msra.mxu0 0.0
      %708 = vmatprep.subr.mxu0 0.0
      %709 = vmatpush1.xpose.msra.mxu0 0.0
      %710 = vmatprep.subr.mxu0 0.0
      %711 = vmatpush1.xpose.msra.mxu0 0.0
      %712 = vmatprep.subr.mxu0 0.0
      %713 = vmatpush1.xpose.msra.mxu0 0.0
      %714 = vmatprep.subr.mxu0 0.0
      %715 = vmatpush1.xpose.msra.mxu0 0.0
      %716 = vmatprep.subr.mxu0 0.0
      %717 = vmatpush1.xpose.msra.mxu0 0.0
      %718 = vmatprep.subr.mxu0 0.0
      %719 = vmatpush1.xpose.msra.mxu0 0.0
      %720 = vmatprep.subr.mxu0 0.0
      %721 = vmatpush1.xpose.msra.mxu0 0.0
      %722 = vmatprep.subr.mxu0 0.0
      %723 = vmatpush1.xpose.msra.mxu0 0.0
      %724 = vmatprep.subr.mxu0 0.0
      %725 = vmatpush1.xpose.msra.mxu0 0.0
      %726 = vmatprep.subr.mxu0 0.0
      %727 = vmatpush1.xpose.msra.mxu0 0.0
      %728 = vmatprep.subr.mxu0 0.0
      %729 = vmatpush1.xpose.msra.mxu0 0.0
      %730 = vmatprep.subr.mxu0 0.0
      %731 = vmatpush1.xpose.msra.mxu0 0.0
      %732 = vmatprep.subr.mxu0 0.0
      %733 = vmatpush1.xpose.msra.mxu0 0.0
      %734 = vmatprep.mubr.f32.mxu0 0.0
      %735 = vmatmul.mubr.f32.gmra.mrb[0].mxu0 %v666
      %v736 = vpop.f32.mrb[0].mxu0
      %v737 = vadd.f32 0.0, %v736
      %v738 = vpop.f32.mrb[0].mxu0
      %739 = vdwg.mxu0
      %v740 = vsel %vm241, -1e+09, %v737
      %v741 = vsel %vm159, %v740, -inf
      %742 = vmax.xlane.f32.xlu0 %v741
      %v743 = vpop.xlane.xlu0 %742
      %v744 = vsub.f32 %v740, %v743
      %v745 = vmul.f32 %v744, 1.442695
      %v746 = vpow.pop %v745
      %v747 = vsel %vm159, %v746, 0.0
      %748 = vadd.xlane.f32.xlu0 %v747
      %v749 = vpop.xlane.xlu0 %748
      %v750 = vrcp.pop %v749
      %v751 = vmul.f32 %v746, %v750
      %752 = vrot.lane.b32.xlu0 %v153, 40
      %v753 = vpop.permute.xlu0 %752
      %v756 = vsel %vm159, %v751, 0
      %758 = vmatprep.subr.mxu0 0.0
      %759 = vmatpush1.msra.mxu0 %v753
      %760 = vmatprep.subr.mxu0 0.0
      %761 = vmatpush1.msra.mxu0 0.0
      %762 = vmatprep.subr.mxu0 0.0
      %763 = vmatpush1.msra.mxu0 0.0
      %764 = vmatprep.subr.mxu0 0.0
      %765 = vmatpush1.msra.mxu0 0.0
      %766 = vmatprep.subr.mxu0 0.0
      %767 = vmatpush1.msra.mxu0 0.0
      %768 = vmatprep.subr.mxu0 0.0
      %769 = vmatpush1.msra.mxu0 0.0
      %770 = vmatprep.subr.mxu0 0.0
      %771 = vmatpush1.msra.mxu0 0.0
      %772 = vmatprep.subr.mxu0 0.0
      %773 = vmatpush1.msra.mxu0 0.0
      %774 = vmatprep.subr.mxu0 0.0
      %775 = vmatpush1.msra.mxu0 0.0
      %776 = vmatprep.subr.mxu0 0.0
      %777 = vmatpush1.msra.mxu0 0.0
      %778 = vmatprep.subr.mxu0 0.0
      %779 = vmatpush1.msra.mxu0 0.0
      %780 = vmatprep.subr.mxu0 0.0
      %781 = vmatpush1.msra.mxu0 0.0
      %782 = vmatprep.subr.mxu0 0.0
      %783 = vmatpush1.msra.mxu0 0.0
      %784 = vmatprep.subr.mxu0 0.0
      %785 = vmatpush1.msra.mxu0 0.0
      %786 = vmatprep.subr.mxu0 0.0
      %787 = vmatpush1.msra.mxu0 0.0
      %788 = vmatprep.subr.mxu0 0.0
      %789 = vmatpush1.msra.mxu0 0.0
      %790 = vmatprep.subr.mxu0 0.0
      %791 = vmatpush1.msra.mxu0 0.0
      %792 = vmatprep.subr.mxu0 0.0
      %793 = vmatpush1.msra.mxu0 0.0
      %794 = vmatprep.subr.mxu0 0.0
      %795 = vmatpush1.msra.mxu0 0.0
      %796 = vmatprep.subr.mxu0 0.0
      %797 = vmatpush1.msra.mxu0 0.0
      %798 = vmatprep.subr.mxu0 0.0
      %799 = vmatpush1.msra.mxu0 0.0
      %800 = vmatprep.subr.mxu0 0.0
      %801 = vmatpush1.msra.mxu0 0.0
      %802 = vmatprep.subr.mxu0 0.0
      %803 = vmatpush1.msra.mxu0 0.0
      %804 = vmatprep.subr.mxu0 0.0
      %805 = vmatpush1.msra.mxu0 0.0
      %806 = vmatprep.subr.mxu0 0.0
      %807 = vmatpush1.msra.mxu0 0.0
      %808 = vmatprep.subr.mxu0 0.0
      %809 = vmatpush1.msra.mxu0 0.0
      %810 = vmatprep.subr.mxu0 0.0
      %811 = vmatpush1.msra.mxu0 0.0
      %812 = vmatprep.subr.mxu0 0.0
      %813 = vmatpush1.msra.mxu0 0.0
      %814 = vmatprep.subr.mxu0 0.0
      %815 = vmatpush1.msra.mxu0 0.0
      %816 = vmatprep.subr.mxu0 0.0
      %817 = vmatpush1.msra.mxu0 0.0
      %818 = vmatprep.subr.mxu0 0.0
      %819 = vmatpush1.msra.mxu0 0.0
      %820 = vmatprep.subr.mxu0 0.0
      %821 = vmatpush1.msra.mxu0 0.0
      %822 = vmatprep.mubr.f32.mxu0 0.0
      %823 = vmatmul.mubr.f32.gmra.mrb[0].mxu0 %v756
      %v824 = vpop.f32.mrb[0].mxu0
      %v825 = vadd.f32 0.0, %v824
      %v826 = vpop.f32.mrb[0].mxu0
      %827 = vdwg.mxu0
      %829 = vrot.lane.b32.xlu0 %v493, 8
      %v830 = vpop.permute.xlu0 %829
      %833 = vrot.lane.b32.xlu0 %v659, 16
      %v834 = vpop.permute.xlu0 %833
      %837 = vrot.lane.b32.xlu0 %v825, 24
      %v838 = vpop.permute.xlu0 %837
      %v840 = vsel %vm159, %v327, %v830
      %vm841 = vcmask 130048
      %v842 = vsel %vm841, %v840, %v834
      %vm843 = vcmask 195584
      %v844 = vsel %vm843, %v842, %v838
      %vm845 = vcmask 261120
      %846 = vst.msk [vmem:[%s152] sm:$0xff] %vm845, %v844
      %p847 = scmp.lt.s32.totalorder %s13, 1
      %s848 = scalar_select %p847, %s13, 1
      %s849 = smul.addr %s848, 8
      %s850 = scalar_lea.vmem %s2, %s849
      // Predicated region
      $region29: #{jambu_forward.31} parent=27 // pred_check
        %p851 = pneg %p83
      $region30: #{jambu_forward.31} parent=27 // pred_check_branch
        %853 = sbr.rel (%p851) target = $region32
      $region31: #{jambu_forward.31} parent=27 // pred_region
        _
      $region32: #{jambu_forward.31} parent=27 // pred_fallthru
        _
    $region28: #{jambu_forward.31} parent=5 // pred_fallthru
      _
    %p854 = scmp.le.s32.totalorder 2, %s8
    // Predicated region
    $region33: #{jambu_forward.31} parent=5 // pred_check
      %p855 = pneg %p854
    $region34: #{jambu_forward.31} parent=5 // pred_check_branch
      %857 = sbr.rel (%p855) target = $region36
    $region35: #{jambu_forward.31} parent=5 // pred_region
      %s858 = ssub.s32 %s8, 2
      // Predicated region
      $region37: #{jambu_forward.31} parent=35 // pred_check
        %p859 = pneg %p89
      $region38: #{jambu_forward.31} parent=35 // pred_check_branch
        %861 = sbr.rel (%p859) target = $region40
      $region39: #{jambu_forward.31} parent=35 // pred_region
        %p862 = scmp.lt.s32.totalorder %s14, 1
        %s863 = scalar_select %p862, %s14, 1
        %s864 = smul.addr %s863, 8
        %s865 = scalar_lea.vmem %s2, %s864
      $region40: #{jambu_forward.31} parent=35 // pred_fallthru
        _
    $region36: #{jambu_forward.31} parent=5 // pred_fallthru
      _
  $region6: #{jambu_forward.31} parent=0 // loop_footer
    %s12 = sadd.s32 1, %s8
  $region7: #{jambu_forward.31} parent=0 // loop_footer_branch
    %7 = sbr.rel target = $region3
  $region8: #{jambu_forward.31} parent=0 // loop_exit
    _

// kernel: jambu_forward.32
$region0: #{jambu_forward.32}
  #allocation0 [shape = 'u32[]', space=smem, size = 0x4, offset = 0x4, fixed_abs, tag = 'smem constant byte address 0x4 - core index']
  #allocation1 [shape = 'u32[144,128]{1,0:T(1,128)}', space=vmem, size = 0x12000, scoped, tag = 'internal scratch']
  #allocation2 [shape = 'f32[16,32]{1,0:T(8,128)}', space=vmem, size = 0x2000, scoped, tag = 'scratch operand']
  %s0 = inlined_call_operand.vmem [shape: f32[16,32], index: 0, kind: input, shape index: {}]
  %s1 = inlined_call_operand.vmem [shape: f32[32,32], index: 1, kind: input, shape index: {}]
  %s2 = inlined_call_operand.vmem [shape: f32[1,32], index: 2, kind: input, shape index: {}]
  %s3 = inlined_call_operand.vmem [shape: f32[16,32], index: 3, kind: input, shape index: {}]
  %s4 = inlined_call_operand.vmem [shape: f32[16,32], index: 4, kind: output, shape index: {}]
  %s5 = sld [smem:[#allocation0]]
  $region34: #{jambu_forward.32} parent=0
    _
  %s7 = ssub.s32 1, %s5
  %s8 = scalar_select 0, %s7, %s5
  // Predicated region
  $region2: #{jambu_forward.32} parent=0 // pred_check
    _
  $region3: #{jambu_forward.32} parent=0 // pred_check_branch
    %10 = sbr.rel (0) target = $region5
  $region4: #{jambu_forward.32} parent=0 // pred_region
    _
  $region5: #{jambu_forward.32} parent=0 // pred_fallthru
    _
  // Predicated region
  $region6: #{jambu_forward.32} parent=0 // pred_check
    _
  $region7: #{jambu_forward.32} parent=0 // pred_check_branch
    %12 = sbr.rel (0) target = $region9
  $region8: #{jambu_forward.32} parent=0 // pred_region
    _
  $region9: #{jambu_forward.32} parent=0 // pred_fallthru
    _
  // Predicated region
  $region10: #{jambu_forward.32} parent=0 // pred_check
    _
  $region11: #{jambu_forward.32} parent=0 // pred_check_branch
    %14 = sbr.rel (0) target = $region13
  $region12: #{jambu_forward.32} parent=0 // pred_region
    _
  $region13: #{jambu_forward.32} parent=0 // pred_fallthru
    _
  // Predicated region
  $region14: #{jambu_forward.32} parent=0 // pred_check
    _
  $region15: #{jambu_forward.32} parent=0 // pred_check_branch
    %16 = sbr.rel (0) target = $region17
  $region16: #{jambu_forward.32} parent=0 // pred_region
    _
  $region17: #{jambu_forward.32} parent=0 // pred_fallthru
    _
  %p17 = scmp.eq.s32.totalorder 0, 0
  // Predicated region
  $region18: #{jambu_forward.32} parent=0 // pred_check
    %p18 = pneg %p17
  $region19: #{jambu_forward.32} parent=0 // pred_check_branch
    %20 = sbr.rel (%p18) target = $region21
  $region20: #{jambu_forward.32} parent=0 // pred_region
    %vm21 = vcmask 261120
    %22 = vst.msk [vmem:[#allocation2] sm:$0xff] %vm21, 0.0
    %23 = vst.msk [vmem:[#allocation2 + $0x8] sm:$0xff] %vm21, 0.0
  $region21: #{jambu_forward.32} parent=0 // pred_fallthru
    _
  %v24 = vld [vmem:[#allocation2] sm:$0xff]
  %v25 = vld [vmem:[#allocation2 + $0x8] sm:$0xff]
  %v26 = vld [vmem:[%s0] sm:$0xff]
  %v27 = vld [vmem:[%s0 + $0x8] sm:$0xff]
  %v28 = vld [vmem:[%s1] sm:$0xff]
  %v29 = vld [vmem:[%s1 + $0x8] sm:$0xff]
  %v30 = vld [vmem:[%s1 + $0x10] sm:$0xff]
  %v31 = vld [vmem:[%s1 + $0x18] sm:$0xff]
  %vm32 = vcmask 261120
  %v34 = vsel %vm32, %v26, 0
  %v37 = vsel %vm32, %v27, 0
  %39 = vmatprep.subr.mxu0 0.0
  %40 = vmatpush1.msra.mxu0 %v28
  %41 = vmatprep.subr.mxu0 0.0
  %42 = vmatpush1.msra.mxu0 %v29
  %43 = vmatprep.subr.mxu0 0.0
  %44 = vmatpush1.msra.mxu0 %v30
  %45 = vmatprep.subr.mxu0 0.0
  %46 = vmatpush1.msra.mxu0 %v31
  %47 = vmatprep.subr.mxu0 0.0
  %48 = vmatpush1.msra.mxu0 0.0
  %49 = vmatprep.subr.mxu0 0.0
  %50 = vmatpush1.msra.mxu0 0.0
  %51 = vmatprep.subr.mxu0 0.0
  %52 = vmatpush1.msra.mxu0 0.0
  %53 = vmatprep.subr.mxu0 0.0
  %54 = vmatpush1.msra.mxu0 0.0
  %55 = vmatprep.subr.mxu0 0.0
  %56 = vmatpush1.msra.mxu0 0.0
  %57 = vmatprep.subr.mxu0 0.0
  %58 = vmatpush1.msra.mxu0 0.0
  %59 = vmatprep.subr.mxu0 0.0
  %60 = vmatpush1.msra.mxu0 0.0
  %61 = vmatprep.subr.mxu0 0.0
  %62 = vmatpush1.msra.mxu0 0.0
  %63 = vmatprep.subr.mxu0 0.0
  %64 = vmatpush1.msra.mxu0 0.0
  %65 = vmatprep.subr.mxu0 0.0
  %66 = vmatpush1.msra.mxu0 0.0
  %67 = vmatprep.subr.mxu0 0.0
  %68 = vmatpush1.msra.mxu0 0.0
  %69 = vmatprep.subr.mxu0 0.0
  %70 = vmatpush1.msra.mxu0 0.0
  %71 = vmatprep.subr.mxu0 0.0
  %72 = vmatpush1.msra.mxu0 0.0
  %73 = vmatprep.subr.mxu0 0.0
  %74 = vmatpush1.msra.mxu0 0.0
  %75 = vmatprep.subr.mxu0 0.0
  %76 = vmatpush1.msra.mxu0 0.0
  %77 = vmatprep.subr.mxu0 0.0
  %78 = vmatpush1.msra.mxu0 0.0
  %79 = vmatprep.subr.mxu0 0.0
  %80 = vmatpush1.msra.mxu0 0.0
  %81 = vmatprep.subr.mxu0 0.0
  %82 = vmatpush1.msra.mxu0 0.0
  %83 = vmatprep.subr.mxu0 0.0
  %84 = vmatpush1.msra.mxu0 0.0
  %85 = vmatprep.subr.mxu0 0.0
  %86 = vmatpush1.msra.mxu0 0.0
  %87 = vmatprep.subr.mxu0 0.0
  %88 = vmatpush1.msra.mxu0 0.0
  %89 = vmatprep.subr.mxu0 0.0
  %90 = vmatpush1.msra.mxu0 0.0
  %91 = vmatprep.subr.mxu0 0.0
  %92 = vmatpush1.msra.mxu0 0.0
  %93 = vmatprep.subr.mxu0 0.0
  %94 = vmatpush1.msra.mxu0 0.0
  %95 = vmatprep.subr.mxu0 0.0
  %96 = vmatpush1.msra.mxu0 0.0
  %97 = vmatprep.subr.mxu0 0.0
  %98 = vmatpush1.msra.mxu0 0.0
  %99 = vmatprep.subr.mxu0 0.0
  %100 = vmatpush1.msra.mxu0 0.0
  %101 = vmatprep.subr.mxu0 0.0
  %102 = vmatpush1.msra.mxu0 0.0
  %103 = vmatprep.mubr.f32.mxu0 0.0
  %104 = vmatmul.mubr.f32.gmra.mrb[0].mxu0 %v34
  %v105 = vpop.f32.mrb[0].mxu0
  %v106 = vadd.f32 0.0, %v105
  %v107 = vpop.f32.mrb[0].mxu0
  %108 = vmatprep.mubr.f32.mxu0 0.0
  %109 = vmatmul.mubr.f32.gmra.mrb[0].mxu0 %v37
  %v110 = vpop.f32.mrb[0].mxu0
  %v111 = vadd.f32 0.0, %v110
  %v112 = vpop.f32.mrb[0].mxu0
  %113 = vdwg.mxu0
  %v114 = vadd.f32 %v24, %v106
  %v115 = vadd.f32 %v25, %v111
  %116 = vst.msk [vmem:[#allocation2] sm:$0xff] %vm32, %v114
  %117 = vst.msk [vmem:[#allocation2 + $0x8] sm:$0xff] %vm32, %v115
  // Predicated region
  $region22: #{jambu_forward.32} parent=0 // pred_check
    %p118 = pneg %p17
  $region23: #{jambu_forward.32} parent=0 // pred_check_branch
    %120 = sbr.rel (%p118) target = $region25
  $region24: #{jambu_forward.32} parent=0 // pred_region
    %v121 = vld [vmem:[#allocation2] sm:$0xff]
    %v122 = vld [vmem:[#allocation2 + $0x8] sm:$0xff]
    %v123 = vld [vmem:[%s2] sm:$0x1]
    %v125 = vlaneseq
    %v126 = vshrl.u32 %v125, 7
    %v127 = vsub.s32 0, %v126
    %v128 = vrot.slane %v123, %v127
    %v130 = vadd.f32 %v121, %v128
    %v131 = vadd.f32 %v122, %v128
    %v132 = vld [vmem:[%s3] sm:$0xff]
    %v133 = vld [vmem:[%s3 + $0x8] sm:$0xff]
    %v134 = vadd.f32 %v130, %v132
    %v135 = vadd.f32 %v131, %v133
    %136 = vst.msk [vmem:[%s4] sm:$0xff] %vm32, %v134
    %137 = vst.msk [vmem:[%s4 + $0x8] sm:$0xff] %vm32, %v135
  $region25: #{jambu_forward.32} parent=0 // pred_fallthru
    _
  // Predicated region
  $region26: #{jambu_forward.32} parent=0 // pred_check
    _
  $region27: #{jambu_forward.32} parent=0 // pred_check_branch
    %139 = sbr.rel (0) target = $region29
  $region28: #{jambu_forward.32} parent=0 // pred_region
    _
  $region29: #{jambu_forward.32} parent=0 // pred_fallthru
    _
  // Predicated region
  $region30: #{jambu_forward.32} parent=0 // pred_check
    _
  $region31: #{jambu_forward.32} parent=0 // pred_check_branch
    %141 = sbr.rel (0) target = $region33
  $region32: #{jambu_forward.32} parent=0 // pred_region
    _
  $region33: #{jambu_forward.32} parent=0 // pred_fallthru
    _

// kernel: jambu_forward.33
$region0: #{jambu_forward.33}
  #allocation0 [shape = 'u32[]', space=smem, size = 0x4, offset = 0x4, fixed_abs, tag = 'smem constant byte address 0x4 - core index']
  #allocation1 [shape = 'u32[144,128]{1,0:T(1,128)}', space=vmem, size = 0x12000, scoped, tag = 'internal scratch']
  %s0 = inlined_call_operand.vmem [shape: f32[16,32], index: 0, kind: input, shape index: {}]
  %s1 = inlined_call_operand.vmem [shape: f32[1,32], index: 1, kind: input, shape index: {}]
  %s2 = inlined_call_operand.vmem [shape: f32[1,32], index: 2, kind: input, shape index: {}]
  %s3 = inlined_call_operand.vmem [shape: f32[32,64], index: 3, kind: input, shape index: {}]
  %s4 = inlined_call_operand.vmem [shape: f32[1,64], index: 4, kind: input, shape index: {}]
  %s5 = inlined_call_operand.vmem [shape: f32[16,64], index: 5, kind: output, shape index: {}]
  %s6 = sld [smem:[#allocation0]]
  $region30: #{jambu_forward.33} parent=0
    _
  %s8 = ssub.s32 1, %s6
  %s9 = scalar_select 0, %s8, %s6
  // Predicated region
  $region2: #{jambu_forward.33} parent=0 // pred_check
    _
  $region3: #{jambu_forward.33} parent=0 // pred_check_branch
    %11 = sbr.rel (0) target = $region5
  $region4: #{jambu_forward.33} parent=0 // pred_region
    _
  $region5: #{jambu_forward.33} parent=0 // pred_fallthru
    _
  // Predicated region
  $region6: #{jambu_forward.33} parent=0 // pred_check
    _
  $region7: #{jambu_forward.33} parent=0 // pred_check_branch
    %13 = sbr.rel (0) target = $region9
  $region8: #{jambu_forward.33} parent=0 // pred_region
    _
  $region9: #{jambu_forward.33} parent=0 // pred_fallthru
    _
  // Predicated region
  $region10: #{jambu_forward.33} parent=0 // pred_check
    _
  $region11: #{jambu_forward.33} parent=0 // pred_check_branch
    %15 = sbr.rel (0) target = $region13
  $region12: #{jambu_forward.33} parent=0 // pred_region
    _
  $region13: #{jambu_forward.33} parent=0 // pred_fallthru
    _
  // Predicated region
  $region14: #{jambu_forward.33} parent=0 // pred_check
    _
  $region15: #{jambu_forward.33} parent=0 // pred_check_branch
    %17 = sbr.rel (0) target = $region17
  $region16: #{jambu_forward.33} parent=0 // pred_region
    _
  $region17: #{jambu_forward.33} parent=0 // pred_fallthru
    _
  // Predicated region
  $region18: #{jambu_forward.33} parent=0 // pred_check
    _
  $region19: #{jambu_forward.33} parent=0 // pred_check_branch
    %19 = sbr.rel (0) target = $region21
  $region20: #{jambu_forward.33} parent=0 // pred_region
    _
  $region21: #{jambu_forward.33} parent=0 // pred_fallthru
    _
  %v20 = vld [vmem:[%s0] sm:$0xff]
  %v21 = vld [vmem:[%s0 + $0x8] sm:$0xff]
  %vm22 = vcmask 261120
  %v23 = vsel %vm22, %v20, 0.0
  %24 = vadd.xlane.f32.xlu0 %v23
  %v25 = vpop.xlane.xlu0 %24
  %v26 = vsel %vm22, %v21, 0.0
  %27 = vadd.xlane.f32.xlu0 %v26
  %v28 = vpop.xlane.xlu0 %27
  %v29 = vrcp.pop 32.0
  %v30 = vmul.f32 %v25, %v29
  %v31 = vmul.f32 %v28, %v29
  %v32 = vsub.f32 %v20, %v30
  %v33 = vsub.f32 %v21, %v31
  %v34 = vmul.f32 %v32, %v32
  %v35 = vmul.f32 %v33, %v33
  %v36 = vsel %vm22, %v34, 0.0
  %37 = vadd.xlane.f32.xlu0 %v36
  %v38 = vpop.xlane.xlu0 %37
  %v39 = vsel %vm22, %v35, 0.0
  %40 = vadd.xlane.f32.xlu0 %v39
  %v41 = vpop.xlane.xlu0 %40
  %v42 = vrcp.pop 31.0
  %v43 = vmul.f32 %v38, %v42
  %v44 = vmul.f32 %v41, %v42
  %v45 = vld [vmem:[%s1] sm:$0x1]
  %v47 = vlaneseq
  %v48 = vshrl.u32 %v47, 7
  %v49 = vsub.s32 0, %v48
  %v50 = vrot.slane %v45, %v49
  %v52 = vmul.f32 %v50, %v32
  %v53 = vmul.f32 %v50, %v33
  %v54 = vrsqrt.pop %v43
  %v55 = vmul.f32 %v43, %v54
  %vm56 = vcmp.eq.f32.partialorder %v43, inf
  %v57 = vsel %vm56, %v43, %v55
  %vm58 = vcmp.eq.f32.partialorder %v43, 0.0
  %v59 = vand.u32 %v43, 2147483648
  %v60 = vsel %vm58, %v59, %v57
  %v61 = vrsqrt.pop %v44
  %v62 = vmul.f32 %v44, %v61
  %vm63 = vcmp.eq.f32.partialorder %v44, inf
  %v64 = vsel %vm63, %v44, %v62
  %vm65 = vcmp.eq.f32.partialorder %v44, 0.0
  %v66 = vand.u32 %v44, 2147483648
  %v67 = vsel %vm65, %v66, %v64
  %v68 = vadd.f32 %v60, 1e-06
  %v69 = vadd.f32 %v67, 1e-06
  %v70 = vrcp.pop %v68
  %v71 = vmul.f32 %v52, %v70
  %v72 = vrcp.pop %v69
  %v73 = vmul.f32 %v53, %v72
  %v74 = vld [vmem:[%s2] sm:$0x1]
  %v76 = vlaneseq
  %v77 = vshrl.u32 %v76, 7
  %v78 = vsub.s32 0, %v77
  %v79 = vrot.slane %v74, %v78
  %v81 = vadd.f32 %v71, %v79
  %v82 = vadd.f32 %v73, %v79
  %v83 = vld [vmem:[%s3] sm:$0xff]
  %v84 = vld [vmem:[%s3 + $0x8] sm:$0xff]
  %v85 = vld [vmem:[%s3 + $0x10] sm:$0xff]
  %v86 = vld [vmem:[%s3 + $0x18] sm:$0xff]
  %v87 = vld [vmem:[%s4] sm:$0x1]
  %v89 = vlaneseq
  %v90 = vshrl.u32 %v89, 7
  %v91 = vsub.s32 0, %v90
  %v92 = vrot.slane %v87, %v91
  %v95 = vsel %vm22, %v81, 0
  %v98 = vsel %vm22, %v82, 0
  %100 = vmatprep.subr.mxu0 0.0
  %101 = vmatpush1.msra.mxu0 %v83
  %102 = vmatprep.subr.mxu0 0.0
  %103 = vmatpush1.msra.mxu0 %v84
  %104 = vmatprep.subr.mxu0 0.0
  %105 = vmatpush1.msra.mxu0 %v85
  %106 = vmatprep.subr.mxu0 0.0
  %107 = vmatpush1.msra.mxu0 %v86
  %108 = vmatprep.subr.mxu0 0.0
  %109 = vmatpush1.msra.mxu0 0.0
  %110 = vmatprep.subr.mxu0 0.0
  %111 = vmatpush1.msra.mxu0 0.0
  %112 = vmatprep.subr.mxu0 0.0
  %113 = vmatpush1.msra.mxu0 0.0
  %114 = vmatprep.subr.mxu0 0.0
  %115 = vmatpush1.msra.mxu0 0.0
  %116 = vmatprep.subr.mxu0 0.0
  %117 = vmatpush1.msra.mxu0 0.0
  %118 = vmatprep.subr.mxu0 0.0
  %119 = vmatpush1.msra.mxu0 0.0
  %120 = vmatprep.subr.mxu0 0.0
  %121 = vmatpush1.msra.mxu0 0.0
  %122 = vmatprep.subr.mxu0 0.0
  %123 = vmatpush1.msra.mxu0 0.0
  %124 = vmatprep.subr.mxu0 0.0
  %125 = vmatpush1.msra.mxu0 0.0
  %126 = vmatprep.subr.mxu0 0.0
  %127 = vmatpush1.msra.mxu0 0.0
  %128 = vmatprep.subr.mxu0 0.0
  %129 = vmatpush1.msra.mxu0 0.0
  %130 = vmatprep.subr.mxu0 0.0
  %131 = vmatpush1.msra.mxu0 0.0
  %132 = vmatprep.subr.mxu0 0.0
  %133 = vmatpush1.msra.mxu0 0.0
  %134 = vmatprep.subr.mxu0 0.0
  %135 = vmatpush1.msra.mxu0 0.0
  %136 = vmatprep.subr.mxu0 0.0
  %137 = vmatpush1.msra.mxu0 0.0
  %138 = vmatprep.subr.mxu0 0.0
  %139 = vmatpush1.msra.mxu0 0.0
  %140 = vmatprep.subr.mxu0 0.0
  %141 = vmatpush1.msra.mxu0 0.0
  %142 = vmatprep.subr.mxu0 0.0
  %143 = vmatpush1.msra.mxu0 0.0
  %144 = vmatprep.subr.mxu0 0.0
  %145 = vmatpush1.msra.mxu0 0.0
  %146 = vmatprep.subr.mxu0 0.0
  %147 = vmatpush1.msra.mxu0 0.0
  %148 = vmatprep.subr.mxu0 0.0
  %149 = vmatpush1.msra.mxu0 0.0
  %150 = vmatprep.subr.mxu0 0.0
  %151 = vmatpush1.msra.mxu0 0.0
  %152 = vmatprep.subr.mxu0 0.0
  %153 = vmatpush1.msra.mxu0 0.0
  %154 = vmatprep.subr.mxu0 0.0
  %155 = vmatpush1.msra.mxu0 0.0
  %156 = vmatprep.subr.mxu0 0.0
  %157 = vmatpush1.msra.mxu0 0.0
  %158 = vmatprep.subr.mxu0 0.0
  %159 = vmatpush1.msra.mxu0 0.0
  %160 = vmatprep.subr.mxu0 0.0
  %161 = vmatpush1.msra.mxu0 0.0
  %162 = vmatprep.subr.mxu0 0.0
  %163 = vmatpush1.msra.mxu0 0.0
  %164 = vmatprep.mubr.f32.mxu0 0.0
  %165 = vmatmul.mubr.f32.gmra.mrb[0].mxu0 %v95
  %v166 = vpop.f32.mrb[0].mxu0
  %v167 = vadd.f32 %v92, %v166
  %v168 = vpop.f32.mrb[0].mxu0
  %169 = vmatprep.mubr.f32.mxu0 0.0
  %170 = vmatmul.mubr.f32.gmra.mrb[0].mxu0 %v98
  %v171 = vpop.f32.mrb[0].mxu0
  %v172 = vadd.f32 %v92, %v171
  %v173 = vpop.f32.mrb[0].mxu0
  %174 = vdwg.mxu0
  %v175 = vmax.f32 %v167, 0.0
  %v176 = vmax.f32 %v172, 0.0
  %vm177 = vcmask 523264
  %178 = vst.msk [vmem:[%s5] sm:$0xff] %vm177, %v175
  %179 = vst.msk [vmem:[%s5 + $0x8] sm:$0xff] %vm177, %v176
  // Predicated region
  $region22: #{jambu_forward.33} parent=0 // pred_check
    _
  $region23: #{jambu_forward.33} parent=0 // pred_check_branch
    %181 = sbr.rel (0) target = $region25
  $region24: #{jambu_forward.33} parent=0 // pred_region
    _
  $region25: #{jambu_forward.33} parent=0 // pred_fallthru
    _
  // Predicated region
  $region26: #{jambu_forward.33} parent=0 // pred_check
    _
  $region27: #{jambu_forward.33} parent=0 // pred_check_branch
    %183 = sbr.rel (0) target = $region29
  $region28: #{jambu_forward.33} parent=0 // pred_region
    _
  $region29: #{jambu_forward.33} parent=0 // pred_fallthru
    _

// kernel: jambu_forward.40
$region0: #{jambu_forward.40}
  #allocation0 [shape = 'u32[]', space=smem, size = 0x4, offset = 0x4, fixed_abs, tag = 'smem constant byte address 0x4 - core index']
  #allocation1 [shape = 'u32[144,128]{1,0:T(1,128)}', space=vmem, size = 0x12000, scoped, tag = 'internal scratch']
  %s0 = inlined_call_operand.vmem [shape: f32[16,32], index: 0, kind: input, shape index: {}]
  %s1 = inlined_call_operand.vmem [shape: f32[1,32], index: 1, kind: input, shape index: {}]
  %s2 = inlined_call_operand.vmem [shape: f32[1,32], index: 2, kind: input, shape index: {}]
  %s3 = inlined_call_operand.vmem [shape: f32[16,32], index: 3, kind: output, shape index: {}]
  %s4 = sld [smem:[#allocation0]]
  $region22: #{jambu_forward.40} parent=0
    _
  %s6 = ssub.s32 1, %s4
  %s7 = scalar_select 0, %s6, %s4
  // Predicated region
  $region2: #{jambu_forward.40} parent=0 // pred_check
    _
  $region3: #{jambu_forward.40} parent=0 // pred_check_branch
    %9 = sbr.rel (0) target = $region5
  $region4: #{jambu_forward.40} parent=0 // pred_region
    _
  $region5: #{jambu_forward.40} parent=0 // pred_fallthru
    _
  // Predicated region
  $region6: #{jambu_forward.40} parent=0 // pred_check
    _
  $region7: #{jambu_forward.40} parent=0 // pred_check_branch
    %11 = sbr.rel (0) target = $region9
  $region8: #{jambu_forward.40} parent=0 // pred_region
    _
  $region9: #{jambu_forward.40} parent=0 // pred_fallthru
    _
  // Predicated region
  $region10: #{jambu_forward.40} parent=0 // pred_check
    _
  $region11: #{jambu_forward.40} parent=0 // pred_check_branch
    %13 = sbr.rel (0) target = $region13
  $region12: #{jambu_forward.40} parent=0 // pred_region
    _
  $region13: #{jambu_forward.40} parent=0 // pred_fallthru
    _
  %v14 = vld [vmem:[%s0] sm:$0xff]
  %v15 = vld [vmem:[%s0 + $0x8] sm:$0xff]
  %vm16 = vcmask 261120
  %v17 = vsel %vm16, %v14, 0.0
  %18 = vadd.xlane.f32.xlu0 %v17
  %v19 = vpop.xlane.xlu0 %18
  %v20 = vsel %vm16, %v15, 0.0
  %21 = vadd.xlane.f32.xlu0 %v20
  %v22 = vpop.xlane.xlu0 %21
  %v23 = vrcp.pop 32.0
  %v24 = vmul.f32 %v19, %v23
  %v25 = vmul.f32 %v22, %v23
  %v26 = vsub.f32 %v14, %v24
  %v27 = vsub.f32 %v15, %v25
  %v28 = vmul.f32 %v26, %v26
  %v29 = vmul.f32 %v27, %v27
  %v30 = vsel %vm16, %v28, 0.0
  %31 = vadd.xlane.f32.xlu0 %v30
  %v32 = vpop.xlane.xlu0 %31
  %v33 = vsel %vm16, %v29, 0.0
  %34 = vadd.xlane.f32.xlu0 %v33
  %v35 = vpop.xlane.xlu0 %34
  %v36 = vrcp.pop 31.0
  %v37 = vmul.f32 %v32, %v36
  %v38 = vmul.f32 %v35, %v36
  %v39 = vld [vmem:[%s1] sm:$0x1]
  %v41 = vlaneseq
  %v42 = vshrl.u32 %v41, 7
  %v43 = vsub.s32 0, %v42
  %v44 = vrot.slane %v39, %v43
  %v46 = vmul.f32 %v44, %v26
  %v47 = vmul.f32 %v44, %v27
  %v48 = vrsqrt.pop %v37
  %v49 = vmul.f32 %v37, %v48
  %vm50 = vcmp.eq.f32.partialorder %v37, inf
  %v51 = vsel %vm50, %v37, %v49
  %vm52 = vcmp.eq.f32.partialorder %v37, 0.0
  %v53 = vand.u32 %v37, 2147483648
  %v54 = vsel %vm52, %v53, %v51
  %v55 = vrsqrt.pop %v38
  %v56 = vmul.f32 %v38, %v55
  %vm57 = vcmp.eq.f32.partialorder %v38, inf
  %v58 = vsel %vm57, %v38, %v56
  %vm59 = vcmp.eq.f32.partialorder %v38, 0.0
  %v60 = vand.u32 %v38, 2147483648
  %v61 = vsel %vm59, %v60, %v58
  %v62 = vadd.f32 %v54, 1e-06
  %v63 = vadd.f32 %v61, 1e-06
  %v64 = vrcp.pop %v62
  %v65 = vmul.f32 %v46, %v64
  %v66 = vrcp.pop %v63
  %v67 = vmul.f32 %v47, %v66
  %v68 = vld [vmem:[%s2] sm:$0x1]
  %v70 = vlaneseq
  %v71 = vshrl.u32 %v70, 7
  %v72 = vsub.s32 0, %v71
  %v73 = vrot.slane %v68, %v72
  %v75 = vadd.f32 %v65, %v73
  %v76 = vadd.f32 %v67, %v73
  %77 = vst.msk [vmem:[%s3] sm:$0xff] %vm16, %v75
  %78 = vst.msk [vmem:[%s3 + $0x8] sm:$0xff] %vm16, %v76
  // Predicated region
  $region14: #{jambu_forward.40} parent=0 // pred_check
    _
  $region15: #{jambu_forward.40} parent=0 // pred_check_branch
    %80 = sbr.rel (0) target = $region17
  $region16: #{jambu_forward.40} parent=0 // pred_region
    _
  $region17: #{jambu_forward.40} parent=0 // pred_fallthru
    _
  // Predicated region
  $region18: #{jambu_forward.40} parent=0 // pred_check
    _
  $region19: #{jambu_forward.40} parent=0 // pred_check_branch
    %82 = sbr.rel (0) target = $region21
  $region20: #{jambu_forward.40} parent=0 // pred_region
    _
  $region21: #{jambu_forward.40} parent=0 // pred_fallthru
    _

// kernel: jambu_forward.34
$region0: #{jambu_forward.34}
  #allocation0 [shape = 'u32[]', space=smem, size = 0x4, offset = 0x4, fixed_abs, tag = 'smem constant byte address 0x4 - core index']
  #allocation1 [shape = 'u32[144,128]{1,0:T(1,128)}', space=vmem, size = 0x12000, scoped, tag = 'internal scratch']
  #allocation2 [shape = 'f32[16,32]{1,0:T(8,128)}', space=vmem, size = 0x2000, scoped, tag = 'scratch operand']
  %s0 = inlined_call_operand.vmem [shape: f32[16,64], index: 0, kind: input, shape index: {}]
  %s1 = inlined_call_operand.vmem [shape: f32[64,32], index: 1, kind: input, shape index: {}]
  %s2 = inlined_call_operand.vmem [shape: f32[1,32], index: 2, kind: input, shape index: {}]
  %s3 = inlined_call_operand.vmem [shape: f32[16,32], index: 3, kind: input, shape index: {}]
  %s4 = inlined_call_operand.vmem [shape: f32[16,32], index: 4, kind: output, shape index: {}]
  %s5 = sld [smem:[#allocation0]]
  $region34: #{jambu_forward.34} parent=0
    _
  %s7 = ssub.s32 1, %s5
  %s8 = scalar_select 0, %s7, %s5
  // Predicated region
  $region2: #{jambu_forward.34} parent=0 // pred_check
    _
  $region3: #{jambu_forward.34} parent=0 // pred_check_branch
    %10 = sbr.rel (0) target = $region5
  $region4: #{jambu_forward.34} parent=0 // pred_region
    _
  $region5: #{jambu_forward.34} parent=0 // pred_fallthru
    _
  // Predicated region
  $region6: #{jambu_forward.34} parent=0 // pred_check
    _
  $region7: #{jambu_forward.34} parent=0 // pred_check_branch
    %12 = sbr.rel (0) target = $region9
  $region8: #{jambu_forward.34} parent=0 // pred_region
    _
  $region9: #{jambu_forward.34} parent=0 // pred_fallthru
    _
  // Predicated region
  $region10: #{jambu_forward.34} parent=0 // pred_check
    _
  $region11: #{jambu_forward.34} parent=0 // pred_check_branch
    %14 = sbr.rel (0) target = $region13
  $region12: #{jambu_forward.34} parent=0 // pred_region
    _
  $region13: #{jambu_forward.34} parent=0 // pred_fallthru
    _
  // Predicated region
  $region14: #{jambu_forward.34} parent=0 // pred_check
    _
  $region15: #{jambu_forward.34} parent=0 // pred_check_branch
    %16 = sbr.rel (0) target = $region17
  $region16: #{jambu_forward.34} parent=0 // pred_region
    _
  $region17: #{jambu_forward.34} parent=0 // pred_fallthru
    _
  %p17 = scmp.eq.s32.totalorder 0, 0
  // Predicated region
  $region18: #{jambu_forward.34} parent=0 // pred_check
    %p18 = pneg %p17
  $region19: #{jambu_forward.34} parent=0 // pred_check_branch
    %20 = sbr.rel (%p18) target = $region21
  $region20: #{jambu_forward.34} parent=0 // pred_region
    %vm21 = vcmask 261120
    %22 = vst.msk [vmem:[#allocation2] sm:$0xff] %vm21, 0.0
    %23 = vst.msk [vmem:[#allocation2 + $0x8] sm:$0xff] %vm21, 0.0
  $region21: #{jambu_forward.34} parent=0 // pred_fallthru
    _
  %v24 = vld [vmem:[#allocation2] sm:$0xff]
  %v25 = vld [vmem:[#allocation2 + $0x8] sm:$0xff]
  %v26 = vld [vmem:[%s0] sm:$0xff]
  %v27 = vld [vmem:[%s0 + $0x8] sm:$0xff]
  %v28 = vld [vmem:[%s1] sm:$0xff]
  %v29 = vld [vmem:[%s1 + $0x8] sm:$0xff]
  %v30 = vld [vmem:[%s1 + $0x10] sm:$0xff]
  %v31 = vld [vmem:[%s1 + $0x18] sm:$0xff]
  %v32 = vld [vmem:[%s1 + $0x20] sm:$0xff]
  %v33 = vld [vmem:[%s1 + $0x28] sm:$0xff]
  %v34 = vld [vmem:[%s1 + $0x30] sm:$0xff]
  %v35 = vld [vmem:[%s1 + $0x38] sm:$0xff]
  %vm36 = vcmask 523264
  %v38 = vsel %vm36, %v26, 0
  %v41 = vsel %vm36, %v27, 0
  %43 = vmatprep.subr.mxu0 0.0
  %44 = vmatpush1.msra.mxu0 %v28
  %45 = vmatprep.subr.mxu0 0.0
  %46 = vmatpush1.msra.mxu0 %v29
  %47 = vmatprep.subr.mxu0 0.0
  %48 = vmatpush1.msra.mxu0 %v30
  %49 = vmatprep.subr.mxu0 0.0
  %50 = vmatpush1.msra.mxu0 %v31
  %51 = vmatprep.subr.mxu0 0.0
  %52 = vmatpush1.msra.mxu0 %v32
  %53 = vmatprep.subr.mxu0 0.0
  %54 = vmatpush1.msra.mxu0 %v33
  %55 = vmatprep.subr.mxu0 0.0
  %56 = vmatpush1.msra.mxu0 %v34
  %57 = vmatprep.subr.mxu0 0.0
  %58 = vmatpush1.msra.mxu0 %v35
  %59 = vmatprep.subr.mxu0 0.0
  %60 = vmatpush1.msra.mxu0 0.0
  %61 = vmatprep.subr.mxu0 0.0
  %62 = vmatpush1.msra.mxu0 0.0
  %63 = vmatprep.subr.mxu0 0.0
  %64 = vmatpush1.msra.mxu0 0.0
  %65 = vmatprep.subr.mxu0 0.0
  %66 = vmatpush1.msra.mxu0 0.0
  %67 = vmatprep.subr.mxu0 0.0
  %68 = vmatpush1.msra.mxu0 0.0
  %69 = vmatprep.subr.mxu0 0.0
  %70 = vmatpush1.msra.mxu0 0.0
  %71 = vmatprep.subr.mxu0 0.0
  %72 = vmatpush1.msra.mxu0 0.0
  %73 = vmatprep.subr.mxu0 0.0
  %74 = vmatpush1.msra.mxu0 0.0
  %75 = vmatprep.subr.mxu0 0.0
  %76 = vmatpush1.msra.mxu0 0.0
  %77 = vmatprep.subr.mxu0 0.0
  %78 = vmatpush1.msra.mxu0 0.0
  %79 = vmatprep.subr.mxu0 0.0
  %80 = vmatpush1.msra.mxu0 0.0
  %81 = vmatprep.subr.mxu0 0.0
  %82 = vmatpush1.msra.mxu0 0.0
  %83 = vmatprep.subr.mxu0 0.0
  %84 = vmatpush1.msra.mxu0 0.0
  %85 = vmatprep.subr.mxu0 0.0
  %86 = vmatpush1.msra.mxu0 0.0
  %87 = vmatprep.subr.mxu0 0.0
  %88 = vmatpush1.msra.mxu0 0.0
  %89 = vmatprep.subr.mxu0 0.0
  %90 = vmatpush1.msra.mxu0 0.0
  %91 = vmatprep.subr.mxu0 0.0
  %92 = vmatpush1.msra.mxu0 0.0
  %93 = vmatprep.subr.mxu0 0.0
  %94 = vmatpush1.msra.mxu0 0.0
  %95 = vmatprep.subr.mxu0 0.0
  %96 = vmatpush1.msra.mxu0 0.0
  %97 = vmatprep.subr.mxu0 0.0
  %98 = vmatpush1.msra.mxu0 0.0
  %99 = vmatprep.subr.mxu0 0.0
  %100 = vmatpush1.msra.mxu0 0.0
  %101 = vmatprep.subr.mxu0 0.0
  %102 = vmatpush1.msra.mxu0 0.0
  %103 = vmatprep.subr.mxu0 0.0
  %104 = vmatpush1.msra.mxu0 0.0
  %105 = vmatprep.subr.mxu0 0.0
  %106 = vmatpush1.msra.mxu0 0.0
  %107 = vmatprep.mubr.f32.mxu0 0.0
  %108 = vmatmul.mubr.f32.gmra.mrb[0].mxu0 %v38
  %v109 = vpop.f32.mrb[0].mxu0
  %v110 = vadd.f32 0.0, %v109
  %v111 = vpop.f32.mrb[0].mxu0
  %112 = vmatprep.mubr.f32.mxu0 0.0
  %113 = vmatmul.mubr.f32.gmra.mrb[0].mxu0 %v41
  %v114 = vpop.f32.mrb[0].mxu0
  %v115 = vadd.f32 0.0, %v114
  %v116 = vpop.f32.mrb[0].mxu0
  %117 = vdwg.mxu0
  %v118 = vadd.f32 %v24, %v110
  %v119 = vadd.f32 %v25, %v115
  %vm120 = vcmask 261120
  %121 = vst.msk [vmem:[#allocation2] sm:$0xff] %vm120, %v118
  %122 = vst.msk [vmem:[#allocation2 + $0x8] sm:$0xff] %vm120, %v119
  // Predicated region
  $region22: #{jambu_forward.34} parent=0 // pred_check
    %p123 = pneg %p17
  $region23: #{jambu_forward.34} parent=0 // pred_check_branch
    %125 = sbr.rel (%p123) target = $region25
  $region24: #{jambu_forward.34} parent=0 // pred_region
    %v126 = vld [vmem:[#allocation2] sm:$0xff]
    %v127 = vld [vmem:[#allocation2 + $0x8] sm:$0xff]
    %v128 = vld [vmem:[%s2] sm:$0x1]
    %v130 = vlaneseq
    %v131 = vshrl.u32 %v130, 7
    %v132 = vsub.s32 0, %v131
    %v133 = vrot.slane %v128, %v132
    %v135 = vadd.f32 %v126, %v133
    %v136 = vadd.f32 %v127, %v133
    %v137 = vld [vmem:[%s3] sm:$0xff]
    %v138 = vld [vmem:[%s3 + $0x8] sm:$0xff]
    %v139 = vadd.f32 %v135, %v137
    %v140 = vadd.f32 %v136, %v138
    %141 = vst.msk [vmem:[%s4] sm:$0xff] %vm120, %v139
    %142 = vst.msk [vmem:[%s4 + $0x8] sm:$0xff] %vm120, %v140
  $region25: #{jambu_forward.34} parent=0 // pred_fallthru
    _
  // Predicated region
  $region26: #{jambu_forward.34} parent=0 // pred_check
    _
  $region27: #{jambu_forward.34} parent=0 // pred_check_branch
    %144 = sbr.rel (0) target = $region29
  $region28: #{jambu_forward.34} parent=0 // pred_region
    _
  $region29: #{jambu_forward.34} parent=0 // pred_fallthru
    _
  // Predicated region
  $region30: #{jambu_forward.34} parent=0 // pred_check
    _
  $region31: #{jambu_forward.34} parent=0 // pred_check_branch
    %146 = sbr.rel (0) target = $region33
  $region32: #{jambu_forward.34} parent=0 // pred_region
    _
  $region33: #{jambu_forward.34} parent=0 // pred_fallthru
    _

// kernel: jambu_forward.45
$region0: #{jambu_forward.45}
  #allocation0 [shape = 'u32[]', space=smem, size = 0x4, offset = 0x4, fixed_abs, tag = 'smem constant byte address 0x4 - core index']
  #allocation1 [shape = 'u32[144,128]{1,0:T(1,128)}', space=vmem, size = 0x12000, scoped, tag = 'internal scratch']
  #allocation2 [shape = 'f32[16,64]{1,0:T(8,128)}', space=vmem, size = 0x2000, scoped, tag = 'scratch operand']
  %s0 = inlined_call_operand.vmem [shape: f32[16,32], index: 0, kind: input, shape index: {}]
  %s1 = inlined_call_operand.vmem [shape: f32[32,64], index: 1, kind: input, shape index: {}]
  %s2 = inlined_call_operand.vmem [shape: f32[1,64], index: 2, kind: input, shape index: {}]
  %s3 = inlined_call_operand.vmem [shape: f32[16,64], index: 3, kind: output, shape index: {}]
  %s4 = sld [smem:[#allocation0]]
  $region30: #{jambu_forward.45} parent=0
    _
  %s6 = ssub.s32 1, %s4
  %s7 = scalar_select 0, %s6, %s4
  // Predicated region
  $region2: #{jambu_forward.45} parent=0 // pred_check
    _
  $region3: #{jambu_forward.45} parent=0 // pred_check_branch
    %9 = sbr.rel (0) target = $region5
  $region4: #{jambu_forward.45} parent=0 // pred_region
    _
  $region5: #{jambu_forward.45} parent=0 // pred_fallthru
    _
  // Predicated region
  $region6: #{jambu_forward.45} parent=0 // pred_check
    _
  $region7: #{jambu_forward.45} parent=0 // pred_check_branch
    %11 = sbr.rel (0) target = $region9
  $region8: #{jambu_forward.45} parent=0 // pred_region
    _
  $region9: #{jambu_forward.45} parent=0 // pred_fallthru
    _
  // Predicated region
  $region10: #{jambu_forward.45} parent=0 // pred_check
    _
  $region11: #{jambu_forward.45} parent=0 // pred_check_branch
    %13 = sbr.rel (0) target = $region13
  $region12: #{jambu_forward.45} parent=0 // pred_region
    _
  $region13: #{jambu_forward.45} parent=0 // pred_fallthru
    _
  %p14 = scmp.eq.s32.totalorder 0, 0
  // Predicated region
  $region14: #{jambu_forward.45} parent=0 // pred_check
    %p15 = pneg %p14
  $region15: #{jambu_forward.45} parent=0 // pred_check_branch
    %17 = sbr.rel (%p15) target = $region17
  $region16: #{jambu_forward.45} parent=0 // pred_region
    %vm18 = vcmask 523264
    %19 = vst.msk [vmem:[#allocation2] sm:$0xff] %vm18, 0.0
    %20 = vst.msk [vmem:[#allocation2 + $0x8] sm:$0xff] %vm18, 0.0
  $region17: #{jambu_forward.45} parent=0 // pred_fallthru
    _
  %v21 = vld [vmem:[#allocation2] sm:$0xff]
  %v22 = vld [vmem:[#allocation2 + $0x8] sm:$0xff]
  %v23 = vld [vmem:[%s0] sm:$0xff]
  %v24 = vld [vmem:[%s0 + $0x8] sm:$0xff]
  %v25 = vld [vmem:[%s1] sm:$0xff]
  %v26 = vld [vmem:[%s1 + $0x8] sm:$0xff]
  %v27 = vld [vmem:[%s1 + $0x10] sm:$0xff]
  %v28 = vld [vmem:[%s1 + $0x18] sm:$0xff]
  %vm29 = vcmask 261120
  %v31 = vsel %vm29, %v23, 0
  %v34 = vsel %vm29, %v24, 0
  %36 = vmatprep.subr.mxu0 0.0
  %37 = vmatpush1.msra.mxu0 %v25
  %38 = vmatprep.subr.mxu0 0.0
  %39 = vmatpush1.msra.mxu0 %v26
  %40 = vmatprep.subr.mxu0 0.0
  %41 = vmatpush1.msra.mxu0 %v27
  %42 = vmatprep.subr.mxu0 0.0
  %43 = vmatpush1.msra.mxu0 %v28
  %44 = vmatprep.subr.mxu0 0.0
  %45 = vmatpush1.msra.mxu0 0.0
  %46 = vmatprep.subr.mxu0 0.0
  %47 = vmatpush1.msra.mxu0 0.0
  %48 = vmatprep.subr.mxu0 0.0
  %49 = vmatpush1.msra.mxu0 0.0
  %50 = vmatprep.subr.mxu0 0.0
  %51 = vmatpush1.msra.mxu0 0.0
  %52 = vmatprep.subr.mxu0 0.0
  %53 = vmatpush1.msra.mxu0 0.0
  %54 = vmatprep.subr.mxu0 0.0
  %55 = vmatpush1.msra.mxu0 0.0
  %56 = vmatprep.subr.mxu0 0.0
  %57 = vmatpush1.msra.mxu0 0.0
  %58 = vmatprep.subr.mxu0 0.0
  %59 = vmatpush1.msra.mxu0 0.0
  %60 = vmatprep.subr.mxu0 0.0
  %61 = vmatpush1.msra.mxu0 0.0
  %62 = vmatprep.subr.mxu0 0.0
  %63 = vmatpush1.msra.mxu0 0.0
  %64 = vmatprep.subr.mxu0 0.0
  %65 = vmatpush1.msra.mxu0 0.0
  %66 = vmatprep.subr.mxu0 0.0
  %67 = vmatpush1.msra.mxu0 0.0
  %68 = vmatprep.subr.mxu0 0.0
  %69 = vmatpush1.msra.mxu0 0.0
  %70 = vmatprep.subr.mxu0 0.0
  %71 = vmatpush1.msra.mxu0 0.0
  %72 = vmatprep.subr.mxu0 0.0
  %73 = vmatpush1.msra.mxu0 0.0
  %74 = vmatprep.subr.mxu0 0.0
  %75 = vmatpush1.msra.mxu0 0.0
  %76 = vmatprep.subr.mxu0 0.0
  %77 = vmatpush1.msra.mxu0 0.0
  %78 = vmatprep.subr.mxu0 0.0
  %79 = vmatpush1.msra.mxu0 0.0
  %80 = vmatprep.subr.mxu0 0.0
  %81 = vmatpush1.msra.mxu0 0.0
  %82 = vmatprep.subr.mxu0 0.0
  %83 = vmatpush1.msra.mxu0 0.0
  %84 = vmatprep.subr.mxu0 0.0
  %85 = vmatpush1.msra.mxu0 0.0
  %86 = vmatprep.subr.mxu0 0.0
  %87 = vmatpush1.msra.mxu0 0.0
  %88 = vmatprep.subr.mxu0 0.0
  %89 = vmatpush1.msra.mxu0 0.0
  %90 = vmatprep.subr.mxu0 0.0
  %91 = vmatpush1.msra.mxu0 0.0
  %92 = vmatprep.subr.mxu0 0.0
  %93 = vmatpush1.msra.mxu0 0.0
  %94 = vmatprep.subr.mxu0 0.0
  %95 = vmatpush1.msra.mxu0 0.0
  %96 = vmatprep.subr.mxu0 0.0
  %97 = vmatpush1.msra.mxu0 0.0
  %98 = vmatprep.subr.mxu0 0.0
  %99 = vmatpush1.msra.mxu0 0.0
  %100 = vmatprep.mubr.f32.mxu0 0.0
  %101 = vmatmul.mubr.f32.gmra.mrb[0].mxu0 %v31
  %v102 = vpop.f32.mrb[0].mxu0
  %v103 = vadd.f32 0.0, %v102
  %v104 = vpop.f32.mrb[0].mxu0
  %105 = vmatprep.mubr.f32.mxu0 0.0
  %106 = vmatmul.mubr.f32.gmra.mrb[0].mxu0 %v34
  %v107 = vpop.f32.mrb[0].mxu0
  %v108 = vadd.f32 0.0, %v107
  %v109 = vpop.f32.mrb[0].mxu0
  %110 = vdwg.mxu0
  %v111 = vadd.f32 %v21, %v103
  %v112 = vadd.f32 %v22, %v108
  %vm113 = vcmask 523264
  %114 = vst.msk [vmem:[#allocation2] sm:$0xff] %vm113, %v111
  %115 = vst.msk [vmem:[#allocation2 + $0x8] sm:$0xff] %vm113, %v112
  // Predicated region
  $region18: #{jambu_forward.45} parent=0 // pred_check
    %p116 = pneg %p14
  $region19: #{jambu_forward.45} parent=0 // pred_check_branch
    %118 = sbr.rel (%p116) target = $region21
  $region20: #{jambu_forward.45} parent=0 // pred_region
    %v119 = vld [vmem:[#allocation2] sm:$0xff]
    %v120 = vld [vmem:[#allocation2 + $0x8] sm:$0xff]
    %v121 = vld [vmem:[%s2] sm:$0x1]
    %v123 = vlaneseq
    %v124 = vshrl.u32 %v123, 7
    %v125 = vsub.s32 0, %v124
    %v126 = vrot.slane %v121, %v125
    %v128 = vadd.f32 %v119, %v126
    %v129 = vadd.f32 %v120, %v126
    %130 = vst.msk [vmem:[%s3] sm:$0xff] %vm113, %v128
    %131 = vst.msk [vmem:[%s3 + $0x8] sm:$0xff] %vm113, %v129
  $region21: #{jambu_forward.45} parent=0 // pred_fallthru
    _
  // Predicated region
  $region22: #{jambu_forward.45} parent=0 // pred_check
    _
  $region23: #{jambu_forward.45} parent=0 // pred_check_branch
    %133 = sbr.rel (0) target = $region25
  $region24: #{jambu_forward.45} parent=0 // pred_region
    _
  $region25: #{jambu_forward.45} parent=0 // pred_fallthru
    _
  // Predicated region
  $region26: #{jambu_forward.45} parent=0 // pred_check
    _
  $region27: #{jambu_forward.45} parent=0 // pred_check_branch
    %135 = sbr.rel (0) target = $region29
  $region28: #{jambu_forward.45} parent=0 // pred_region
    _
  $region29: #{jambu_forward.45} parent=0 // pred_fallthru
    _

// kernel: jambu_forward.42
$region0: #{jambu_forward.42}
  #allocation0 [shape = 'u32[]', space=smem, size = 0x4, offset = 0x4, fixed_abs, tag = 'smem constant byte address 0x4 - core index']
  #allocation1 [shape = 'u32[144,128]{1,0:T(1,128)}', space=vmem, size = 0x12000, scoped, tag = 'internal scratch']
  %s0 = inlined_call_operand.vmem [shape: f32[2,8,96], index: 0, kind: input, shape index: {}]
  %s1 = inlined_call_operand.vmem [shape: s32[2,8,8], index: 1, kind: input, shape index: {}]
  %s2 = inlined_call_operand.vmem [shape: f32[2,8,32], index: 2, kind: output, shape index: {}]
  %s3 = sld [smem:[#allocation0]]
  $region41: #{jambu_forward.42} parent=0
    _
  %s5 = ssub.s32 1, %s3
  %s6 = scalar_select 0, %s5, %s3
  loop: start=0, step=1, limit=4
  $region2: #{jambu_forward.42} parent=0 // loop_pre_header
    _
  $region3: #{jambu_forward.42} parent=0 // loop_header
    %s8 = sphi 0, %s12
    %p9 = scmp.ge.s32.totalorder %s8, 4
    %s18 = sphi 0, %s20
    %s21 = sphi 0, %s18
    %s22 = sphi 0, %s21
    %s38 = sphi 0, %s22
    %s44 = sphi 0, %s46
    %s47 = sphi 0, %s44
    %s48 = sphi 0, %s47
    %s64 = sphi 0, %s48
    %s70 = sphi 0, %s72
    %s73 = sphi 0, %s70
    %s74 = sphi 0, %s73
    %s90 = sphi 0, %s74
  $region4: #{jambu_forward.42} parent=0 // loop_header_branch
    %11 = sbr.rel (%p9) target = $region8
  $region5: #{jambu_forward.42} parent=0 // loop_body
    %s13 = ssub.s32 %s8, 1
    %s14 = ssub.s32 %s8, 2
    %s15 = sadd.s32 %s8, 1
    %s16 = ssub.s32 %s8, %s15
    %p17 = scmp.eq.s32.totalorder %s16, 0
    %s19 = sadd.s32 %s18, 1
    %s20 = scalar_select %p17, %s18, %s19
    %p23 = pneg %p17
    %p24 = scmp.eq.s32.totalorder %s8, 1
    %p25 = por %p23, %p24
    %p26 = scmp.ne.s32.totalorder %s18, %s21
    %p27 = scmp.eq.s32.totalorder %s8, 0
    %p28 = por %p26, %p27
    %p29 = scmp.ne.s32.totalorder %s18, %s21
    %p30 = scmp.eq.s32.totalorder %s13, 1
    %p31 = por %p29, %p30
    %p32 = scmp.ne.s32.totalorder %s21, %s22
    %p33 = scmp.eq.s32.totalorder %s13, 0
    %p34 = por %p32, %p33
    %p35 = scmp.ne.s32.totalorder %s21, %s22
    %p36 = scmp.eq.s32.totalorder %s14, 1
    %p37 = por %p35, %p36
    %p39 = scmp.ne.s32.totalorder %s22, %s38
    %p40 = scmp.eq.s32.totalorder %s14, 0
    %p41 = por %p39, %p40
    %s42 = ssub.s32 %s8, %s15
    %p43 = scmp.eq.s32.totalorder %s42, 0
    %s45 = sadd.s32 %s44, 1
    %s46 = scalar_select %p43, %s44, %s45
    %p49 = pneg %p43
    %p50 = scmp.eq.s32.totalorder %s8, 1
    %p51 = por %p49, %p50
    %p52 = scmp.ne.s32.totalorder %s44, %s47
    %p53 = scmp.eq.s32.totalorder %s8, 0
    %p54 = por %p52, %p53
    %p55 = scmp.ne.s32.totalorder %s44, %s47
    %p56 = scmp.eq.s32.totalorder %s13, 1
    %p57 = por %p55, %p56
    %p58 = scmp.ne.s32.totalorder %s47, %s48
    %p59 = scmp.eq.s32.totalorder %s13, 0
    %p60 = por %p58, %p59
    %p61 = scmp.ne.s32.totalorder %s47, %s48
    %p62 = scmp.eq.s32.totalorder %s14, 1
    %p63 = por %p61, %p62
    %p65 = scmp.ne.s32.totalorder %s48, %s64
    %p66 = scmp.eq.s32.totalorder %s14, 0
    %p67 = por %p65, %p66
    %s68 = ssub.s32 %s8, %s15
    %p69 = scmp.eq.s32.totalorder %s68, 0
    %s71 = sadd.s32 %s70, 1
    %s72 = scalar_select %p69, %s70, %s71
    %p75 = pneg %p69
    %p76 = scmp.eq.s32.totalorder %s8, 1
    %p77 = por %p75, %p76
    %p78 = scmp.ne.s32.totalorder %s70, %s73
    %p79 = scmp.eq.s32.totalorder %s8, 0
    %p80 = por %p78, %p79
    %p81 = scmp.ne.s32.totalorder %s70, %s73
    %p82 = scmp.eq.s32.totalorder %s13, 1
    %p83 = por %p81, %p82
    %p84 = scmp.ne.s32.totalorder %s73, %s74
    %p85 = scmp.eq.s32.totalorder %s13, 0
    %p86 = por %p84, %p85
    %p87 = scmp.ne.s32.totalorder %s73, %s74
    %p88 = scmp.eq.s32.totalorder %s14, 1
    %p89 = por %p87, %p88
    %p91 = scmp.ne.s32.totalorder %s74, %s90
    %p92 = scmp.eq.s32.totalorder %s14, 0
    %p93 = por %p91, %p92
    %p94 = scmp.le.s32.totalorder 1, %s8
    %p95 = scmp.lt.s32.totalorder %s8, 3
    %p96 = pnand %p94, %p95
    %p97 = pneg %p96
    // Predicated region
    $region9: #{jambu_forward.42} parent=5 // pred_check
      _
    $region10: #{jambu_forward.42} parent=5 // pred_check_branch
      %99 = sbr.rel (%p96) target = $region12
    $region11: #{jambu_forward.42} parent=5 // pred_region
      %s100 = ssub.s32 %s8, 1
    $region12: #{jambu_forward.42} parent=5 // pred_fallthru
      _
    %p101 = scmp.lt.s32.totalorder %s8, 2
    // Predicated region
    $region13: #{jambu_forward.42} parent=5 // pred_check
      %p102 = pneg %p101
    $region14: #{jambu_forward.42} parent=5 // pred_check_branch
      %104 = sbr.rel (%p102) target = $region16
    $region15: #{jambu_forward.42} parent=5 // pred_region
      // Predicated region
      $region17: #{jambu_forward.42} parent=15 // pred_check
        %p105 = pneg %p28
      $region18: #{jambu_forward.42} parent=15 // pred_check_branch
        %107 = sbr.rel (%p105) target = $region20
      $region19: #{jambu_forward.42} parent=15 // pred_region
        %p108 = scmp.lt.s32.totalorder %s8, 1
        %s109 = scalar_select %p108, %s8, 1
        %s110 = smul.addr %s109, 8
        %s111 = scalar_lea.vmem %s0, %s110
      $region20: #{jambu_forward.42} parent=15 // pred_fallthru
        _
      // Predicated region
      $region21: #{jambu_forward.42} parent=15 // pred_check
        %p112 = pneg %p54
      $region22: #{jambu_forward.42} parent=15 // pred_check_branch
        %114 = sbr.rel (%p112) target = $region24
      $region23: #{jambu_forward.42} parent=15 // pred_region
        %p115 = scmp.lt.s32.totalorder %s8, 1
        %s116 = scalar_select %p115, %s8, 1
        %s117 = smul.addr %s116, 8
        %s118 = scalar_lea.vmem %s1, %s117
      $region24: #{jambu_forward.42} parent=15 // pred_fallthru
        _
    $region16: #{jambu_forward.42} parent=5 // pred_fallthru
      _
    %p119 = scmp.le.s32.totalorder 1, %s8
    %p120 = scmp.lt.s32.totalorder %s8, 3
    %p121 = pnand %p119, %p120
    %p122 = pneg %p121
    // Predicated region
    $region25: #{jambu_forward.42} parent=5 // pred_check
      _
    $region26: #{jambu_forward.42} parent=5 // pred_check_branch
      %124 = sbr.rel (%p121) target = $region28
    $region27: #{jambu_forward.42} parent=5 // pred_region
      %s125 = ssub.s32 %s8, 1
      %p126 = scmp.lt.s32.totalorder %s13, 1
      %s127 = scalar_select %p126, %s13, 1
      %s128 = smul.addr %s127, 8
      %s129 = scalar_lea.vmem %s0, %s128
      %p130 = pneg %p34
      %p131 = pneg %p31
      %p132 = scmp.lt.s32.totalorder %s13, 1
      %s133 = scalar_select %p132, %s13, 1
      %s134 = smul.addr %s133, 8
      %s135 = scalar_lea.vmem %s1, %s134
      %p136 = pneg %p60
      %p137 = pneg %p57
      %p138 = pneg %p86
      %p139 = pneg %p83
      %p140 = scmp.lt.s32.totalorder %s13, 1
      %s141 = scalar_select %p140, %s13, 1
      %s142 = smul.addr %s141, 8
      %s143 = scalar_lea.vmem %s2, %s142
      %p144 = scmp.lt.s32.totalorder %s13, 1
      %s145 = scalar_select %p144, %s13, 1
      %s146 = smul.addr %s145, 8
      %s147 = scalar_lea.vmem %s0, %s146
      %p148 = scmp.lt.s32.totalorder %s13, 1
      %s149 = scalar_select %p148, %s13, 1
      %s150 = smul.addr %s149, 8
      %s151 = scalar_lea.vmem %s1, %s150
      %p152 = scmp.lt.s32.totalorder %s13, 1
      %s153 = scalar_select %p152, %s13, 1
      %s154 = smul.addr %s153, 8
      %s155 = scalar_lea.vmem %s2, %s154
      %v156 = vld [vmem:[%s147] sm:$0xff]
      %v157 = vld [vmem:[%s151] sm:$0xff]
      %v158 = vmul.f32 %v156, 0.35355338
      %160 = vrot.lane.b32.xlu0 %v156, 96
      %v161 = vpop.permute.xlu0 %160
      %vm162 = vcmask 64512
      %v164 = vsel %vm162, %v158, 0
      %v166 = vsel %vm162, %v161, 0
      %168 = vmatprep.subr.mxu0 0.0
      %169 = vmatpush1.xpose.msra.mxu0 %v166
      %170 = vmatprep.subr.mxu0 0.0
      %171 = vmatpush1.xpose.msra.mxu0 0.0
      %172 = vmatprep.subr.mxu0 0.0
      %173 = vmatpush1.xpose.msra.mxu0 0.0
      %174 = vmatprep.subr.mxu0 0.0
      %175 = vmatpush1.xpose.msra.mxu0 0.0
      %176 = vmatprep.subr.mxu0 0.0
      %177 = vmatpush1.xpose.msra.mxu0 0.0
      %178 = vmatprep.subr.mxu0 0.0
      %179 = vmatpush1.xpose.msra.mxu0 0.0
      %180 = vmatprep.subr.mxu0 0.0
      %181 = vmatpush1.xpose.msra.mxu0 0.0
      %182 = vmatprep.subr.mxu0 0.0
      %183 = vmatpush1.xpose.msra.mxu0 0.0
      %184 = vmatprep.subr.mxu0 0.0
      %185 = vmatpush1.xpose.msra.mxu0 0.0
      %186 = vmatprep.subr.mxu0 0.0
      %187 = vmatpush1.xpose.msra.mxu0 0.0
      %188 = vmatprep.subr.mxu0 0.0
      %189 = vmatpush1.xpose.msra.mxu0 0.0
      %190 = vmatprep.subr.mxu0 0.0
      %191 = vmatpush1.xpose.msra.mxu0 0.0
      %192 = vmatprep.subr.mxu0 0.0
      %193 = vmatpush1.xpose.msra.mxu0 0.0
      %194 = vmatprep.subr.mxu0 0.0
      %195 = vmatpush1.xpose.msra.mxu0 0.0
      %196 = vmatprep.subr.mxu0 0.0
      %197 = vmatpush1.xpose.msra.mxu0 0.0
      %198 = vmatprep.subr.mxu0 0.0
      %199 = vmatpush1.xpose.msra.mxu0 0.0
      %200 = vmatprep.subr.mxu0 0.0
      %201 = vmatpush1.xpose.msra.mxu0 0.0
      %202 = vmatprep.subr.mxu0 0.0
      %203 = vmatpush1.xpose.msra.mxu0 0.0
      %204 = vmatprep.subr.mxu0 0.0
      %205 = vmatpush1.xpose.msra.mxu0 0.0
      %206 = vmatprep.subr.mxu0 0.0
      %207 = vmatpush1.xpose.msra.mxu0 0.0
      %208 = vmatprep.subr.mxu0 0.0
      %209 = vmatpush1.xpose.msra.mxu0 0.0
      %210 = vmatprep.subr.mxu0 0.0
      %211 = vmatpush1.xpose.msra.mxu0 0.0
      %212 = vmatprep.subr.mxu0 0.0
      %213 = vmatpush1.xpose.msra.mxu0 0.0
      %214 = vmatprep.subr.mxu0 0.0
      %215 = vmatpush1.xpose.msra.mxu0 0.0
      %216 = vmatprep.subr.mxu0 0.0
      %217 = vmatpush1.xpose.msra.mxu0 0.0
      %218 = vmatprep.subr.mxu0 0.0
      %219 = vmatpush1.xpose.msra.mxu0 0.0
      %220 = vmatprep.subr.mxu0 0.0
      %221 = vmatpush1.xpose.msra.mxu0 0.0
      %222 = vmatprep.subr.mxu0 0.0
      %223 = vmatpush1.xpose.msra.mxu0 0.0
      %224 = vmatprep.subr.mxu0 0.0
      %225 = vmatpush1.xpose.msra.mxu0 0.0
      %226 = vmatprep.subr.mxu0 0.0
      %227 = vmatpush1.xpose.msra.mxu0 0.0
      %228 = vmatprep.subr.mxu0 0.0
      %229 = vmatpush1.xpose.msra.mxu0 0.0
      %230 = vmatprep.subr.mxu0 0.0
      %231 = vmatpush1.xpose.msra.mxu0 0.0
      %232 = vmatprep.mubr.f32.mxu0 0.0
      %233 = vmatmul.mubr.f32.gmra.mrb[0].mxu0 %v164
      %v234 = vpop.f32.mrb[0].mxu0
      %v235 = vadd.f32 0.0, %v234
      %v236 = vpop.f32.mrb[0].mxu0
      %237 = vdwg.mxu0
      %vm238 = vcmp.eq.s32.totalorder %v157, 0
      %v239 = vsel %vm238, -1e+09, %v235
      %v240 = vsel %vm162, %v239, -inf
      %241 = vmax.xlane.f32.xlu0 %v240
      %v242 = vpop.xlane.xlu0 %241
      %v243 = vsub.f32 %v239, %v242
      %v244 = vmul.f32 %v243, 1.442695
      %v245 = vpow.pop %v244
      %v246 = vsel %vm162, %v245, 0.0
      %247 = vadd.xlane.f32.xlu0 %v246
      %v248 = vpop.xlane.xlu0 %247
      %v249 = vrcp.pop %v248
      %v250 = vmul.f32 %v245, %v249
      %251 = vrot.lane.b32.xlu0 %v156, 64
      %v252 = vpop.permute.xlu0 %251
      %v255 = vsel %vm162, %v250, 0
      %257 = vmatprep.subr.mxu0 0.0
      %258 = vmatpush1.msra.mxu0 %v252
      %259 = vmatprep.subr.mxu0 0.0
      %260 = vmatpush1.msra.mxu0 0.0
      %261 = vmatprep.subr.mxu0 0.0
      %262 = vmatpush1.msra.mxu0 0.0
      %263 = vmatprep.subr.mxu0 0.0
      %264 = vmatpush1.msra.mxu0 0.0
      %265 = vmatprep.subr.mxu0 0.0
      %266 = vmatpush1.msra.mxu0 0.0
      %267 = vmatprep.subr.mxu0 0.0
      %268 = vmatpush1.msra.mxu0 0.0
      %269 = vmatprep.subr.mxu0 0.0
      %270 = vmatpush1.msra.mxu0 0.0
      %271 = vmatprep.subr.mxu0 0.0
      %272 = vmatpush1.msra.mxu0 0.0
      %273 = vmatprep.subr.mxu0 0.0
      %274 = vmatpush1.msra.mxu0 0.0
      %275 = vmatprep.subr.mxu0 0.0
      %276 = vmatpush1.msra.mxu0 0.0
      %277 = vmatprep.subr.mxu0 0.0
      %278 = vmatpush1.msra.mxu0 0.0
      %279 = vmatprep.subr.mxu0 0.0
      %280 = vmatpush1.msra.mxu0 0.0
      %281 = vmatprep.subr.mxu0 0.0
      %282 = vmatpush1.msra.mxu0 0.0
      %283 = vmatprep.subr.mxu0 0.0
      %284 = vmatpush1.msra.mxu0 0.0
      %285 = vmatprep.subr.mxu0 0.0
      %286 = vmatpush1.msra.mxu0 0.0
      %287 = vmatprep.subr.mxu0 0.0
      %288 = vmatpush1.msra.mxu0 0.0
      %289 = vmatprep.subr.mxu0 0.0
      %290 = vmatpush1.msra.mxu0 0.0
      %291 = vmatprep.subr.mxu0 0.0
      %292 = vmatpush1.msra.mxu0 0.0
      %293 = vmatprep.subr.mxu0 0.0
      %294 = vmatpush1.msra.mxu0 0.0
      %295 = vmatprep.subr.mxu0 0.0
      %296 = vmatpush1.msra.mxu0 0.0
      %297 = vmatprep.subr.mxu0 0.0
      %298 = vmatpush1.msra.mxu0 0.0
      %299 = vmatprep.subr.mxu0 0.0
      %300 = vmatpush1.msra.mxu0 0.0
      %301 = vmatprep.subr.mxu0 0.0
      %302 = vmatpush1.msra.mxu0 0.0
      %303 = vmatprep.subr.mxu0 0.0
      %304 = vmatpush1.msra.mxu0 0.0
      %305 = vmatprep.subr.mxu0 0.0
      %306 = vmatpush1.msra.mxu0 0.0
      %307 = vmatprep.subr.mxu0 0.0
      %308 = vmatpush1.msra.mxu0 0.0
      %309 = vmatprep.subr.mxu0 0.0
      %310 = vmatpush1.msra.mxu0 0.0
      %311 = vmatprep.subr.mxu0 0.0
      %312 = vmatpush1.msra.mxu0 0.0
      %313 = vmatprep.subr.mxu0 0.0
      %314 = vmatpush1.msra.mxu0 0.0
      %315 = vmatprep.subr.mxu0 0.0
      %316 = vmatpush1.msra.mxu0 0.0
      %317 = vmatprep.subr.mxu0 0.0
      %318 = vmatpush1.msra.mxu0 0.0
      %319 = vmatprep.subr.mxu0 0.0
      %320 = vmatpush1.msra.mxu0 0.0
      %321 = vmatprep.mubr.f32.mxu0 0.0
      %322 = vmatmul.mubr.f32.gmra.mrb[0].mxu0 %v255
      %v323 = vpop.f32.mrb[0].mxu0
      %v324 = vadd.f32 0.0, %v323
      %v325 = vpop.f32.mrb[0].mxu0
      %326 = vdwg.mxu0
      %327 = vrot.lane.b32.xlu0 %v158, 120
      %v328 = vpop.permute.xlu0 %327
      %329 = vrot.lane.b32.xlu0 %v156, 88
      %v330 = vpop.permute.xlu0 %329
      %v331 = vsel %vm162, %v328, 0
      %v333 = vsel %vm162, %v330, 0
      %335 = vmatprep.subr.mxu0 0.0
      %336 = vmatpush1.xpose.msra.mxu0 %v333
      %337 = vmatprep.subr.mxu0 0.0
      %338 = vmatpush1.xpose.msra.mxu0 0.0
      %339 = vmatprep.subr.mxu0 0.0
      %340 = vmatpush1.xpose.msra.mxu0 0.0
      %341 = vmatprep.subr.mxu0 0.0
      %342 = vmatpush1.xpose.msra.mxu0 0.0
      %343 = vmatprep.subr.mxu0 0.0
      %344 = vmatpush1.xpose.msra.mxu0 0.0
      %345 = vmatprep.subr.mxu0 0.0
      %346 = vmatpush1.xpose.msra.mxu0 0.0
      %347 = vmatprep.subr.mxu0 0.0
      %348 = vmatpush1.xpose.msra.mxu0 0.0
      %349 = vmatprep.subr.mxu0 0.0
      %350 = vmatpush1.xpose.msra.mxu0 0.0
      %351 = vmatprep.subr.mxu0 0.0
      %352 = vmatpush1.xpose.msra.mxu0 0.0
      %353 = vmatprep.subr.mxu0 0.0
      %354 = vmatpush1.xpose.msra.mxu0 0.0
      %355 = vmatprep.subr.mxu0 0.0
      %356 = vmatpush1.xpose.msra.mxu0 0.0
      %357 = vmatprep.subr.mxu0 0.0
      %358 = vmatpush1.xpose.msra.mxu0 0.0
      %359 = vmatprep.subr.mxu0 0.0
      %360 = vmatpush1.xpose.msra.mxu0 0.0
      %361 = vmatprep.subr.mxu0 0.0
      %362 = vmatpush1.xpose.msra.mxu0 0.0
      %363 = vmatprep.subr.mxu0 0.0
      %364 = vmatpush1.xpose.msra.mxu0 0.0
      %365 = vmatprep.subr.mxu0 0.0
      %366 = vmatpush1.xpose.msra.mxu0 0.0
      %367 = vmatprep.subr.mxu0 0.0
      %368 = vmatpush1.xpose.msra.mxu0 0.0
      %369 = vmatprep.subr.mxu0 0.0
      %370 = vmatpush1.xpose.msra.mxu0 0.0
      %371 = vmatprep.subr.mxu0 0.0
      %372 = vmatpush1.xpose.msra.mxu0 0.0
      %373 = vmatprep.subr.mxu0 0.0
      %374 = vmatpush1.xpose.msra.mxu0 0.0
      %375 = vmatprep.subr.mxu0 0.0
      %376 = vmatpush1.xpose.msra.mxu0 0.0
      %377 = vmatprep.subr.mxu0 0.0
      %378 = vmatpush1.xpose.msra.mxu0 0.0
      %379 = vmatprep.subr.mxu0 0.0
      %380 = vmatpush1.xpose.msra.mxu0 0.0
      %381 = vmatprep.subr.mxu0 0.0
      %382 = vmatpush1.xpose.msra.mxu0 0.0
      %383 = vmatprep.subr.mxu0 0.0
      %384 = vmatpush1.xpose.msra.mxu0 0.0
      %385 = vmatprep.subr.mxu0 0.0
      %386 = vmatpush1.xpose.msra.mxu0 0.0
      %387 = vmatprep.subr.mxu0 0.0
      %388 = vmatpush1.xpose.msra.mxu0 0.0
      %389 = vmatprep.subr.mxu0 0.0
      %390 = vmatpush1.xpose.msra.mxu0 0.0
      %391 = vmatprep.subr.mxu0 0.0
      %392 = vmatpush1.xpose.msra.mxu0 0.0
      %393 = vmatprep.subr.mxu0 0.0
      %394 = vmatpush1.xpose.msra.mxu0 0.0
      %395 = vmatprep.subr.mxu0 0.0
      %396 = vmatpush1.xpose.msra.mxu0 0.0
      %397 = vmatprep.subr.mxu0 0.0
      %398 = vmatpush1.xpose.msra.mxu0 0.0
      %399 = vmatprep.mubr.f32.mxu0 0.0
      %400 = vmatmul.mubr.f32.gmra.mrb[0].mxu0 %v331
      %v401 = vpop.f32.mrb[0].mxu0
      %v402 = vadd.f32 0.0, %v401
      %v403 = vpop.f32.mrb[0].mxu0
      %404 = vdwg.mxu0
      %v405 = vsel %vm238, -1e+09, %v402
      %v406 = vsel %vm162, %v405, -inf
      %407 = vmax.xlane.f32.xlu0 %v406
      %v408 = vpop.xlane.xlu0 %407
      %v409 = vsub.f32 %v405, %v408
      %v410 = vmul.f32 %v409, 1.442695
      %v411 = vpow.pop %v410
      %v412 = vsel %vm162, %v411, 0.0
      %413 = vadd.xlane.f32.xlu0 %v412
      %v414 = vpop.xlane.xlu0 %413
      %v415 = vrcp.pop %v414
      %v416 = vmul.f32 %v411, %v415
      %417 = vrot.lane.b32.xlu0 %v156, 56
      %v418 = vpop.permute.xlu0 %417
      %v421 = vsel %vm162, %v416, 0
      %423 = vmatprep.subr.mxu0 0.0
      %424 = vmatpush1.msra.mxu0 %v418
      %425 = vmatprep.subr.mxu0 0.0
      %426 = vmatpush1.msra.mxu0 0.0
      %427 = vmatprep.subr.mxu0 0.0
      %428 = vmatpush1.msra.mxu0 0.0
      %429 = vmatprep.subr.mxu0 0.0
      %430 = vmatpush1.msra.mxu0 0.0
      %431 = vmatprep.subr.mxu0 0.0
      %432 = vmatpush1.msra.mxu0 0.0
      %433 = vmatprep.subr.mxu0 0.0
      %434 = vmatpush1.msra.mxu0 0.0
      %435 = vmatprep.subr.mxu0 0.0
      %436 = vmatpush1.msra.mxu0 0.0
      %437 = vmatprep.subr.mxu0 0.0
      %438 = vmatpush1.msra.mxu0 0.0
      %439 = vmatprep.subr.mxu0 0.0
      %440 = vmatpush1.msra.mxu0 0.0
      %441 = vmatprep.subr.mxu0 0.0
      %442 = vmatpush1.msra.mxu0 0.0
      %443 = vmatprep.subr.mxu0 0.0
      %444 = vmatpush1.msra.mxu0 0.0
      %445 = vmatprep.subr.mxu0 0.0
      %446 = vmatpush1.msra.mxu0 0.0
      %447 = vmatprep.subr.mxu0 0.0
      %448 = vmatpush1.msra.mxu0 0.0
      %449 = vmatprep.subr.mxu0 0.0
      %450 = vmatpush1.msra.mxu0 0.0
      %451 = vmatprep.subr.mxu0 0.0
      %452 = vmatpush1.msra.mxu0 0.0
      %453 = vmatprep.subr.mxu0 0.0
      %454 = vmatpush1.msra.mxu0 0.0
      %455 = vmatprep.subr.mxu0 0.0
      %456 = vmatpush1.msra.mxu0 0.0
      %457 = vmatprep.subr.mxu0 0.0
      %458 = vmatpush1.msra.mxu0 0.0
      %459 = vmatprep.subr.mxu0 0.0
      %460 = vmatpush1.msra.mxu0 0.0
      %461 = vmatprep.subr.mxu0 0.0
      %462 = vmatpush1.msra.mxu0 0.0
      %463 = vmatprep.subr.mxu0 0.0
      %464 = vmatpush1.msra.mxu0 0.0
      %465 = vmatprep.subr.mxu0 0.0
      %466 = vmatpush1.msra.mxu0 0.0
      %467 = vmatprep.subr.mxu0 0.0
      %468 = vmatpush1.msra.mxu0 0.0
      %469 = vmatprep.subr.mxu0 0.0
      %470 = vmatpush1.msra.mxu0 0.0
      %471 = vmatprep.subr.mxu0 0.0
      %472 = vmatpush1.msra.mxu0 0.0
      %473 = vmatprep.subr.mxu0 0.0
      %474 = vmatpush1.msra.mxu0 0.0
      %475 = vmatprep.subr.mxu0 0.0
      %476 = vmatpush1.msra.mxu0 0.0
      %477 = vmatprep.subr.mxu0 0.0
      %478 = vmatpush1.msra.mxu0 0.0
      %479 = vmatprep.subr.mxu0 0.0
      %480 = vmatpush1.msra.mxu0 0.0
      %481 = vmatprep.subr.mxu0 0.0
      %482 = vmatpush1.msra.mxu0 0.0
      %483 = vmatprep.subr.mxu0 0.0
      %484 = vmatpush1.msra.mxu0 0.0
      %485 = vmatprep.subr.mxu0 0.0
      %486 = vmatpush1.msra.mxu0 0.0
      %487 = vmatprep.mubr.f32.mxu0 0.0
      %488 = vmatmul.mubr.f32.gmra.mrb[0].mxu0 %v421
      %v489 = vpop.f32.mrb[0].mxu0
      %v490 = vadd.f32 0.0, %v489
      %v491 = vpop.f32.mrb[0].mxu0
      %492 = vdwg.mxu0
      %493 = vrot.lane.b32.xlu0 %v158, 112
      %v494 = vpop.permute.xlu0 %493
      %495 = vrot.lane.b32.xlu0 %v156, 80
      %v496 = vpop.permute.xlu0 %495
      %v497 = vsel %vm162, %v494, 0
      %v499 = vsel %vm162, %v496, 0
      %501 = vmatprep.subr.mxu0 0.0
      %502 = vmatpush1.xpose.msra.mxu0 %v499
      %503 = vmatprep.subr.mxu0 0.0
      %504 = vmatpush1.xpose.msra.mxu0 0.0
      %505 = vmatprep.subr.mxu0 0.0
      %506 = vmatpush1.xpose.msra.mxu0 0.0
      %507 = vmatprep.subr.mxu0 0.0
      %508 = vmatpush1.xpose.msra.mxu0 0.0
      %509 = vmatprep.subr.mxu0 0.0
      %510 = vmatpush1.xpose.msra.mxu0 0.0
      %511 = vmatprep.subr.mxu0 0.0
      %512 = vmatpush1.xpose.msra.mxu0 0.0
      %513 = vmatprep.subr.mxu0 0.0
      %514 = vmatpush1.xpose.msra.mxu0 0.0
      %515 = vmatprep.subr.mxu0 0.0
      %516 = vmatpush1.xpose.msra.mxu0 0.0
      %517 = vmatprep.subr.mxu0 0.0
      %518 = vmatpush1.xpose.msra.mxu0 0.0
      %519 = vmatprep.subr.mxu0 0.0
      %520 = vmatpush1.xpose.msra.mxu0 0.0
      %521 = vmatprep.subr.mxu0 0.0
      %522 = vmatpush1.xpose.msra.mxu0 0.0
      %523 = vmatprep.subr.mxu0 0.0
      %524 = vmatpush1.xpose.msra.mxu0 0.0
      %525 = vmatprep.subr.mxu0 0.0
      %526 = vmatpush1.xpose.msra.mxu0 0.0
      %527 = vmatprep.subr.mxu0 0.0
      %528 = vmatpush1.xpose.msra.mxu0 0.0
      %529 = vmatprep.subr.mxu0 0.0
      %530 = vmatpush1.xpose.msra.mxu0 0.0
      %531 = vmatprep.subr.mxu0 0.0
      %532 = vmatpush1.xpose.msra.mxu0 0.0
      %533 = vmatprep.subr.mxu0 0.0
      %534 = vmatpush1.xpose.msra.mxu0 0.0
      %535 = vmatprep.subr.mxu0 0.0
      %536 = vmatpush1.xpose.msra.mxu0 0.0
      %537 = vmatprep.subr.mxu0 0.0
      %538 = vmatpush1.xpose.msra.mxu0 0.0
      %539 = vmatprep.subr.mxu0 0.0
      %540 = vmatpush1.xpose.msra.mxu0 0.0
      %541 = vmatprep.subr.mxu0 0.0
      %542 = vmatpush1.xpose.msra.mxu0 0.0
      %543 = vmatprep.subr.mxu0 0.0
      %544 = vmatpush1.xpose.msra.mxu0 0.0
      %545 = vmatprep.subr.mxu0 0.0
      %546 = vmatpush1.xpose.msra.mxu0 0.0
      %547 = vmatprep.subr.mxu0 0.0
      %548 = vmatpush1.xpose.msra.mxu0 0.0
      %549 = vmatprep.subr.mxu0 0.0
      %550 = vmatpush1.xpose.msra.mxu0 0.0
      %551 = vmatprep.subr.mxu0 0.0
      %552 = vmatpush1.xpose.msra.mxu0 0.0
      %553 = vmatprep.subr.mxu0 0.0
      %554 = vmatpush1.xpose.msra.mxu0 0.0
      %555 = vmatprep.subr.mxu0 0.0
      %556 = vmatpush1.xpose.msra.mxu0 0.0
      %557 = vmatprep.subr.mxu0 0.0
      %558 = vmatpush1.xpose.msra.mxu0 0.0
      %559 = vmatprep.subr.mxu0 0.0
      %560 = vmatpush1.xpose.msra.mxu0 0.0
      %561 = vmatprep.subr.mxu0 0.0
      %562 = vmatpush1.xpose.msra.mxu0 0.0
      %563 = vmatprep.subr.mxu0 0.0
      %564 = vmatpush1.xpose.msra.mxu0 0.0
      %565 = vmatprep.mubr.f32.mxu0 0.0
      %566 = vmatmul.mubr.f32.gmra.mrb[0].mxu0 %v497
      %v567 = vpop.f32.mrb[0].mxu0
      %v568 = vadd.f32 0.0, %v567
      %v569 = vpop.f32.mrb[0].mxu0
      %570 = vdwg.mxu0
      %v571 = vsel %vm238, -1e+09, %v568
      %v572 = vsel %vm162, %v571, -inf
      %573 = vmax.xlane.f32.xlu0 %v572
      %v574 = vpop.xlane.xlu0 %573
      %v575 = vsub.f32 %v571, %v574
      %v576 = vmul.f32 %v575, 1.442695
      %v577 = vpow.pop %v576
      %v578 = vsel %vm162, %v577, 0.0
      %579 = vadd.xlane.f32.xlu0 %v578
      %v580 = vpop.xlane.xlu0 %579
      %v581 = vrcp.pop %v580
      %v582 = vmul.f32 %v577, %v581
      %583 = vrot.lane.b32.xlu0 %v156, 48
      %v584 = vpop.permute.xlu0 %583
      %v587 = vsel %vm162, %v582, 0
      %589 = vmatprep.subr.mxu0 0.0
      %590 = vmatpush1.msra.mxu0 %v584
      %591 = vmatprep.subr.mxu0 0.0
      %592 = vmatpush1.msra.mxu0 0.0
      %593 = vmatprep.subr.mxu0 0.0
      %594 = vmatpush1.msra.mxu0 0.0
      %595 = vmatprep.subr.mxu0 0.0
      %596 = vmatpush1.msra.mxu0 0.0
      %597 = vmatprep.subr.mxu0 0.0
      %598 = vmatpush1.msra.mxu0 0.0
      %599 = vmatprep.subr.mxu0 0.0
      %600 = vmatpush1.msra.mxu0 0.0
      %601 = vmatprep.subr.mxu0 0.0
      %602 = vmatpush1.msra.mxu0 0.0
      %603 = vmatprep.subr.mxu0 0.0
      %604 = vmatpush1.msra.mxu0 0.0
      %605 = vmatprep.subr.mxu0 0.0
      %606 = vmatpush1.msra.mxu0 0.0
      %607 = vmatprep.subr.mxu0 0.0
      %608 = vmatpush1.msra.mxu0 0.0
      %609 = vmatprep.subr.mxu0 0.0
      %610 = vmatpush1.msra.mxu0 0.0
      %611 = vmatprep.subr.mxu0 0.0
      %612 = vmatpush1.msra.mxu0 0.0
      %613 = vmatprep.subr.mxu0 0.0
      %614 = vmatpush1.msra.mxu0 0.0
      %615 = vmatprep.subr.mxu0 0.0
      %616 = vmatpush1.msra.mxu0 0.0
      %617 = vmatprep.subr.mxu0 0.0
      %618 = vmatpush1.msra.mxu0 0.0
      %619 = vmatprep.subr.mxu0 0.0
      %620 = vmatpush1.msra.mxu0 0.0
      %621 = vmatprep.subr.mxu0 0.0
      %622 = vmatpush1.msra.mxu0 0.0
      %623 = vmatprep.subr.mxu0 0.0
      %624 = vmatpush1.msra.mxu0 0.0
      %625 = vmatprep.subr.mxu0 0.0
      %626 = vmatpush1.msra.mxu0 0.0
      %627 = vmatprep.subr.mxu0 0.0
      %628 = vmatpush1.msra.mxu0 0.0
      %629 = vmatprep.subr.mxu0 0.0
      %630 = vmatpush1.msra.mxu0 0.0
      %631 = vmatprep.subr.mxu0 0.0
      %632 = vmatpush1.msra.mxu0 0.0
      %633 = vmatprep.subr.mxu0 0.0
      %634 = vmatpush1.msra.mxu0 0.0
      %635 = vmatprep.subr.mxu0 0.0
      %636 = vmatpush1.msra.mxu0 0.0
      %637 = vmatprep.subr.mxu0 0.0
      %638 = vmatpush1.msra.mxu0 0.0
      %639 = vmatprep.subr.mxu0 0.0
      %640 = vmatpush1.msra.mxu0 0.0
      %641 = vmatprep.subr.mxu0 0.0
      %642 = vmatpush1.msra.mxu0 0.0
      %643 = vmatprep.subr.mxu0 0.0
      %644 = vmatpush1.msra.mxu0 0.0
      %645 = vmatprep.subr.mxu0 0.0
      %646 = vmatpush1.msra.mxu0 0.0
      %647 = vmatprep.subr.mxu0 0.0
      %648 = vmatpush1.msra.mxu0 0.0
      %649 = vmatprep.subr.mxu0 0.0
      %650 = vmatpush1.msra.mxu0 0.0
      %651 = vmatprep.subr.mxu0 0.0
      %652 = vmatpush1.msra.mxu0 0.0
      %653 = vmatprep.mubr.f32.mxu0 0.0
      %654 = vmatmul.mubr.f32.gmra.mrb[0].mxu0 %v587
      %v655 = vpop.f32.mrb[0].mxu0
      %v656 = vadd.f32 0.0, %v655
      %v657 = vpop.f32.mrb[0].mxu0
      %658 = vdwg.mxu0
      %659 = vrot.lane.b32.xlu0 %v158, 104
      %v660 = vpop.permute.xlu0 %659
      %661 = vrot.lane.b32.xlu0 %v156, 72
      %v662 = vpop.permute.xlu0 %661
      %v663 = vsel %vm162, %v660, 0
      %v665 = vsel %vm162, %v662, 0
      %667 = vmatprep.subr.mxu0 0.0
      %668 = vmatpush1.xpose.msra.mxu0 %v665
      %669 = vmatprep.subr.mxu0 0.0
      %670 = vmatpush1.xpose.msra.mxu0 0.0
      %671 = vmatprep.subr.mxu0 0.0
      %672 = vmatpush1.xpose.msra.mxu0 0.0
      %673 = vmatprep.subr.mxu0 0.0
      %674 = vmatpush1.xpose.msra.mxu0 0.0
      %675 = vmatprep.subr.mxu0 0.0
      %676 = vmatpush1.xpose.msra.mxu0 0.0
      %677 = vmatprep.subr.mxu0 0.0
      %678 = vmatpush1.xpose.msra.mxu0 0.0
      %679 = vmatprep.subr.mxu0 0.0
      %680 = vmatpush1.xpose.msra.mxu0 0.0
      %681 = vmatprep.subr.mxu0 0.0
      %682 = vmatpush1.xpose.msra.mxu0 0.0
      %683 = vmatprep.subr.mxu0 0.0
      %684 = vmatpush1.xpose.msra.mxu0 0.0
      %685 = vmatprep.subr.mxu0 0.0
      %686 = vmatpush1.xpose.msra.mxu0 0.0
      %687 = vmatprep.subr.mxu0 0.0
      %688 = vmatpush1.xpose.msra.mxu0 0.0
      %689 = vmatprep.subr.mxu0 0.0
      %690 = vmatpush1.xpose.msra.mxu0 0.0
      %691 = vmatprep.subr.mxu0 0.0
      %692 = vmatpush1.xpose.msra.mxu0 0.0
      %693 = vmatprep.subr.mxu0 0.0
      %694 = vmatpush1.xpose.msra.mxu0 0.0
      %695 = vmatprep.subr.mxu0 0.0
      %696 = vmatpush1.xpose.msra.mxu0 0.0
      %697 = vmatprep.subr.mxu0 0.0
      %698 = vmatpush1.xpose.msra.mxu0 0.0
      %699 = vmatprep.subr.mxu0 0.0
      %700 = vmatpush1.xpose.msra.mxu0 0.0
      %701 = vmatprep.subr.mxu0 0.0
      %702 = vmatpush1.xpose.msra.mxu0 0.0
      %703 = vmatprep.subr.mxu0 0.0
      %704 = vmatpush1.xpose.msra.mxu0 0.0
      %705 = vmatprep.subr.mxu0 0.0
      %706 = vmatpush1.xpose.msra.mxu0 0.0
      %707 = vmatprep.subr.mxu0 0.0
      %708 = vmatpush1.xpose.msra.mxu0 0.0
      %709 = vmatprep.subr.mxu0 0.0
      %710 = vmatpush1.xpose.msra.mxu0 0.0
      %711 = vmatprep.subr.mxu0 0.0
      %712 = vmatpush1.xpose.msra.mxu0 0.0
      %713 = vmatprep.subr.mxu0 0.0
      %714 = vmatpush1.xpose.msra.mxu0 0.0
      %715 = vmatprep.subr.mxu0 0.0
      %716 = vmatpush1.xpose.msra.mxu0 0.0
      %717 = vmatprep.subr.mxu0 0.0
      %718 = vmatpush1.xpose.msra.mxu0 0.0
      %719 = vmatprep.subr.mxu0 0.0
      %720 = vmatpush1.xpose.msra.mxu0 0.0
      %721 = vmatprep.subr.mxu0 0.0
      %722 = vmatpush1.xpose.msra.mxu0 0.0
      %723 = vmatprep.subr.mxu0 0.0
      %724 = vmatpush1.xpose.msra.mxu0 0.0
      %725 = vmatprep.subr.mxu0 0.0
      %726 = vmatpush1.xpose.msra.mxu0 0.0
      %727 = vmatprep.subr.mxu0 0.0
      %728 = vmatpush1.xpose.msra.mxu0 0.0
      %729 = vmatprep.subr.mxu0 0.0
      %730 = vmatpush1.xpose.msra.mxu0 0.0
      %731 = vmatprep.mubr.f32.mxu0 0.0
      %732 = vmatmul.mubr.f32.gmra.mrb[0].mxu0 %v663
      %v733 = vpop.f32.mrb[0].mxu0
      %v734 = vadd.f32 0.0, %v733
      %v735 = vpop.f32.mrb[0].mxu0
      %736 = vdwg.mxu0
      %v737 = vsel %vm238, -1e+09, %v734
      %v738 = vsel %vm162, %v737, -inf
      %739 = vmax.xlane.f32.xlu0 %v738
      %v740 = vpop.xlane.xlu0 %739
      %v741 = vsub.f32 %v737, %v740
      %v742 = vmul.f32 %v741, 1.442695
      %v743 = vpow.pop %v742
      %v744 = vsel %vm162, %v743, 0.0
      %745 = vadd.xlane.f32.xlu0 %v744
      %v746 = vpop.xlane.xlu0 %745
      %v747 = vrcp.pop %v746
      %v748 = vmul.f32 %v743, %v747
      %749 = vrot.lane.b32.xlu0 %v156, 40
      %v750 = vpop.permute.xlu0 %749
      %v753 = vsel %vm162, %v748, 0
      %755 = vmatprep.subr.mxu0 0.0
      %756 = vmatpush1.msra.mxu0 %v750
      %757 = vmatprep.subr.mxu0 0.0
      %758 = vmatpush1.msra.mxu0 0.0
      %759 = vmatprep.subr.mxu0 0.0
      %760 = vmatpush1.msra.mxu0 0.0
      %761 = vmatprep.subr.mxu0 0.0
      %762 = vmatpush1.msra.mxu0 0.0
      %763 = vmatprep.subr.mxu0 0.0
      %764 = vmatpush1.msra.mxu0 0.0
      %765 = vmatprep.subr.mxu0 0.0
      %766 = vmatpush1.msra.mxu0 0.0
      %767 = vmatprep.subr.mxu0 0.0
      %768 = vmatpush1.msra.mxu0 0.0
      %769 = vmatprep.subr.mxu0 0.0
      %770 = vmatpush1.msra.mxu0 0.0
      %771 = vmatprep.subr.mxu0 0.0
      %772 = vmatpush1.msra.mxu0 0.0
      %773 = vmatprep.subr.mxu0 0.0
      %774 = vmatpush1.msra.mxu0 0.0
      %775 = vmatprep.subr.mxu0 0.0
      %776 = vmatpush1.msra.mxu0 0.0
      %777 = vmatprep.subr.mxu0 0.0
      %778 = vmatpush1.msra.mxu0 0.0
      %779 = vmatprep.subr.mxu0 0.0
      %780 = vmatpush1.msra.mxu0 0.0
      %781 = vmatprep.subr.mxu0 0.0
      %782 = vmatpush1.msra.mxu0 0.0
      %783 = vmatprep.subr.mxu0 0.0
      %784 = vmatpush1.msra.mxu0 0.0
      %785 = vmatprep.subr.mxu0 0.0
      %786 = vmatpush1.msra.mxu0 0.0
      %787 = vmatprep.subr.mxu0 0.0
      %788 = vmatpush1.msra.mxu0 0.0
      %789 = vmatprep.subr.mxu0 0.0
      %790 = vmatpush1.msra.mxu0 0.0
      %791 = vmatprep.subr.mxu0 0.0
      %792 = vmatpush1.msra.mxu0 0.0
      %793 = vmatprep.subr.mxu0 0.0
      %794 = vmatpush1.msra.mxu0 0.0
      %795 = vmatprep.subr.mxu0 0.0
      %796 = vmatpush1.msra.mxu0 0.0
      %797 = vmatprep.subr.mxu0 0.0
      %798 = vmatpush1.msra.mxu0 0.0
      %799 = vmatprep.subr.mxu0 0.0
      %800 = vmatpush1.msra.mxu0 0.0
      %801 = vmatprep.subr.mxu0 0.0
      %802 = vmatpush1.msra.mxu0 0.0
      %803 = vmatprep.subr.mxu0 0.0
      %804 = vmatpush1.msra.mxu0 0.0
      %805 = vmatprep.subr.mxu0 0.0
      %806 = vmatpush1.msra.mxu0 0.0
      %807 = vmatprep.subr.mxu0 0.0
      %808 = vmatpush1.msra.mxu0 0.0
      %809 = vmatprep.subr.mxu0 0.0
      %810 = vmatpush1.msra.mxu0 0.0
      %811 = vmatprep.subr.mxu0 0.0
      %812 = vmatpush1.msra.mxu0 0.0
      %813 = vmatprep.subr.mxu0 0.0
      %814 = vmatpush1.msra.mxu0 0.0
      %815 = vmatprep.subr.mxu0 0.0
      %816 = vmatpush1.msra.mxu0 0.0
      %817 = vmatprep.subr.mxu0 0.0
      %818 = vmatpush1.msra.mxu0 0.0
      %819 = vmatprep.mubr.f32.mxu0 0.0
      %820 = vmatmul.mubr.f32.gmra.mrb[0].mxu0 %v753
      %v821 = vpop.f32.mrb[0].mxu0
      %v822 = vadd.f32 0.0, %v821
      %v823 = vpop.f32.mrb[0].mxu0
      %824 = vdwg.mxu0
      %826 = vrot.lane.b32.xlu0 %v490, 8
      %v827 = vpop.permute.xlu0 %826
      %830 = vrot.lane.b32.xlu0 %v656, 16
      %v831 = vpop.permute.xlu0 %830
      %834 = vrot.lane.b32.xlu0 %v822, 24
      %v835 = vpop.permute.xlu0 %834
      %v837 = vsel %vm162, %v324, %v827
      %vm838 = vcmask 130048
      %v839 = vsel %vm838, %v837, %v831
      %vm840 = vcmask 195584
      %v841 = vsel %vm840, %v839, %v835
      %vm842 = vcmask 261120
      %843 = vst.msk [vmem:[%s155] sm:$0xff] %vm842, %v841
      %p844 = scmp.lt.s32.totalorder %s13, 1
      %s845 = scalar_select %p844, %s13, 1
      %s846 = smul.addr %s845, 8
      %s847 = scalar_lea.vmem %s2, %s846
      // Predicated region
      $region29: #{jambu_forward.42} parent=27 // pred_check
        %p848 = pneg %p83
      $region30: #{jambu_forward.42} parent=27 // pred_check_branch
        %850 = sbr.rel (%p848) target = $region32
      $region31: #{jambu_forward.42} parent=27 // pred_region
        _
      $region32: #{jambu_forward.42} parent=27 // pred_fallthru
        _
    $region28: #{jambu_forward.42} parent=5 // pred_fallthru
      _
    %p851 = scmp.le.s32.totalorder 2, %s8
    // Predicated region
    $region33: #{jambu_forward.42} parent=5 // pred_check
      %p852 = pneg %p851
    $region34: #{jambu_forward.42} parent=5 // pred_check_branch
      %854 = sbr.rel (%p852) target = $region36
    $region35: #{jambu_forward.42} parent=5 // pred_region
      %s855 = ssub.s32 %s8, 2
      // Predicated region
      $region37: #{jambu_forward.42} parent=35 // pred_check
        %p856 = pneg %p89
      $region38: #{jambu_forward.42} parent=35 // pred_check_branch
        %858 = sbr.rel (%p856) target = $region40
      $region39: #{jambu_forward.42} parent=35 // pred_region
        %p859 = scmp.lt.s32.totalorder %s14, 1
        %s860 = scalar_select %p859, %s14, 1
        %s861 = smul.addr %s860, 8
        %s862 = scalar_lea.vmem %s2, %s861
      $region40: #{jambu_forward.42} parent=35 // pred_fallthru
        _
    $region36: #{jambu_forward.42} parent=5 // pred_fallthru
      _
  $region6: #{jambu_forward.42} parent=0 // loop_footer
    %s12 = sadd.s32 1, %s8
  $region7: #{jambu_forward.42} parent=0 // loop_footer_branch
    %7 = sbr.rel target = $region3
  $region8: #{jambu_forward.42} parent=0 // loop_exit
    _

// kernel: jambu_forward.59
$region0: #{jambu_forward.59}
  #allocation0 [shape = 'u32[]', space=smem, size = 0x4, offset = 0x4, fixed_abs, tag = 'smem constant byte address 0x4 - core index']
  #allocation1 [shape = 'u32[144,128]{1,0:T(1,128)}', space=vmem, size = 0x12000, scoped, tag = 'internal scratch']
  %s0 = inlined_call_operand.vmem [shape: f32[16,32], index: 0, kind: input, shape index: {}]
  %s1 = inlined_call_operand.vmem [shape: f32[1,32], index: 1, kind: input, shape index: {}]
  %s2 = inlined_call_operand.vmem [shape: f32[1,32], index: 2, kind: input, shape index: {}]
  %s3 = inlined_call_operand.hbm [shape: f32[16,32], index: 3, kind: output, shape index: {}]
  %s4 = sld [smem:[#allocation0]]
  $region22: #{jambu_forward.59} parent=0
    _
  %s6 = ssub.s32 1, %s4
  %s7 = scalar_select 0, %s6, %s4
  $region1: #{jambu_forward.59} parent=0
    #allocation2 [shape = 'u8[8192]{0}', space=vmem, size = 0x2000, scoped, tag = 'output window, operand 0, single buffered']
    #allocation3 [shape = 's32[1]{0}', space=sflag, size = 0x4, scoped, tag = 'scoped memory for jambu_forward.59']
    %8 = vsyncpa [#allocation3], 0
    // Predicated region
    $region2: #{jambu_forward.59} parent=1 // pred_check
      _
    $region3: #{jambu_forward.59} parent=1 // pred_check_branch
      %10 = sbr.rel (0) target = $region5
    $region4: #{jambu_forward.59} parent=1 // pred_region
      _
    $region5: #{jambu_forward.59} parent=1 // pred_fallthru
      _
    // Predicated region
    $region6: #{jambu_forward.59} parent=1 // pred_check
      _
    $region7: #{jambu_forward.59} parent=1 // pred_check_branch
      %12 = sbr.rel (0) target = $region9
    $region8: #{jambu_forward.59} parent=1 // pred_region
      _
    $region9: #{jambu_forward.59} parent=1 // pred_fallthru
      _
    // Predicated region
    $region10: #{jambu_forward.59} parent=1 // pred_check
      _
    $region11: #{jambu_forward.59} parent=1 // pred_check_branch
      %14 = sbr.rel (0) target = $region13
    $region12: #{jambu_forward.59} parent=1 // pred_region
      _
    $region13: #{jambu_forward.59} parent=1 // pred_fallthru
      _
    %v15 = vld [vmem:[%s0] sm:$0xff]
    %v16 = vld [vmem:[%s0 + $0x8] sm:$0xff]
    %vm17 = vcmask 261120
    %v18 = vsel %vm17, %v15, 0.0
    %19 = vadd.xlane.f32.xlu0 %v18
    %v20 = vpop.xlane.xlu0 %19
    %v21 = vsel %vm17, %v16, 0.0
    %22 = vadd.xlane.f32.xlu0 %v21
    %v23 = vpop.xlane.xlu0 %22
    %v24 = vrcp.pop 32.0
    %v25 = vmul.f32 %v20, %v24
    %v26 = vmul.f32 %v23, %v24
    %v27 = vsub.f32 %v15, %v25
    %v28 = vsub.f32 %v16, %v26
    %v29 = vmul.f32 %v27, %v27
    %v30 = vmul.f32 %v28, %v28
    %v31 = vsel %vm17, %v29, 0.0
    %32 = vadd.xlane.f32.xlu0 %v31
    %v33 = vpop.xlane.xlu0 %32
    %v34 = vsel %vm17, %v30, 0.0
    %35 = vadd.xlane.f32.xlu0 %v34
    %v36 = vpop.xlane.xlu0 %35
    %v37 = vrcp.pop 31.0
    %v38 = vmul.f32 %v33, %v37
    %v39 = vmul.f32 %v36, %v37
    %v40 = vld [vmem:[%s1] sm:$0x1]
    %v42 = vlaneseq
    %v43 = vshrl.u32 %v42, 7
    %v44 = vsub.s32 0, %v43
    %v45 = vrot.slane %v40, %v44
    %v47 = vmul.f32 %v45, %v27
    %v48 = vmul.f32 %v45, %v28
    %v49 = vrsqrt.pop %v38
    %v50 = vmul.f32 %v38, %v49
    %vm51 = vcmp.eq.f32.partialorder %v38, inf
    %v52 = vsel %vm51, %v38, %v50
    %vm53 = vcmp.eq.f32.partialorder %v38, 0.0
    %v54 = vand.u32 %v38, 2147483648
    %v55 = vsel %vm53, %v54, %v52
    %v56 = vrsqrt.pop %v39
    %v57 = vmul.f32 %v39, %v56
    %vm58 = vcmp.eq.f32.partialorder %v39, inf
    %v59 = vsel %vm58, %v39, %v57
    %vm60 = vcmp.eq.f32.partialorder %v39, 0.0
    %v61 = vand.u32 %v39, 2147483648
    %v62 = vsel %vm60, %v61, %v59
    %v63 = vadd.f32 %v55, 1e-06
    %v64 = vadd.f32 %v62, 1e-06
    %v65 = vrcp.pop %v63
    %v66 = vmul.f32 %v47, %v65
    %v67 = vrcp.pop %v64
    %v68 = vmul.f32 %v48, %v67
    %v69 = vld [vmem:[%s2] sm:$0x1]
    %v71 = vlaneseq
    %v72 = vshrl.u32 %v71, 7
    %v73 = vsub.s32 0, %v72
    %v74 = vrot.slane %v69, %v73
    %v76 = vadd.f32 %v66, %v74
    %v77 = vadd.f32 %v68, %v74
    %78 = vst.msk [vmem:[#allocation2] sm:$0xff] %vm17, %v76
    %79 = vst.msk [vmem:[#allocation2 + $0x8] sm:$0xff] %vm17, %v77
    // Predicated region
    $region14: #{jambu_forward.59} parent=1 // pred_check
      _
    $region15: #{jambu_forward.59} parent=1 // pred_check_branch
      %81 = sbr.rel (0) target = $region17
    $region16: #{jambu_forward.59} parent=1 // pred_region
      %s83 = ssub.s32 256, 256
      %84 = vsyncadd [#allocation3], %s83
      %s85 = sshll.u32 [#allocation2], 4
      %s86 = int_to_ptr.vmem [resolvable:$true] %s85
      %91 = dma.vmem_to_hbm [thread:$0]  %s86, 256, %s3, [#allocation3], 128, 128, 8
    $region17: #{jambu_forward.59} parent=1 // pred_fallthru
      _
    // Predicated region
    $region18: #{jambu_forward.59} parent=1 // pred_check
      _
    $region19: #{jambu_forward.59} parent=1 // pred_check_branch
      %93 = sbr.rel (0) target = $region21
    $region20: #{jambu_forward.59} parent=1 // pred_region
      %94 = dma.done [#allocation3], 256
    $region21: #{jambu_forward.59} parent=1 // pred_fallthru
      _
    %95 = vsyncpa [#allocation3], 1

// kernel: jambu_forward.44
$region0: #{jambu_forward.44}
  #allocation0 [shape = 'u32[]', space=smem, size = 0x4, offset = 0x4, fixed_abs, tag = 'smem constant byte address 0x4 - core index']
  #allocation1 [shape = 'u32[144,128]{1,0:T(1,128)}', space=vmem, size = 0x12000, scoped, tag = 'internal scratch']
  %s0 = inlined_call_operand.vmem [shape: f32[16,32], index: 0, kind: input, shape index: {}]
  %s1 = inlined_call_operand.vmem [shape: f32[1,32], index: 1, kind: input, shape index: {}]
  %s2 = inlined_call_operand.vmem [shape: f32[1,32], index: 2, kind: input, shape index: {}]
  %s3 = inlined_call_operand.vmem [shape: f32[32,32], index: 3, kind: input, shape index: {}]
  %s4 = inlined_call_operand.vmem [shape: f32[1,32], index: 4, kind: input, shape index: {}]
  %s5 = inlined_call_operand.vmem [shape: f32[16,32], index: 5, kind: output, shape index: {}]
  %s6 = sld [smem:[#allocation0]]
  $region30: #{jambu_forward.44} parent=0
    _
  %s8 = ssub.s32 1, %s6
  %s9 = scalar_select 0, %s8, %s6
  // Predicated region
  $region2: #{jambu_forward.44} parent=0 // pred_check
    _
  $region3: #{jambu_forward.44} parent=0 // pred_check_branch
    %11 = sbr.rel (0) target = $region5
  $region4: #{jambu_forward.44} parent=0 // pred_region
    _
  $region5: #{jambu_forward.44} parent=0 // pred_fallthru
    _
  // Predicated region
  $region6: #{jambu_forward.44} parent=0 // pred_check
    _
  $region7: #{jambu_forward.44} parent=0 // pred_check_branch
    %13 = sbr.rel (0) target = $region9
  $region8: #{jambu_forward.44} parent=0 // pred_region
    _
  $region9: #{jambu_forward.44} parent=0 // pred_fallthru
    _
  // Predicated region
  $region10: #{jambu_forward.44} parent=0 // pred_check
    _
  $region11: #{jambu_forward.44} parent=0 // pred_check_branch
    %15 = sbr.rel (0) target = $region13
  $region12: #{jambu_forward.44} parent=0 // pred_region
    _
  $region13: #{jambu_forward.44} parent=0 // pred_fallthru
    _
  // Predicated region
  $region14: #{jambu_forward.44} parent=0 // pred_check
    _
  $region15: #{jambu_forward.44} parent=0 // pred_check_branch
    %17 = sbr.rel (0) target = $region17
  $region16: #{jambu_forward.44} parent=0 // pred_region
    _
  $region17: #{jambu_forward.44} parent=0 // pred_fallthru
    _
  // Predicated region
  $region18: #{jambu_forward.44} parent=0 // pred_check
    _
  $region19: #{jambu_forward.44} parent=0 // pred_check_branch
    %19 = sbr.rel (0) target = $region21
  $region20: #{jambu_forward.44} parent=0 // pred_region
    _
  $region21: #{jambu_forward.44} parent=0 // pred_fallthru
    _
  %v20 = vld [vmem:[%s0] sm:$0xff]
  %v21 = vld [vmem:[%s0 + $0x8] sm:$0xff]
  %vm22 = vcmask 261120
  %v23 = vsel %vm22, %v20, 0.0
  %24 = vadd.xlane.f32.xlu0 %v23
  %v25 = vpop.xlane.xlu0 %24
  %v26 = vsel %vm22, %v21, 0.0
  %27 = vadd.xlane.f32.xlu0 %v26
  %v28 = vpop.xlane.xlu0 %27
  %v29 = vrcp.pop 32.0
  %v30 = vmul.f32 %v25, %v29
  %v31 = vmul.f32 %v28, %v29
  %v32 = vsub.f32 %v20, %v30
  %v33 = vsub.f32 %v21, %v31
  %v34 = vmul.f32 %v32, %v32
  %v35 = vmul.f32 %v33, %v33
  %v36 = vsel %vm22, %v34, 0.0
  %37 = vadd.xlane.f32.xlu0 %v36
  %v38 = vpop.xlane.xlu0 %37
  %v39 = vsel %vm22, %v35, 0.0
  %40 = vadd.xlane.f32.xlu0 %v39
  %v41 = vpop.xlane.xlu0 %40
  %v42 = vrcp.pop 31.0
  %v43 = vmul.f32 %v38, %v42
  %v44 = vmul.f32 %v41, %v42
  %v45 = vld [vmem:[%s1] sm:$0x1]
  %v47 = vlaneseq
  %v48 = vshrl.u32 %v47, 7
  %v49 = vsub.s32 0, %v48
  %v50 = vrot.slane %v45, %v49
  %v52 = vmul.f32 %v50, %v32
  %v53 = vmul.f32 %v50, %v33
  %v54 = vrsqrt.pop %v43
  %v55 = vmul.f32 %v43, %v54
  %vm56 = vcmp.eq.f32.partialorder %v43, inf
  %v57 = vsel %vm56, %v43, %v55
  %vm58 = vcmp.eq.f32.partialorder %v43, 0.0
  %v59 = vand.u32 %v43, 2147483648
  %v60 = vsel %vm58, %v59, %v57
  %v61 = vrsqrt.pop %v44
  %v62 = vmul.f32 %v44, %v61
  %vm63 = vcmp.eq.f32.partialorder %v44, inf
  %v64 = vsel %vm63, %v44, %v62
  %vm65 = vcmp.eq.f32.partialorder %v44, 0.0
  %v66 = vand.u32 %v44, 2147483648
  %v67 = vsel %vm65, %v66, %v64
  %v68 = vadd.f32 %v60, 1e-06
  %v69 = vadd.f32 %v67, 1e-06
  %v70 = vrcp.pop %v68
  %v71 = vmul.f32 %v52, %v70
  %v72 = vrcp.pop %v69
  %v73 = vmul.f32 %v53, %v72
  %v74 = vld [vmem:[%s2] sm:$0x1]
  %v76 = vlaneseq
  %v77 = vshrl.u32 %v76, 7
  %v78 = vsub.s32 0, %v77
  %v79 = vrot.slane %v74, %v78
  %v81 = vadd.f32 %v71, %v79
  %v82 = vadd.f32 %v73, %v79
  %v83 = vld [vmem:[%s3] sm:$0xff]
  %v84 = vld [vmem:[%s3 + $0x8] sm:$0xff]
  %v85 = vld [vmem:[%s3 + $0x10] sm:$0xff]
  %v86 = vld [vmem:[%s3 + $0x18] sm:$0xff]
  %v87 = vld [vmem:[%s4] sm:$0x1]
  %v89 = vlaneseq
  %v90 = vshrl.u32 %v89, 7
  %v91 = vsub.s32 0, %v90
  %v92 = vrot.slane %v87, %v91
  %v95 = vsel %vm22, %v81, 0
  %v98 = vsel %vm22, %v82, 0
  %100 = vmatprep.subr.mxu0 0.0
  %101 = vmatpush1.msra.mxu0 %v83
  %102 = vmatprep.subr.mxu0 0.0
  %103 = vmatpush1.msra.mxu0 %v84
  %104 = vmatprep.subr.mxu0 0.0
  %105 = vmatpush1.msra.mxu0 %v85
  %106 = vmatprep.subr.mxu0 0.0
  %107 = vmatpush1.msra.mxu0 %v86
  %108 = vmatprep.subr.mxu0 0.0
  %109 = vmatpush1.msra.mxu0 0.0
  %110 = vmatprep.subr.mxu0 0.0
  %111 = vmatpush1.msra.mxu0 0.0
  %112 = vmatprep.subr.mxu0 0.0
  %113 = vmatpush1.msra.mxu0 0.0
  %114 = vmatprep.subr.mxu0 0.0
  %115 = vmatpush1.msra.mxu0 0.0
  %116 = vmatprep.subr.mxu0 0.0
  %117 = vmatpush1.msra.mxu0 0.0
  %118 = vmatprep.subr.mxu0 0.0
  %119 = vmatpush1.msra.mxu0 0.0
  %120 = vmatprep.subr.mxu0 0.0
  %121 = vmatpush1.msra.mxu0 0.0
  %122 = vmatprep.subr.mxu0 0.0
  %123 = vmatpush1.msra.mxu0 0.0
  %124 = vmatprep.subr.mxu0 0.0
  %125 = vmatpush1.msra.mxu0 0.0
  %126 = vmatprep.subr.mxu0 0.0
  %127 = vmatpush1.msra.mxu0 0.0
  %128 = vmatprep.subr.mxu0 0.0
  %129 = vmatpush1.msra.mxu0 0.0
  %130 = vmatprep.subr.mxu0 0.0
  %131 = vmatpush1.msra.mxu0 0.0
  %132 = vmatprep.subr.mxu0 0.0
  %133 = vmatpush1.msra.mxu0 0.0
  %134 = vmatprep.subr.mxu0 0.0
  %135 = vmatpush1.msra.mxu0 0.0
  %136 = vmatprep.subr.mxu0 0.0
  %137 = vmatpush1.msra.mxu0 0.0
  %138 = vmatprep.subr.mxu0 0.0
  %139 = vmatpush1.msra.mxu0 0.0
  %140 = vmatprep.subr.mxu0 0.0
  %141 = vmatpush1.msra.mxu0 0.0
  %142 = vmatprep.subr.mxu0 0.0
  %143 = vmatpush1.msra.mxu0 0.0
  %144 = vmatprep.subr.mxu0 0.0
  %145 = vmatpush1.msra.mxu0 0.0
  %146 = vmatprep.subr.mxu0 0.0
  %147 = vmatpush1.msra.mxu0 0.0
  %148 = vmatprep.subr.mxu0 0.0
  %149 = vmatpush1.msra.mxu0 0.0
  %150 = vmatprep.subr.mxu0 0.0
  %151 = vmatpush1.msra.mxu0 0.0
  %152 = vmatprep.subr.mxu0 0.0
  %153 = vmatpush1.msra.mxu0 0.0
  %154 = vmatprep.subr.mxu0 0.0
  %155 = vmatpush1.msra.mxu0 0.0
  %156 = vmatprep.subr.mxu0 0.0
  %157 = vmatpush1.msra.mxu0 0.0
  %158 = vmatprep.subr.mxu0 0.0
  %159 = vmatpush1.msra.mxu0 0.0
  %160 = vmatprep.subr.mxu0 0.0
  %161 = vmatpush1.msra.mxu0 0.0
  %162 = vmatprep.subr.mxu0 0.0
  %163 = vmatpush1.msra.mxu0 0.0
  %164 = vmatprep.mubr.f32.mxu0 0.0
  %165 = vmatmul.mubr.f32.gmra.mrb[0].mxu0 %v95
  %v166 = vpop.f32.mrb[0].mxu0
  %v167 = vadd.f32 %v92, %v166
  %v168 = vpop.f32.mrb[0].mxu0
  %169 = vmatprep.mubr.f32.mxu0 0.0
  %170 = vmatmul.mubr.f32.gmra.mrb[0].mxu0 %v98
  %v171 = vpop.f32.mrb[0].mxu0
  %v172 = vadd.f32 %v92, %v171
  %v173 = vpop.f32.mrb[0].mxu0
  %174 = vdwg.mxu0
  %175 = vst.msk [vmem:[%s5] sm:$0xff] %vm22, %v167
  %176 = vst.msk [vmem:[%s5 + $0x8] sm:$0xff] %vm22, %v172
  // Predicated region
  $region22: #{jambu_forward.44} parent=0 // pred_check
    _
  $region23: #{jambu_forward.44} parent=0 // pred_check_branch
    %178 = sbr.rel (0) target = $region25
  $region24: #{jambu_forward.44} parent=0 // pred_region
    _
  $region25: #{jambu_forward.44} parent=0 // pred_fallthru
    _
  // Predicated region
  $region26: #{jambu_forward.44} parent=0 // pred_check
    _
  $region27: #{jambu_forward.44} parent=0 // pred_check_branch
    %180 = sbr.rel (0) target = $region29
  $region28: #{jambu_forward.44} parent=0 // pred_region
    _
  $region29: #{jambu_forward.44} parent=0 // pred_fallthru
    _

// kernel: jambu_forward.46
$region0: #{jambu_forward.46}
  #allocation0 [shape = 'u32[]', space=smem, size = 0x4, offset = 0x4, fixed_abs, tag = 'smem constant byte address 0x4 - core index']
  #allocation1 [shape = 'u32[144,128]{1,0:T(1,128)}', space=vmem, size = 0x12000, scoped, tag = 'internal scratch']
  %s0 = inlined_call_operand.vmem [shape: f32[2,8,32], index: 0, kind: input, shape index: {}]
  %s1 = inlined_call_operand.vmem [shape: f32[2,8,64], index: 1, kind: input, shape index: {}]
  %s2 = inlined_call_operand.vmem [shape: s32[2,1,8], index: 2, kind: input, shape index: {}]
  %s3 = inlined_call_operand.vmem [shape: f32[2,8,32], index: 3, kind: output, shape index: {}]
  %s4 = sld [smem:[#allocation0]]
  $region45: #{jambu_forward.46} parent=0
    _
  %s6 = ssub.s32 1, %s4
  %s7 = scalar_select 0, %s6, %s4
  loop: start=0, step=1, limit=4
  $region2: #{jambu_forward.46} parent=0 // loop_pre_header
    _
  $region3: #{jambu_forward.46} parent=0 // loop_header
    %s9 = sphi 0, %s13
    %p10 = scmp.ge.s32.totalorder %s9, 4
    %s19 = sphi 0, %s21
    %s22 = sphi 0, %s19
    %s23 = sphi 0, %s22
    %s39 = sphi 0, %s23
    %s45 = sphi 0, %s47
    %s48 = sphi 0, %s45
    %s49 = sphi 0, %s48
    %s65 = sphi 0, %s49
    %s71 = sphi 0, %s73
    %s74 = sphi 0, %s71
    %s75 = sphi 0, %s74
    %s91 = sphi 0, %s75
    %s97 = sphi 0, %s99
    %s100 = sphi 0, %s97
    %s101 = sphi 0, %s100
    %s117 = sphi 0, %s101
  $region4: #{jambu_forward.46} parent=0 // loop_header_branch
    %12 = sbr.rel (%p10) target = $region8
  $region5: #{jambu_forward.46} parent=0 // loop_body
    %s14 = ssub.s32 %s9, 1
    %s15 = ssub.s32 %s9, 2
    %s16 = sadd.s32 %s9, 1
    %s17 = ssub.s32 %s9, %s16
    %p18 = scmp.eq.s32.totalorder %s17, 0
    %s20 = sadd.s32 %s19, 1
    %s21 = scalar_select %p18, %s19, %s20
    %p24 = pneg %p18
    %p25 = scmp.eq.s32.totalorder %s9, 1
    %p26 = por %p24, %p25
    %p27 = scmp.ne.s32.totalorder %s19, %s22
    %p28 = scmp.eq.s32.totalorder %s9, 0
    %p29 = por %p27, %p28
    %p30 = scmp.ne.s32.totalorder %s19, %s22
    %p31 = scmp.eq.s32.totalorder %s14, 1
    %p32 = por %p30, %p31
    %p33 = scmp.ne.s32.totalorder %s22, %s23
    %p34 = scmp.eq.s32.totalorder %s14, 0
    %p35 = por %p33, %p34
    %p36 = scmp.ne.s32.totalorder %s22, %s23
    %p37 = scmp.eq.s32.totalorder %s15, 1
    %p38 = por %p36, %p37
    %p40 = scmp.ne.s32.totalorder %s23, %s39
    %p41 = scmp.eq.s32.totalorder %s15, 0
    %p42 = por %p40, %p41
    %s43 = ssub.s32 %s9, %s16
    %p44 = scmp.eq.s32.totalorder %s43, 0
    %s46 = sadd.s32 %s45, 1
    %s47 = scalar_select %p44, %s45, %s46
    %p50 = pneg %p44
    %p51 = scmp.eq.s32.totalorder %s9, 1
    %p52 = por %p50, %p51
    %p53 = scmp.ne.s32.totalorder %s45, %s48
    %p54 = scmp.eq.s32.totalorder %s9, 0
    %p55 = por %p53, %p54
    %p56 = scmp.ne.s32.totalorder %s45, %s48
    %p57 = scmp.eq.s32.totalorder %s14, 1
    %p58 = por %p56, %p57
    %p59 = scmp.ne.s32.totalorder %s48, %s49
    %p60 = scmp.eq.s32.totalorder %s14, 0
    %p61 = por %p59, %p60
    %p62 = scmp.ne.s32.totalorder %s48, %s49
    %p63 = scmp.eq.s32.totalorder %s15, 1
    %p64 = por %p62, %p63
    %p66 = scmp.ne.s32.totalorder %s49, %s65
    %p67 = scmp.eq.s32.totalorder %s15, 0
    %p68 = por %p66, %p67
    %s69 = ssub.s32 %s9, %s16
    %p70 = scmp.eq.s32.totalorder %s69, 0
    %s72 = sadd.s32 %s71, 1
    %s73 = scalar_select %p70, %s71, %s72
    %p76 = pneg %p70
    %p77 = scmp.eq.s32.totalorder %s9, 1
    %p78 = por %p76, %p77
    %p79 = scmp.ne.s32.totalorder %s71, %s74
    %p80 = scmp.eq.s32.totalorder %s9, 0
    %p81 = por %p79, %p80
    %p82 = scmp.ne.s32.totalorder %s71, %s74
    %p83 = scmp.eq.s32.totalorder %s14, 1
    %p84 = por %p82, %p83
    %p85 = scmp.ne.s32.totalorder %s74, %s75
    %p86 = scmp.eq.s32.totalorder %s14, 0
    %p87 = por %p85, %p86
    %p88 = scmp.ne.s32.totalorder %s74, %s75
    %p89 = scmp.eq.s32.totalorder %s15, 1
    %p90 = por %p88, %p89
    %p92 = scmp.ne.s32.totalorder %s75, %s91
    %p93 = scmp.eq.s32.totalorder %s15, 0
    %p94 = por %p92, %p93
    %s95 = ssub.s32 %s9, %s16
    %p96 = scmp.eq.s32.totalorder %s95, 0
    %s98 = sadd.s32 %s97, 1
    %s99 = scalar_select %p96, %s97, %s98
    %p102 = pneg %p96
    %p103 = scmp.eq.s32.totalorder %s9, 1
    %p104 = por %p102, %p103
    %p105 = scmp.ne.s32.totalorder %s97, %s100
    %p106 = scmp.eq.s32.totalorder %s9, 0
    %p107 = por %p105, %p106
    %p108 = scmp.ne.s32.totalorder %s97, %s100
    %p109 = scmp.eq.s32.totalorder %s14, 1
    %p110 = por %p108, %p109
    %p111 = scmp.ne.s32.totalorder %s100, %s101
    %p112 = scmp.eq.s32.totalorder %s14, 0
    %p113 = por %p111, %p112
    %p114 = scmp.ne.s32.totalorder %s100, %s101
    %p115 = scmp.eq.s32.totalorder %s15, 1
    %p116 = por %p114, %p115
    %p118 = scmp.ne.s32.totalorder %s101, %s117
    %p119 = scmp.eq.s32.totalorder %s15, 0
    %p120 = por %p118, %p119
    %p121 = scmp.le.s32.totalorder 1, %s9
    %p122 = scmp.lt.s32.totalorder %s9, 3
    %p123 = pnand %p121, %p122
    %p124 = pneg %p123
    // Predicated region
    $region9: #{jambu_forward.46} parent=5 // pred_check
      _
    $region10: #{jambu_forward.46} parent=5 // pred_check_branch
      %126 = sbr.rel (%p123) target = $region12
    $region11: #{jambu_forward.46} parent=5 // pred_region
      %s127 = ssub.s32 %s9, 1
    $region12: #{jambu_forward.46} parent=5 // pred_fallthru
      _
    %p128 = scmp.lt.s32.totalorder %s9, 2
    // Predicated region
    $region13: #{jambu_forward.46} parent=5 // pred_check
      %p129 = pneg %p128
    $region14: #{jambu_forward.46} parent=5 // pred_check_branch
      %131 = sbr.rel (%p129) target = $region16
    $region15: #{jambu_forward.46} parent=5 // pred_region
      // Predicated region
      $region17: #{jambu_forward.46} parent=15 // pred_check
        %p132 = pneg %p29
      $region18: #{jambu_forward.46} parent=15 // pred_check_branch
        %134 = sbr.rel (%p132) target = $region20
      $region19: #{jambu_forward.46} parent=15 // pred_region
        %p135 = scmp.lt.s32.totalorder %s9, 1
        %s136 = scalar_select %p135, %s9, 1
        %s137 = smul.addr %s136, 8
        %s138 = scalar_lea.vmem %s0, %s137
      $region20: #{jambu_forward.46} parent=15 // pred_fallthru
        _
      // Predicated region
      $region21: #{jambu_forward.46} parent=15 // pred_check
        %p139 = pneg %p55
      $region22: #{jambu_forward.46} parent=15 // pred_check_branch
        %141 = sbr.rel (%p139) target = $region24
      $region23: #{jambu_forward.46} parent=15 // pred_region
        %p142 = scmp.lt.s32.totalorder %s9, 1
        %s143 = scalar_select %p142, %s9, 1
        %s144 = smul.addr %s143, 8
        %s145 = scalar_lea.vmem %s1, %s144
      $region24: #{jambu_forward.46} parent=15 // pred_fallthru
        _
      // Predicated region
      $region25: #{jambu_forward.46} parent=15 // pred_check
        %p146 = pneg %p81
      $region26: #{jambu_forward.46} parent=15 // pred_check_branch
        %148 = sbr.rel (%p146) target = $region28
      $region27: #{jambu_forward.46} parent=15 // pred_region
        %p149 = scmp.lt.s32.totalorder %s9, 1
        %s150 = scalar_select %p149, %s9, 1
        %s151 = scalar_lea.vmem %s2, %s150
      $region28: #{jambu_forward.46} parent=15 // pred_fallthru
        _
    $region16: #{jambu_forward.46} parent=5 // pred_fallthru
      _
    %p152 = scmp.le.s32.totalorder 1, %s9
    %p153 = scmp.lt.s32.totalorder %s9, 3
    %p154 = pnand %p152, %p153
    %p155 = pneg %p154
    // Predicated region
    $region29: #{jambu_forward.46} parent=5 // pred_check
      _
    $region30: #{jambu_forward.46} parent=5 // pred_check_branch
      %157 = sbr.rel (%p154) target = $region32
    $region31: #{jambu_forward.46} parent=5 // pred_region
      %s158 = ssub.s32 %s9, 1
      %p159 = scmp.lt.s32.totalorder %s14, 1
      %s160 = scalar_select %p159, %s14, 1
      %s161 = smul.addr %s160, 8
      %s162 = scalar_lea.vmem %s0, %s161
      %p163 = pneg %p35
      %p164 = pneg %p32
      %p165 = scmp.lt.s32.totalorder %s14, 1
      %s166 = scalar_select %p165, %s14, 1
      %s167 = smul.addr %s166, 8
      %s168 = scalar_lea.vmem %s1, %s167
      %p169 = pneg %p61
      %p170 = pneg %p58
      %p171 = scmp.lt.s32.totalorder %s14, 1
      %s172 = scalar_select %p171, %s14, 1
      %s173 = scalar_lea.vmem %s2, %s172
      %p174 = pneg %p87
      %p175 = pneg %p84
      %p176 = pneg %p113
      %p177 = pneg %p110
      %p178 = scmp.lt.s32.totalorder %s14, 1
      %s179 = scalar_select %p178, %s14, 1
      %s180 = smul.addr %s179, 8
      %s181 = scalar_lea.vmem %s3, %s180
      %p182 = scmp.lt.s32.totalorder %s14, 1
      %s183 = scalar_select %p182, %s14, 1
      %s184 = smul.addr %s183, 8
      %s185 = scalar_lea.vmem %s0, %s184
      %p186 = scmp.lt.s32.totalorder %s14, 1
      %s187 = scalar_select %p186, %s14, 1
      %s188 = smul.addr %s187, 8
      %s189 = scalar_lea.vmem %s1, %s188
      %p190 = scmp.lt.s32.totalorder %s14, 1
      %s191 = scalar_select %p190, %s14, 1
      %s192 = scalar_lea.vmem %s2, %s191
      %p193 = scmp.lt.s32.totalorder %s14, 1
      %s194 = scalar_select %p193, %s14, 1
      %s195 = smul.addr %s194, 8
      %s196 = scalar_lea.vmem %s3, %s195
      %v197 = vld [vmem:[%s185] sm:$0xff]
      %v198 = vld [vmem:[%s189] sm:$0xff]
      %v199 = vld [vmem:[%s192] sm:$0x1]
      %v200 = vmul.f32 %v197, 0.35355338
      %vm201 = vcmask 64512
      %v203 = vsel %vm201, %v200, 0
      %v206 = vsel %vm201, %v198, 0
      %208 = vmatprep.subr.mxu0 0.0
      %209 = vmatpush1.xpose.msra.mxu0 %v206
      %210 = vmatprep.subr.mxu0 0.0
      %211 = vmatpush1.xpose.msra.mxu0 0.0
      %212 = vmatprep.subr.mxu0 0.0
      %213 = vmatpush1.xpose.msra.mxu0 0.0
      %214 = vmatprep.subr.mxu0 0.0
      %215 = vmatpush1.xpose.msra.mxu0 0.0
      %216 = vmatprep.subr.mxu0 0.0
      %217 = vmatpush1.xpose.msra.mxu0 0.0
      %218 = vmatprep.subr.mxu0 0.0
      %219 = vmatpush1.xpose.msra.mxu0 0.0
      %220 = vmatprep.subr.mxu0 0.0
      %221 = vmatpush1.xpose.msra.mxu0 0.0
      %222 = vmatprep.subr.mxu0 0.0
      %223 = vmatpush1.xpose.msra.mxu0 0.0
      %224 = vmatprep.subr.mxu0 0.0
      %225 = vmatpush1.xpose.msra.mxu0 0.0
      %226 = vmatprep.subr.mxu0 0.0
      %227 = vmatpush1.xpose.msra.mxu0 0.0
      %228 = vmatprep.subr.mxu0 0.0
      %229 = vmatpush1.xpose.msra.mxu0 0.0
      %230 = vmatprep.subr.mxu0 0.0
      %231 = vmatpush1.xpose.msra.mxu0 0.0
      %232 = vmatprep.subr.mxu0 0.0
      %233 = vmatpush1.xpose.msra.mxu0 0.0
      %234 = vmatprep.subr.mxu0 0.0
      %235 = vmatpush1.xpose.msra.mxu0 0.0
      %236 = vmatprep.subr.mxu0 0.0
      %237 = vmatpush1.xpose.msra.mxu0 0.0
      %238 = vmatprep.subr.mxu0 0.0
      %239 = vmatpush1.xpose.msra.mxu0 0.0
      %240 = vmatprep.subr.mxu0 0.0
      %241 = vmatpush1.xpose.msra.mxu0 0.0
      %242 = vmatprep.subr.mxu0 0.0
      %243 = vmatpush1.xpose.msra.mxu0 0.0
      %244 = vmatprep.subr.mxu0 0.0
      %245 = vmatpush1.xpose.msra.mxu0 0.0
      %246 = vmatprep.subr.mxu0 0.0
      %247 = vmatpush1.xpose.msra.mxu0 0.0
      %248 = vmatprep.subr.mxu0 0.0
      %249 = vmatpush1.xpose.msra.mxu0 0.0
      %250 = vmatprep.subr.mxu0 0.0
      %251 = vmatpush1.xpose.msra.mxu0 0.0
      %252 = vmatprep.subr.mxu0 0.0
      %253 = vmatpush1.xpose.msra.mxu0 0.0
      %254 = vmatprep.subr.mxu0 0.0
      %255 = vmatpush1.xpose.msra.mxu0 0.0
      %256 = vmatprep.subr.mxu0 0.0
      %257 = vmatpush1.xpose.msra.mxu0 0.0
      %258 = vmatprep.subr.mxu0 0.0
      %259 = vmatpush1.xpose.msra.mxu0 0.0
      %260 = vmatprep.subr.mxu0 0.0
      %261 = vmatpush1.xpose.msra.mxu0 0.0
      %262 = vmatprep.subr.mxu0 0.0
      %263 = vmatpush1.xpose.msra.mxu0 0.0
      %264 = vmatprep.subr.mxu0 0.0
      %265 = vmatpush1.xpose.msra.mxu0 0.0
      %266 = vmatprep.subr.mxu0 0.0
      %267 = vmatpush1.xpose.msra.mxu0 0.0
      %268 = vmatprep.subr.mxu0 0.0
      %269 = vmatpush1.xpose.msra.mxu0 0.0
      %270 = vmatprep.subr.mxu0 0.0
      %271 = vmatpush1.xpose.msra.mxu0 0.0
      %272 = vmatprep.mubr.f32.mxu0 0.0
      %273 = vmatmul.mubr.f32.gmra.mrb[0].mxu0 %v203
      %v274 = vpop.f32.mrb[0].mxu0
      %v275 = vadd.f32 0.0, %v274
      %v276 = vpop.f32.mrb[0].mxu0
      %277 = vdwg.mxu0
      %vm278 = vcmp.eq.s32.totalorder %v199, 0
      %v279 = vsel %vm278, 1, 0
      %v280 = vlaneseq
      %v281 = vshrl.u32 %v280, 7
      %v282 = vsub.s32 0, %v281
      %v283 = vrot.slane %v279, %v282
      %vm284 = vcmp.eq.s32.totalorder %v283, 1
      %v285 = vsel %vm284, -1e+09, %v275
      %v286 = vsel %vm201, %v285, -inf
      %287 = vmax.xlane.f32.xlu0 %v286
      %v288 = vpop.xlane.xlu0 %287
      %v289 = vsub.f32 %v285, %v288
      %v290 = vmul.f32 %v289, 1.442695
      %v291 = vpow.pop %v290
      %v292 = vsel %vm201, %v291, 0.0
      %293 = vadd.xlane.f32.xlu0 %v292
      %v294 = vpop.xlane.xlu0 %293
      %v295 = vrcp.pop %v294
      %v296 = vmul.f32 %v291, %v295
      %297 = vrot.lane.b32.xlu0 %v198, 96
      %v298 = vpop.permute.xlu0 %297
      %v301 = vsel %vm201, %v296, 0
      %303 = vmatprep.subr.mxu0 0.0
      %304 = vmatpush1.msra.mxu0 %v298
      %305 = vmatprep.subr.mxu0 0.0
      %306 = vmatpush1.msra.mxu0 0.0
      %307 = vmatprep.subr.mxu0 0.0
      %308 = vmatpush1.msra.mxu0 0.0
      %309 = vmatprep.subr.mxu0 0.0
      %310 = vmatpush1.msra.mxu0 0.0
      %311 = vmatprep.subr.mxu0 0.0
      %312 = vmatpush1.msra.mxu0 0.0
      %313 = vmatprep.subr.mxu0 0.0
      %314 = vmatpush1.msra.mxu0 0.0
      %315 = vmatprep.subr.mxu0 0.0
      %316 = vmatpush1.msra.mxu0 0.0
      %317 = vmatprep.subr.mxu0 0.0
      %318 = vmatpush1.msra.mxu0 0.0
      %319 = vmatprep.subr.mxu0 0.0
      %320 = vmatpush1.msra.mxu0 0.0
      %321 = vmatprep.subr.mxu0 0.0
      %322 = vmatpush1.msra.mxu0 0.0
      %323 = vmatprep.subr.mxu0 0.0
      %324 = vmatpush1.msra.mxu0 0.0
      %325 = vmatprep.subr.mxu0 0.0
      %326 = vmatpush1.msra.mxu0 0.0
      %327 = vmatprep.subr.mxu0 0.0
      %328 = vmatpush1.msra.mxu0 0.0
      %329 = vmatprep.subr.mxu0 0.0
      %330 = vmatpush1.msra.mxu0 0.0
      %331 = vmatprep.subr.mxu0 0.0
      %332 = vmatpush1.msra.mxu0 0.0
      %333 = vmatprep.subr.mxu0 0.0
      %334 = vmatpush1.msra.mxu0 0.0
      %335 = vmatprep.subr.mxu0 0.0
      %336 = vmatpush1.msra.mxu0 0.0
      %337 = vmatprep.subr.mxu0 0.0
      %338 = vmatpush1.msra.mxu0 0.0
      %339 = vmatprep.subr.mxu0 0.0
      %340 = vmatpush1.msra.mxu0 0.0
      %341 = vmatprep.subr.mxu0 0.0
      %342 = vmatpush1.msra.mxu0 0.0
      %343 = vmatprep.subr.mxu0 0.0
      %344 = vmatpush1.msra.mxu0 0.0
      %345 = vmatprep.subr.mxu0 0.0
      %346 = vmatpush1.msra.mxu0 0.0
      %347 = vmatprep.subr.mxu0 0.0
      %348 = vmatpush1.msra.mxu0 0.0
      %349 = vmatprep.subr.mxu0 0.0
      %350 = vmatpush1.msra.mxu0 0.0
      %351 = vmatprep.subr.mxu0 0.0
      %352 = vmatpush1.msra.mxu0 0.0
      %353 = vmatprep.subr.mxu0 0.0
      %354 = vmatpush1.msra.mxu0 0.0
      %355 = vmatprep.subr.mxu0 0.0
      %356 = vmatpush1.msra.mxu0 0.0
      %357 = vmatprep.subr.mxu0 0.0
      %358 = vmatpush1.msra.mxu0 0.0
      %359 = vmatprep.subr.mxu0 0.0
      %360 = vmatpush1.msra.mxu0 0.0
      %361 = vmatprep.subr.mxu0 0.0
      %362 = vmatpush1.msra.mxu0 0.0
      %363 = vmatprep.subr.mxu0 0.0
      %364 = vmatpush1.msra.mxu0 0.0
      %365 = vmatprep.subr.mxu0 0.0
      %366 = vmatpush1.msra.mxu0 0.0
      %367 = vmatprep.mubr.f32.mxu0 0.0
      %368 = vmatmul.mubr.f32.gmra.mrb[0].mxu0 %v301
      %v369 = vpop.f32.mrb[0].mxu0
      %v370 = vadd.f32 0.0, %v369
      %v371 = vpop.f32.mrb[0].mxu0
      %372 = vdwg.mxu0
      %373 = vrot.lane.b32.xlu0 %v200, 120
      %v374 = vpop.permute.xlu0 %373
      %375 = vrot.lane.b32.xlu0 %v198, 120
      %v376 = vpop.permute.xlu0 %375
      %v377 = vsel %vm201, %v374, 0
      %v379 = vsel %vm201, %v376, 0
      %381 = vmatprep.subr.mxu0 0.0
      %382 = vmatpush1.xpose.msra.mxu0 %v379
      %383 = vmatprep.subr.mxu0 0.0
      %384 = vmatpush1.xpose.msra.mxu0 0.0
      %385 = vmatprep.subr.mxu0 0.0
      %386 = vmatpush1.xpose.msra.mxu0 0.0
      %387 = vmatprep.subr.mxu0 0.0
      %388 = vmatpush1.xpose.msra.mxu0 0.0
      %389 = vmatprep.subr.mxu0 0.0
      %390 = vmatpush1.xpose.msra.mxu0 0.0
      %391 = vmatprep.subr.mxu0 0.0
      %392 = vmatpush1.xpose.msra.mxu0 0.0
      %393 = vmatprep.subr.mxu0 0.0
      %394 = vmatpush1.xpose.msra.mxu0 0.0
      %395 = vmatprep.subr.mxu0 0.0
      %396 = vmatpush1.xpose.msra.mxu0 0.0
      %397 = vmatprep.subr.mxu0 0.0
      %398 = vmatpush1.xpose.msra.mxu0 0.0
      %399 = vmatprep.subr.mxu0 0.0
      %400 = vmatpush1.xpose.msra.mxu0 0.0
      %401 = vmatprep.subr.mxu0 0.0
      %402 = vmatpush1.xpose.msra.mxu0 0.0
      %403 = vmatprep.subr.mxu0 0.0
      %404 = vmatpush1.xpose.msra.mxu0 0.0
      %405 = vmatprep.subr.mxu0 0.0
      %406 = vmatpush1.xpose.msra.mxu0 0.0
      %407 = vmatprep.subr.mxu0 0.0
      %408 = vmatpush1.xpose.msra.mxu0 0.0
      %409 = vmatprep.subr.mxu0 0.0
      %410 = vmatpush1.xpose.msra.mxu0 0.0
      %411 = vmatprep.subr.mxu0 0.0
      %412 = vmatpush1.xpose.msra.mxu0 0.0
      %413 = vmatprep.subr.mxu0 0.0
      %414 = vmatpush1.xpose.msra.mxu0 0.0
      %415 = vmatprep.subr.mxu0 0.0
      %416 = vmatpush1.xpose.msra.mxu0 0.0
      %417 = vmatprep.subr.mxu0 0.0
      %418 = vmatpush1.xpose.msra.mxu0 0.0
      %419 = vmatprep.subr.mxu0 0.0
      %420 = vmatpush1.xpose.msra.mxu0 0.0
      %421 = vmatprep.subr.mxu0 0.0
      %422 = vmatpush1.xpose.msra.mxu0 0.0
      %423 = vmatprep.subr.mxu0 0.0
      %424 = vmatpush1.xpose.msra.mxu0 0.0
      %425 = vmatprep.subr.mxu0 0.0
      %426 = vmatpush1.xpose.msra.mxu0 0.0
      %427 = vmatprep.subr.mxu0 0.0
      %428 = vmatpush1.xpose.msra.mxu0 0.0
      %429 = vmatprep.subr.mxu0 0.0
      %430 = vmatpush1.xpose.msra.mxu0 0.0
      %431 = vmatprep.subr.mxu0 0.0
      %432 = vmatpush1.xpose.msra.mxu0 0.0
      %433 = vmatprep.subr.mxu0 0.0
      %434 = vmatpush1.xpose.msra.mxu0 0.0
      %435 = vmatprep.subr.mxu0 0.0
      %436 = vmatpush1.xpose.msra.mxu0 0.0
      %437 = vmatprep.subr.mxu0 0.0
      %438 = vmatpush1.xpose.msra.mxu0 0.0
      %439 = vmatprep.subr.mxu0 0.0
      %440 = vmatpush1.xpose.msra.mxu0 0.0
      %441 = vmatprep.subr.mxu0 0.0
      %442 = vmatpush1.xpose.msra.mxu0 0.0
      %443 = vmatprep.subr.mxu0 0.0
      %444 = vmatpush1.xpose.msra.mxu0 0.0
      %445 = vmatprep.mubr.f32.mxu0 0.0
      %446 = vmatmul.mubr.f32.gmra.mrb[0].mxu0 %v377
      %v447 = vpop.f32.mrb[0].mxu0
      %v448 = vadd.f32 0.0, %v447
      %v449 = vpop.f32.mrb[0].mxu0
      %450 = vdwg.mxu0
      %v451 = vsel %vm284, -1e+09, %v448
      %v452 = vsel %vm201, %v451, -inf
      %453 = vmax.xlane.f32.xlu0 %v452
      %v454 = vpop.xlane.xlu0 %453
      %v455 = vsub.f32 %v451, %v454
      %v456 = vmul.f32 %v455, 1.442695
      %v457 = vpow.pop %v456
      %v458 = vsel %vm201, %v457, 0.0
      %459 = vadd.xlane.f32.xlu0 %v458
      %v460 = vpop.xlane.xlu0 %459
      %v461 = vrcp.pop %v460
      %v462 = vmul.f32 %v457, %v461
      %463 = vrot.lane.b32.xlu0 %v198, 88
      %v464 = vpop.permute.xlu0 %463
      %v467 = vsel %vm201, %v462, 0
      %469 = vmatprep.subr.mxu0 0.0
      %470 = vmatpush1.msra.mxu0 %v464
      %471 = vmatprep.subr.mxu0 0.0
      %472 = vmatpush1.msra.mxu0 0.0
      %473 = vmatprep.subr.mxu0 0.0
      %474 = vmatpush1.msra.mxu0 0.0
      %475 = vmatprep.subr.mxu0 0.0
      %476 = vmatpush1.msra.mxu0 0.0
      %477 = vmatprep.subr.mxu0 0.0
      %478 = vmatpush1.msra.mxu0 0.0
      %479 = vmatprep.subr.mxu0 0.0
      %480 = vmatpush1.msra.mxu0 0.0
      %481 = vmatprep.subr.mxu0 0.0
      %482 = vmatpush1.msra.mxu0 0.0
      %483 = vmatprep.subr.mxu0 0.0
      %484 = vmatpush1.msra.mxu0 0.0
      %485 = vmatprep.subr.mxu0 0.0
      %486 = vmatpush1.msra.mxu0 0.0
      %487 = vmatprep.subr.mxu0 0.0
      %488 = vmatpush1.msra.mxu0 0.0
      %489 = vmatprep.subr.mxu0 0.0
      %490 = vmatpush1.msra.mxu0 0.0
      %491 = vmatprep.subr.mxu0 0.0
      %492 = vmatpush1.msra.mxu0 0.0
      %493 = vmatprep.subr.mxu0 0.0
      %494 = vmatpush1.msra.mxu0 0.0
      %495 = vmatprep.subr.mxu0 0.0
      %496 = vmatpush1.msra.mxu0 0.0
      %497 = vmatprep.subr.mxu0 0.0
      %498 = vmatpush1.msra.mxu0 0.0
      %499 = vmatprep.subr.mxu0 0.0
      %500 = vmatpush1.msra.mxu0 0.0
      %501 = vmatprep.subr.mxu0 0.0
      %502 = vmatpush1.msra.mxu0 0.0
      %503 = vmatprep.subr.mxu0 0.0
      %504 = vmatpush1.msra.mxu0 0.0
      %505 = vmatprep.subr.mxu0 0.0
      %506 = vmatpush1.msra.mxu0 0.0
      %507 = vmatprep.subr.mxu0 0.0
      %508 = vmatpush1.msra.mxu0 0.0
      %509 = vmatprep.subr.mxu0 0.0
      %510 = vmatpush1.msra.mxu0 0.0
      %511 = vmatprep.subr.mxu0 0.0
      %512 = vmatpush1.msra.mxu0 0.0
      %513 = vmatprep.subr.mxu0 0.0
      %514 = vmatpush1.msra.mxu0 0.0
      %515 = vmatprep.subr.mxu0 0.0
      %516 = vmatpush1.msra.mxu0 0.0
      %517 = vmatprep.subr.mxu0 0.0
      %518 = vmatpush1.msra.mxu0 0.0
      %519 = vmatprep.subr.mxu0 0.0
      %520 = vmatpush1.msra.mxu0 0.0
      %521 = vmatprep.subr.mxu0 0.0
      %522 = vmatpush1.msra.mxu0 0.0
      %523 = vmatprep.subr.mxu0 0.0
      %524 = vmatpush1.msra.mxu0 0.0
      %525 = vmatprep.subr.mxu0 0.0
      %526 = vmatpush1.msra.mxu0 0.0
      %527 = vmatprep.subr.mxu0 0.0
      %528 = vmatpush1.msra.mxu0 0.0
      %529 = vmatprep.subr.mxu0 0.0
      %530 = vmatpush1.msra.mxu0 0.0
      %531 = vmatprep.subr.mxu0 0.0
      %532 = vmatpush1.msra.mxu0 0.0
      %533 = vmatprep.mubr.f32.mxu0 0.0
      %534 = vmatmul.mubr.f32.gmra.mrb[0].mxu0 %v467
      %v535 = vpop.f32.mrb[0].mxu0
      %v536 = vadd.f32 0.0, %v535
      %v537 = vpop.f32.mrb[0].mxu0
      %538 = vdwg.mxu0
      %539 = vrot.lane.b32.xlu0 %v200, 112
      %v540 = vpop.permute.xlu0 %539
      %541 = vrot.lane.b32.xlu0 %v198, 112
      %v542 = vpop.permute.xlu0 %541
      %v543 = vsel %vm201, %v540, 0
      %v545 = vsel %vm201, %v542, 0
      %547 = vmatprep.subr.mxu0 0.0
      %548 = vmatpush1.xpose.msra.mxu0 %v545
      %549 = vmatprep.subr.mxu0 0.0
      %550 = vmatpush1.xpose.msra.mxu0 0.0
      %551 = vmatprep.subr.mxu0 0.0
      %552 = vmatpush1.xpose.msra.mxu0 0.0
      %553 = vmatprep.subr.mxu0 0.0
      %554 = vmatpush1.xpose.msra.mxu0 0.0
      %555 = vmatprep.subr.mxu0 0.0
      %556 = vmatpush1.xpose.msra.mxu0 0.0
      %557 = vmatprep.subr.mxu0 0.0
      %558 = vmatpush1.xpose.msra.mxu0 0.0
      %559 = vmatprep.subr.mxu0 0.0
      %560 = vmatpush1.xpose.msra.mxu0 0.0
      %561 = vmatprep.subr.mxu0 0.0
      %562 = vmatpush1.xpose.msra.mxu0 0.0
      %563 = vmatprep.subr.mxu0 0.0
      %564 = vmatpush1.xpose.msra.mxu0 0.0
      %565 = vmatprep.subr.mxu0 0.0
      %566 = vmatpush1.xpose.msra.mxu0 0.0
      %567 = vmatprep.subr.mxu0 0.0
      %568 = vmatpush1.xpose.msra.mxu0 0.0
      %569 = vmatprep.subr.mxu0 0.0
      %570 = vmatpush1.xpose.msra.mxu0 0.0
      %571 = vmatprep.subr.mxu0 0.0
      %572 = vmatpush1.xpose.msra.mxu0 0.0
      %573 = vmatprep.subr.mxu0 0.0
      %574 = vmatpush1.xpose.msra.mxu0 0.0
      %575 = vmatprep.subr.mxu0 0.0
      %576 = vmatpush1.xpose.msra.mxu0 0.0
      %577 = vmatprep.subr.mxu0 0.0
      %578 = vmatpush1.xpose.msra.mxu0 0.0
      %579 = vmatprep.subr.mxu0 0.0
      %580 = vmatpush1.xpose.msra.mxu0 0.0
      %581 = vmatprep.subr.mxu0 0.0
      %582 = vmatpush1.xpose.msra.mxu0 0.0
      %583 = vmatprep.subr.mxu0 0.0
      %584 = vmatpush1.xpose.msra.mxu0 0.0
      %585 = vmatprep.subr.mxu0 0.0
      %586 = vmatpush1.xpose.msra.mxu0 0.0
      %587 = vmatprep.subr.mxu0 0.0
      %588 = vmatpush1.xpose.msra.mxu0 0.0
      %589 = vmatprep.subr.mxu0 0.0
      %590 = vmatpush1.xpose.msra.mxu0 0.0
      %591 = vmatprep.subr.mxu0 0.0
      %592 = vmatpush1.xpose.msra.mxu0 0.0
      %593 = vmatprep.subr.mxu0 0.0
      %594 = vmatpush1.xpose.msra.mxu0 0.0
      %595 = vmatprep.subr.mxu0 0.0
      %596 = vmatpush1.xpose.msra.mxu0 0.0
      %597 = vmatprep.subr.mxu0 0.0
      %598 = vmatpush1.xpose.msra.mxu0 0.0
      %599 = vmatprep.subr.mxu0 0.0
      %600 = vmatpush1.xpose.msra.mxu0 0.0
      %601 = vmatprep.subr.mxu0 0.0
      %602 = vmatpush1.xpose.msra.mxu0 0.0
      %603 = vmatprep.subr.mxu0 0.0
      %604 = vmatpush1.xpose.msra.mxu0 0.0
      %605 = vmatprep.subr.mxu0 0.0
      %606 = vmatpush1.xpose.msra.mxu0 0.0
      %607 = vmatprep.subr.mxu0 0.0
      %608 = vmatpush1.xpose.msra.mxu0 0.0
      %609 = vmatprep.subr.mxu0 0.0
      %610 = vmatpush1.xpose.msra.mxu0 0.0
      %611 = vmatprep.mubr.f32.mxu0 0.0
      %612 = vmatmul.mubr.f32.gmra.mrb[0].mxu0 %v543
      %v613 = vpop.f32.mrb[0].mxu0
      %v614 = vadd.f32 0.0, %v613
      %v615 = vpop.f32.mrb[0].mxu0
      %616 = vdwg.mxu0
      %v617 = vsel %vm284, -1e+09, %v614
      %v618 = vsel %vm201, %v617, -inf
      %619 = vmax.xlane.f32.xlu0 %v618
      %v620 = vpop.xlane.xlu0 %619
      %v621 = vsub.f32 %v617, %v620
      %v622 = vmul.f32 %v621, 1.442695
      %v623 = vpow.pop %v622
      %v624 = vsel %vm201, %v623, 0.0
      %625 = vadd.xlane.f32.xlu0 %v624
      %v626 = vpop.xlane.xlu0 %625
      %v627 = vrcp.pop %v626
      %v628 = vmul.f32 %v623, %v627
      %629 = vrot.lane.b32.xlu0 %v198, 80
      %v630 = vpop.permute.xlu0 %629
      %v633 = vsel %vm201, %v628, 0
      %635 = vmatprep.subr.mxu0 0.0
      %636 = vmatpush1.msra.mxu0 %v630
      %637 = vmatprep.subr.mxu0 0.0
      %638 = vmatpush1.msra.mxu0 0.0
      %639 = vmatprep.subr.mxu0 0.0
      %640 = vmatpush1.msra.mxu0 0.0
      %641 = vmatprep.subr.mxu0 0.0
      %642 = vmatpush1.msra.mxu0 0.0
      %643 = vmatprep.subr.mxu0 0.0
      %644 = vmatpush1.msra.mxu0 0.0
      %645 = vmatprep.subr.mxu0 0.0
      %646 = vmatpush1.msra.mxu0 0.0
      %647 = vmatprep.subr.mxu0 0.0
      %648 = vmatpush1.msra.mxu0 0.0
      %649 = vmatprep.subr.mxu0 0.0
      %650 = vmatpush1.msra.mxu0 0.0
      %651 = vmatprep.subr.mxu0 0.0
      %652 = vmatpush1.msra.mxu0 0.0
      %653 = vmatprep.subr.mxu0 0.0
      %654 = vmatpush1.msra.mxu0 0.0
      %655 = vmatprep.subr.mxu0 0.0
      %656 = vmatpush1.msra.mxu0 0.0
      %657 = vmatprep.subr.mxu0 0.0
      %658 = vmatpush1.msra.mxu0 0.0
      %659 = vmatprep.subr.mxu0 0.0
      %660 = vmatpush1.msra.mxu0 0.0
      %661 = vmatprep.subr.mxu0 0.0
      %662 = vmatpush1.msra.mxu0 0.0
      %663 = vmatprep.subr.mxu0 0.0
      %664 = vmatpush1.msra.mxu0 0.0
      %665 = vmatprep.subr.mxu0 0.0
      %666 = vmatpush1.msra.mxu0 0.0
      %667 = vmatprep.subr.mxu0 0.0
      %668 = vmatpush1.msra.mxu0 0.0
      %669 = vmatprep.subr.mxu0 0.0
      %670 = vmatpush1.msra.mxu0 0.0
      %671 = vmatprep.subr.mxu0 0.0
      %672 = vmatpush1.msra.mxu0 0.0
      %673 = vmatprep.subr.mxu0 0.0
      %674 = vmatpush1.msra.mxu0 0.0
      %675 = vmatprep.subr.mxu0 0.0
      %676 = vmatpush1.msra.mxu0 0.0
      %677 = vmatprep.subr.mxu0 0.0
      %678 = vmatpush1.msra.mxu0 0.0
      %679 = vmatprep.subr.mxu0 0.0
      %680 = vmatpush1.msra.mxu0 0.0
      %681 = vmatprep.subr.mxu0 0.0
      %682 = vmatpush1.msra.mxu0 0.0
      %683 = vmatprep.subr.mxu0 0.0
      %684 = vmatpush1.msra.mxu0 0.0
      %685 = vmatprep.subr.mxu0 0.0
      %686 = vmatpush1.msra.mxu0 0.0
      %687 = vmatprep.subr.mxu0 0.0
      %688 = vmatpush1.msra.mxu0 0.0
      %689 = vmatprep.subr.mxu0 0.0
      %690 = vmatpush1.msra.mxu0 0.0
      %691 = vmatprep.subr.mxu0 0.0
      %692 = vmatpush1.msra.mxu0 0.0
      %693 = vmatprep.subr.mxu0 0.0
      %694 = vmatpush1.msra.mxu0 0.0
      %695 = vmatprep.subr.mxu0 0.0
      %696 = vmatpush1.msra.mxu0 0.0
      %697 = vmatprep.subr.mxu0 0.0
      %698 = vmatpush1.msra.mxu0 0.0
      %699 = vmatprep.mubr.f32.mxu0 0.0
      %700 = vmatmul.mubr.f32.gmra.mrb[0].mxu0 %v633
      %v701 = vpop.f32.mrb[0].mxu0
      %v702 = vadd.f32 0.0, %v701
      %v703 = vpop.f32.mrb[0].mxu0
      %704 = vdwg.mxu0
      %705 = vrot.lane.b32.xlu0 %v200, 104
      %v706 = vpop.permute.xlu0 %705
      %707 = vrot.lane.b32.xlu0 %v198, 104
      %v708 = vpop.permute.xlu0 %707
      %v709 = vsel %vm201, %v706, 0
      %v711 = vsel %vm201, %v708, 0
      %713 = vmatprep.subr.mxu0 0.0
      %714 = vmatpush1.xpose.msra.mxu0 %v711
      %715 = vmatprep.subr.mxu0 0.0
      %716 = vmatpush1.xpose.msra.mxu0 0.0
      %717 = vmatprep.subr.mxu0 0.0
      %718 = vmatpush1.xpose.msra.mxu0 0.0
      %719 = vmatprep.subr.mxu0 0.0
      %720 = vmatpush1.xpose.msra.mxu0 0.0
      %721 = vmatprep.subr.mxu0 0.0
      %722 = vmatpush1.xpose.msra.mxu0 0.0
      %723 = vmatprep.subr.mxu0 0.0
      %724 = vmatpush1.xpose.msra.mxu0 0.0
      %725 = vmatprep.subr.mxu0 0.0
      %726 = vmatpush1.xpose.msra.mxu0 0.0
      %727 = vmatprep.subr.mxu0 0.0
      %728 = vmatpush1.xpose.msra.mxu0 0.0
      %729 = vmatprep.subr.mxu0 0.0
      %730 = vmatpush1.xpose.msra.mxu0 0.0
      %731 = vmatprep.subr.mxu0 0.0
      %732 = vmatpush1.xpose.msra.mxu0 0.0
      %733 = vmatprep.subr.mxu0 0.0
      %734 = vmatpush1.xpose.msra.mxu0 0.0
      %735 = vmatprep.subr.mxu0 0.0
      %736 = vmatpush1.xpose.msra.mxu0 0.0
      %737 = vmatprep.subr.mxu0 0.0
      %738 = vmatpush1.xpose.msra.mxu0 0.0
      %739 = vmatprep.subr.mxu0 0.0
      %740 = vmatpush1.xpose.msra.mxu0 0.0
      %741 = vmatprep.subr.mxu0 0.0
      %742 = vmatpush1.xpose.msra.mxu0 0.0
      %743 = vmatprep.subr.mxu0 0.0
      %744 = vmatpush1.xpose.msra.mxu0 0.0
      %745 = vmatprep.subr.mxu0 0.0
      %746 = vmatpush1.xpose.msra.mxu0 0.0
      %747 = vmatprep.subr.mxu0 0.0
      %748 = vmatpush1.xpose.msra.mxu0 0.0
      %749 = vmatprep.subr.mxu0 0.0
      %750 = vmatpush1.xpose.msra.mxu0 0.0
      %751 = vmatprep.subr.mxu0 0.0
      %752 = vmatpush1.xpose.msra.mxu0 0.0
      %753 = vmatprep.subr.mxu0 0.0
      %754 = vmatpush1.xpose.msra.mxu0 0.0
      %755 = vmatprep.subr.mxu0 0.0
      %756 = vmatpush1.xpose.msra.mxu0 0.0
      %757 = vmatprep.subr.mxu0 0.0
      %758 = vmatpush1.xpose.msra.mxu0 0.0
      %759 = vmatprep.subr.mxu0 0.0
      %760 = vmatpush1.xpose.msra.mxu0 0.0
      %761 = vmatprep.subr.mxu0 0.0
      %762 = vmatpush1.xpose.msra.mxu0 0.0
      %763 = vmatprep.subr.mxu0 0.0
      %764 = vmatpush1.xpose.msra.mxu0 0.0
      %765 = vmatprep.subr.mxu0 0.0
      %766 = vmatpush1.xpose.msra.mxu0 0.0
      %767 = vmatprep.subr.mxu0 0.0
      %768 = vmatpush1.xpose.msra.mxu0 0.0
      %769 = vmatprep.subr.mxu0 0.0
      %770 = vmatpush1.xpose.msra.mxu0 0.0
      %771 = vmatprep.subr.mxu0 0.0
      %772 = vmatpush1.xpose.msra.mxu0 0.0
      %773 = vmatprep.subr.mxu0 0.0
      %774 = vmatpush1.xpose.msra.mxu0 0.0
      %775 = vmatprep.subr.mxu0 0.0
      %776 = vmatpush1.xpose.msra.mxu0 0.0
      %777 = vmatprep.mubr.f32.mxu0 0.0
      %778 = vmatmul.mubr.f32.gmra.mrb[0].mxu0 %v709
      %v779 = vpop.f32.mrb[0].mxu0
      %v780 = vadd.f32 0.0, %v779
      %v781 = vpop.f32.mrb[0].mxu0
      %782 = vdwg.mxu0
      %v783 = vsel %vm284, -1e+09, %v780
      %v784 = vsel %vm201, %v783, -inf
      %785 = vmax.xlane.f32.xlu0 %v784
      %v786 = vpop.xlane.xlu0 %785
      %v787 = vsub.f32 %v783, %v786
      %v788 = vmul.f32 %v787, 1.442695
      %v789 = vpow.pop %v788
      %v790 = vsel %vm201, %v789, 0.0
      %791 = vadd.xlane.f32.xlu0 %v790
      %v792 = vpop.xlane.xlu0 %791
      %v793 = vrcp.pop %v792
      %v794 = vmul.f32 %v789, %v793
      %795 = vrot.lane.b32.xlu0 %v198, 72
      %v796 = vpop.permute.xlu0 %795
      %v799 = vsel %vm201, %v794, 0
      %801 = vmatprep.subr.mxu0 0.0
      %802 = vmatpush1.msra.mxu0 %v796
      %803 = vmatprep.subr.mxu0 0.0
      %804 = vmatpush1.msra.mxu0 0.0
      %805 = vmatprep.subr.mxu0 0.0
      %806 = vmatpush1.msra.mxu0 0.0
      %807 = vmatprep.subr.mxu0 0.0
      %808 = vmatpush1.msra.mxu0 0.0
      %809 = vmatprep.subr.mxu0 0.0
      %810 = vmatpush1.msra.mxu0 0.0
      %811 = vmatprep.subr.mxu0 0.0
      %812 = vmatpush1.msra.mxu0 0.0
      %813 = vmatprep.subr.mxu0 0.0
      %814 = vmatpush1.msra.mxu0 0.0
      %815 = vmatprep.subr.mxu0 0.0
      %816 = vmatpush1.msra.mxu0 0.0
      %817 = vmatprep.subr.mxu0 0.0
      %818 = vmatpush1.msra.mxu0 0.0
      %819 = vmatprep.subr.mxu0 0.0
      %820 = vmatpush1.msra.mxu0 0.0
      %821 = vmatprep.subr.mxu0 0.0
      %822 = vmatpush1.msra.mxu0 0.0
      %823 = vmatprep.subr.mxu0 0.0
      %824 = vmatpush1.msra.mxu0 0.0
      %825 = vmatprep.subr.mxu0 0.0
      %826 = vmatpush1.msra.mxu0 0.0
      %827 = vmatprep.subr.mxu0 0.0
      %828 = vmatpush1.msra.mxu0 0.0
      %829 = vmatprep.subr.mxu0 0.0
      %830 = vmatpush1.msra.mxu0 0.0
      %831 = vmatprep.subr.mxu0 0.0
      %832 = vmatpush1.msra.mxu0 0.0
      %833 = vmatprep.subr.mxu0 0.0
      %834 = vmatpush1.msra.mxu0 0.0
      %835 = vmatprep.subr.mxu0 0.0
      %836 = vmatpush1.msra.mxu0 0.0
      %837 = vmatprep.subr.mxu0 0.0
      %838 = vmatpush1.msra.mxu0 0.0
      %839 = vmatprep.subr.mxu0 0.0
      %840 = vmatpush1.msra.mxu0 0.0
      %841 = vmatprep.subr.mxu0 0.0
      %842 = vmatpush1.msra.mxu0 0.0
      %843 = vmatprep.subr.mxu0 0.0
      %844 = vmatpush1.msra.mxu0 0.0
      %845 = vmatprep.subr.mxu0 0.0
      %846 = vmatpush1.msra.mxu0 0.0
      %847 = vmatprep.subr.mxu0 0.0
      %848 = vmatpush1.msra.mxu0 0.0
      %849 = vmatprep.subr.mxu0 0.0
      %850 = vmatpush1.msra.mxu0 0.0
      %851 = vmatprep.subr.mxu0 0.0
      %852 = vmatpush1.msra.mxu0 0.0
      %853 = vmatprep.subr.mxu0 0.0
      %854 = vmatpush1.msra.mxu0 0.0
      %855 = vmatprep.subr.mxu0 0.0
      %856 = vmatpush1.msra.mxu0 0.0
      %857 = vmatprep.subr.mxu0 0.0
      %858 = vmatpush1.msra.mxu0 0.0
      %859 = vmatprep.subr.mxu0 0.0
      %860 = vmatpush1.msra.mxu0 0.0
      %861 = vmatprep.subr.mxu0 0.0
      %862 = vmatpush1.msra.mxu0 0.0
      %863 = vmatprep.subr.mxu0 0.0
      %864 = vmatpush1.msra.mxu0 0.0
      %865 = vmatprep.mubr.f32.mxu0 0.0
      %866 = vmatmul.mubr.f32.gmra.mrb[0].mxu0 %v799
      %v867 = vpop.f32.mrb[0].mxu0
      %v868 = vadd.f32 0.0, %v867
      %v869 = vpop.f32.mrb[0].mxu0
      %870 = vdwg.mxu0
      %872 = vrot.lane.b32.xlu0 %v536, 8
      %v873 = vpop.permute.xlu0 %872
      %876 = vrot.lane.b32.xlu0 %v702, 16
      %v877 = vpop.permute.xlu0 %876
      %880 = vrot.lane.b32.xlu0 %v868, 24
      %v881 = vpop.permute.xlu0 %880
      %v883 = vsel %vm201, %v370, %v873
      %vm884 = vcmask 130048
      %v885 = vsel %vm884, %v883, %v877
      %vm886 = vcmask 195584
      %v887 = vsel %vm886, %v885, %v881
      %vm888 = vcmask 261120
      %889 = vst.msk [vmem:[%s196] sm:$0xff] %vm888, %v887
      %p890 = scmp.lt.s32.totalorder %s14, 1
      %s891 = scalar_select %p890, %s14, 1
      %s892 = smul.addr %s891, 8
      %s893 = scalar_lea.vmem %s3, %s892
      // Predicated region
      $region33: #{jambu_forward.46} parent=31 // pred_check
        %p894 = pneg %p110
      $region34: #{jambu_forward.46} parent=31 // pred_check_branch
        %896 = sbr.rel (%p894) target = $region36
      $region35: #{jambu_forward.46} parent=31 // pred_region
        _
      $region36: #{jambu_forward.46} parent=31 // pred_fallthru
        _
    $region32: #{jambu_forward.46} parent=5 // pred_fallthru
      _
    %p897 = scmp.le.s32.totalorder 2, %s9
    // Predicated region
    $region37: #{jambu_forward.46} parent=5 // pred_check
      %p898 = pneg %p897
    $region38: #{jambu_forward.46} parent=5 // pred_check_branch
      %900 = sbr.rel (%p898) target = $region40
    $region39: #{jambu_forward.46} parent=5 // pred_region
      %s901 = ssub.s32 %s9, 2
      // Predicated region
      $region41: #{jambu_forward.46} parent=39 // pred_check
        %p902 = pneg %p116
      $region42: #{jambu_forward.46} parent=39 // pred_check_branch
        %904 = sbr.rel (%p902) target = $region44
      $region43: #{jambu_forward.46} parent=39 // pred_region
        %p905 = scmp.lt.s32.totalorder %s15, 1
        %s906 = scalar_select %p905, %s15, 1
        %s907 = smul.addr %s906, 8
        %s908 = scalar_lea.vmem %s3, %s907
      $region44: #{jambu_forward.46} parent=39 // pred_fallthru
        _
    $region40: #{jambu_forward.46} parent=5 // pred_fallthru
      _
  $region6: #{jambu_forward.46} parent=0 // loop_footer
    %s13 = sadd.s32 1, %s9
  $region7: #{jambu_forward.46} parent=0 // loop_footer_branch
    %8 = sbr.rel target = $region3
  $region8: #{jambu_forward.46} parent=0 // loop_exit
    _

</llo_original>
